<compile_context>
chip_gen: v5e
topology: v5e:2x2
jax: 0.10.0
libtpu: 0.0.40
codegen_flags: <defaults>
</compile_context>

<pallas_src>
import functools

import jax
import jax.numpy as jnp
from jax.experimental import pallas as pl
from jax.experimental.pallas import tpu as pltpu


_IN_FEATURES = 784
_IN_PADDED = 896          # 7 * 128: lane-aligned K for the first matmul


def _mlp_kernel(x_ref, w1_ref, b1_ref, w2_ref, b2_ref, w3_ref, b3_ref,
                w4_ref, b4_ref, o_ref):
    """Fused 4-layer MLP: (Linear+ReLU x3) + Linear + Sigmoid head.

    x / weights are bf16; matmuls accumulate in f32 on the MXU. The final
    256->1 projection runs on the VPU/XLU (multiply + lane reduction)."""
    x = x_ref[...]                                               # [tb, 896] bf16

    h = jnp.dot(x, w1_ref[...], preferred_element_type=jnp.float32) + b1_ref[...]
    h = jnp.maximum(h, 0.0).astype(jnp.bfloat16)                 # [tb, 1024]

    h = jnp.dot(h, w2_ref[...], preferred_element_type=jnp.float32) + b2_ref[...]
    h = jnp.maximum(h, 0.0).astype(jnp.bfloat16)                 # [tb, 512]

    h = jnp.dot(h, w3_ref[...], preferred_element_type=jnp.float32) + b3_ref[...]
    h = jnp.maximum(h, 0.0)                                      # [tb, 256] f32

    # 256 -> 1 head: broadcast-multiply by the weight row, reduce over lanes.
    w4_row = w4_ref[...].astype(jnp.float32)                     # [1, 256]
    logits = jnp.sum(h * w4_row, axis=-1, keepdims=True) + b4_ref[...]
    o_ref[...] = jax.nn.sigmoid(logits).astype(o_ref.dtype)


def prepare_params(params):
    """One-time conversion of f32 params into the kernel's layout.

    Weights are [in, out] (transposed vs. nn.Linear) cast to bf16; W1 rows are
    zero-padded 784 -> 896; W4 is flattened to a [1, 256] row for the VPU head.
    Biases stay f32 (added after the f32 accumulation)."""
    (w1, b1), (w2, b2), (w3, b3), (w4, b4) = params
    w1p = jnp.pad(w1, ((0, _IN_PADDED - _IN_FEATURES), (0, 0))).astype(jnp.bfloat16)
    return (
        w1p, b1.astype(jnp.float32),
        w2.astype(jnp.bfloat16), b2.astype(jnp.float32),
        w3.astype(jnp.bfloat16), b3.astype(jnp.float32),
        w4.reshape(1, -1).astype(jnp.bfloat16), b4.reshape(1, 1).astype(jnp.float32),
    )


def _round_up(n, m):
    return ((n + m - 1) // m) * m


@functools.partial(jax.jit, static_argnames=("batch_tile",))
def discriminator_forward(x, prepared_params, *, batch_tile=256):
    """x: [B, ...] with 784 trailing elements (e.g. [B, 1, 28, 28])."""
    b = x.shape[0]

    # Flatten, cast to bf16, and pad the feature dim to a lane multiple.
    x2d = x.reshape(b, _IN_FEATURES).astype(jnp.bfloat16)
    x2d = jnp.pad(x2d, ((0, 0), (0, _IN_PADDED - _IN_FEATURES)))

    # Batch tiling: pick the number of tiles implied by batch_tile, then size
    # tiles so total padding stays below one sublane group per tile.  Small
    # batches collapse to a single grid step sized to the 8-aligned real
    # batch; large batches use full (16-aligned, <=batch_tile) tiles so the
    # MXU rows are well filled and per-step overhead is amortized.
    num_tiles = -(-b // batch_tile)
    if num_tiles == 1:
        tb = _round_up(b, 8)
    else:
        tb = _round_up(-(-b // num_tiles), 16)
    b_pad = num_tiles * tb
    if b_pad != b:
        x2d = jnp.pad(x2d, ((0, b_pad - b), (0, 0)))

    grid = (num_tiles,)

    (w1, b1, w2, b2, w3, b3, w4, b4) = prepared_params

    # Whole-tensor spec, same block index every grid step -> Pallas keeps the
    # weights resident in VMEM across iterations (no per-step re-DMA).  bf16
    # weights total ~2.9 MiB, so VMEM pressure is low.
    def _full(shape):
        return pl.BlockSpec(shape, lambda i: tuple(0 for _ in shape))

    out = pl.pallas_call(
        _mlp_kernel,
        out_shape=jax.ShapeDtypeStruct((b_pad, 1), jnp.float32),
        grid_spec=pltpu.PrefetchScalarGridSpec(
            num_scalar_prefetch=0,
            grid=grid,
            in_specs=[
                pl.BlockSpec((tb, _IN_PADDED), lambda i: (i, 0)),   # x tile
                _full((_IN_PADDED, 1024)), _full((1, 1024)),        # layer 1
                _full((1024, 512)), _full((1, 512)),                # layer 2
                _full((512, 256)),  _full((1, 256)),                # layer 3
                _full((1, 256)),    _full((1, 1)),                  # layer 4 head
            ],
            out_specs=pl.BlockSpec((tb, 1), lambda i: (i, 0)),
        ),
        compiler_params=pltpu.CompilerParams(
            dimension_semantics=("parallel",),   # batch tiles shard across cores
            vmem_limit_bytes=32 << 20,           # safe on v7x's 64 MiB physical VMEM
        ),
    )(x2d, w1, b1, w2, b2, w3, b3, w4, b4)

    return out[:b]


def init_params(key):
    """Deterministic init matching nn.Linear's U(-1/sqrt(fan_in), 1/sqrt(fan_in)).

    Weights stored as [in_features, out_features]; biases as [1, out]."""
    dims = [(784, 1024), (1024, 512), (512, 256), (256, 1)]
    params = []
    for (fan_in, fan_out) in dims:
        key, kw, kb = jax.random.split(key, 3)
        bound = 1.0 / jnp.sqrt(float(fan_in))
        w = jax.random.uniform(kw, (fan_in, fan_out), jnp.float32, -bound, bound)
        b = jax.random.uniform(kb, (1, fan_out), jnp.float32, -bound, bound)
        params.append((w, b))
    return params


def reference_forward(x, params):
    """Pure-JAX f32 reference (eval-mode dropout = identity)."""
    h = x.reshape(x.shape[0], 784).astype(jnp.float32)
    (w1, b1), (w2, b2), (w3, b3), (w4, b4) = params
    h = jnp.maximum(h @ w1 + b1, 0.0)
    h = jnp.maximum(h @ w2 + b2, 0.0)
    h = jnp.maximum(h @ w3 + b3, 0.0)
    return jax.nn.sigmoid(h @ w4 + b4)


if __name__ == "__main__":
    key = jax.random.PRNGKey(0)
    key, kx = jax.random.split(key)

    # Small MNIST-like batch: [B, C, H, W] = [8, 1, 28, 28] -> 784 features.
    x = jax.random.normal(kx, (8, 1, 28, 28), dtype=jnp.float32)
    params = init_params(key)
    prepared = prepare_params(params)

    out = discriminator_forward(x, prepared)
    out = jax.block_until_ready(out)

    ref = reference_forward(x, params)
    assert out.shape == (8, 1), f"unexpected output shape {out.shape}"
    # bf16 inputs/weights with f32 accumulation: allow bf16 rounding error
    # relative to the pure-f32 reference.
    assert jnp.allclose(out, ref, atol=1e-2, rtol=0.0), "mismatch vs reference"

    print("KERNEL_OK")
</pallas_src>

<mosaic_0001>
module attributes {stable_mosaic.version = 11 : i64} {
  func.func @_mlp_kernel(%arg0: i32, %arg1: memref<8x896xbf16, #tpu.memory_space<vmem>>, %arg2: memref<896x1024xbf16, #tpu.memory_space<vmem>>, %arg3: memref<1x1024xf32, #tpu.memory_space<vmem>>, %arg4: memref<1024x512xbf16, #tpu.memory_space<vmem>>, %arg5: memref<1x512xf32, #tpu.memory_space<vmem>>, %arg6: memref<512x256xbf16, #tpu.memory_space<vmem>>, %arg7: memref<1x256xf32, #tpu.memory_space<vmem>>, %arg8: memref<1x256xbf16, #tpu.memory_space<vmem>>, %arg9: memref<1x1xf32, #tpu.memory_space<vmem>>, %arg10: memref<8x1xf32, #tpu.memory_space<vmem>>) attributes {dimension_semantics = [#tpu.dimension_semantics<parallel>], iteration_bounds = array<i64: 1>, scalar_prefetch = 0 : i64, scratch_operands = 0 : i64, tpu.core_type = #tpu.core_type<tc>, window_params = [{transform_indices = @transform_0, window_bounds = array<i64: 8, 896>}, {pipeline_mode = #tpu.pipeline_mode<synchronous>, transform_indices = @transform_1, window_bounds = array<i64: 896, 1024>}, {pipeline_mode = #tpu.pipeline_mode<synchronous>, transform_indices = @transform_2, window_bounds = array<i64: 1, 1024>}, {pipeline_mode = #tpu.pipeline_mode<synchronous>, transform_indices = @transform_3, window_bounds = array<i64: 1024, 512>}, {pipeline_mode = #tpu.pipeline_mode<synchronous>, transform_indices = @transform_4, window_bounds = array<i64: 1, 512>}, {pipeline_mode = #tpu.pipeline_mode<synchronous>, transform_indices = @transform_5, window_bounds = array<i64: 512, 256>}, {pipeline_mode = #tpu.pipeline_mode<synchronous>, transform_indices = @transform_6, window_bounds = array<i64: 1, 256>}, {pipeline_mode = #tpu.pipeline_mode<synchronous>, transform_indices = @transform_7, window_bounds = array<i64: 1, 256>}, {pipeline_mode = #tpu.pipeline_mode<synchronous>, transform_indices = @transform_8, window_bounds = array<i64: 1, 1>}, {transform_indices = @transform_9, window_bounds = array<i64: 8, 1>}]} {
    %c0 = arith.constant 0 : index
    %c0_0 = arith.constant 0 : index
    %0 = vector.load %arg1[%c0, %c0_0] : memref<8x896xbf16, #tpu.memory_space<vmem>>, vector<8x896xbf16>
    %c0_1 = arith.constant 0 : index
    %c0_2 = arith.constant 0 : index
    %1 = vector.load %arg2[%c0_1, %c0_2] : memref<896x1024xbf16, #tpu.memory_space<vmem>>, vector<896x1024xbf16>
    %cst = arith.constant dense<0.000000e+00> : vector<8x1024xf32>
    %2 = tpu.matmul %0, %1, %cst {dimension_numbers = #tpu.dot_dimension_numbers<[1], [0], [0], [1], [0, 0, 1, 1], [], []>} : vector<8x896xbf16>, vector<896x1024xbf16>, vector<8x1024xf32> -> vector<8x1024xf32>
    %c0_3 = arith.constant 0 : index
    %c0_4 = arith.constant 0 : index
    %3 = vector.load %arg3[%c0_3, %c0_4] : memref<1x1024xf32, #tpu.memory_space<vmem>>, vector<1x1024xf32>
    %4 = vector.broadcast %3 : vector<1x1024xf32> to vector<8x1024xf32>
    %5 = arith.addf %2, %4 : vector<8x1024xf32>
    %cst_5 = arith.constant 0.000000e+00 : f32
    %6 = vector.broadcast %cst_5 : f32 to vector<8x1024xf32>
    %7 = arith.maximumf %5, %6 : vector<8x1024xf32>
    %8 = arith.truncf %7 : vector<8x1024xf32> to vector<8x1024xbf16>
    %c0_6 = arith.constant 0 : index
    %c0_7 = arith.constant 0 : index
    %9 = vector.load %arg4[%c0_6, %c0_7] : memref<1024x512xbf16, #tpu.memory_space<vmem>>, vector<1024x512xbf16>
    %cst_8 = arith.constant dense<0.000000e+00> : vector<8x512xf32>
    %10 = tpu.matmul %8, %9, %cst_8 {dimension_numbers = #tpu.dot_dimension_numbers<[1], [0], [0], [1], [0, 0, 1, 1], [], []>} : vector<8x1024xbf16>, vector<1024x512xbf16>, vector<8x512xf32> -> vector<8x512xf32>
    %c0_9 = arith.constant 0 : index
    %c0_10 = arith.constant 0 : index
    %11 = vector.load %arg5[%c0_9, %c0_10] : memref<1x512xf32, #tpu.memory_space<vmem>>, vector<1x512xf32>
    %12 = vector.broadcast %11 : vector<1x512xf32> to vector<8x512xf32>
    %13 = arith.addf %10, %12 : vector<8x512xf32>
    %cst_11 = arith.constant 0.000000e+00 : f32
    %14 = vector.broadcast %cst_11 : f32 to vector<8x512xf32>
    %15 = arith.maximumf %13, %14 : vector<8x512xf32>
    %16 = arith.truncf %15 : vector<8x512xf32> to vector<8x512xbf16>
    %c0_12 = arith.constant 0 : index
    %c0_13 = arith.constant 0 : index
    %17 = vector.load %arg6[%c0_12, %c0_13] : memref<512x256xbf16, #tpu.memory_space<vmem>>, vector<512x256xbf16>
    %cst_14 = arith.constant dense<0.000000e+00> : vector<8x256xf32>
    %18 = tpu.matmul %16, %17, %cst_14 {dimension_numbers = #tpu.dot_dimension_numbers<[1], [0], [0], [1], [0, 0, 1, 1], [], []>} : vector<8x512xbf16>, vector<512x256xbf16>, vector<8x256xf32> -> vector<8x256xf32>
    %c0_15 = arith.constant 0 : index
    %c0_16 = arith.constant 0 : index
    %19 = vector.load %arg7[%c0_15, %c0_16] : memref<1x256xf32, #tpu.memory_space<vmem>>, vector<1x256xf32>
    %20 = vector.broadcast %19 : vector<1x256xf32> to vector<8x256xf32>
    %21 = arith.addf %18, %20 : vector<8x256xf32>
    %cst_17 = arith.constant 0.000000e+00 : f32
    %22 = vector.broadcast %cst_17 : f32 to vector<8x256xf32>
    %23 = arith.maximumf %21, %22 : vector<8x256xf32>
    %c0_18 = arith.constant 0 : index
    %c0_19 = arith.constant 0 : index
    %24 = vector.load %arg8[%c0_18, %c0_19] : memref<1x256xbf16, #tpu.memory_space<vmem>>, vector<1x256xbf16>
    %25 = arith.extf %24 : vector<1x256xbf16> to vector<1x256xf32>
    %26 = vector.broadcast %25 : vector<1x256xf32> to vector<8x256xf32>
    %27 = arith.mulf %23, %26 : vector<8x256xf32>
    %cst_20 = arith.constant dense<0.000000e+00> : vector<8xf32>
    %28 = vector.multi_reduction <add>, %27, %cst_20 [1] : vector<8x256xf32> to vector<8xf32>
    %29 = vector.shape_cast %28 : vector<8xf32> to vector<8x1xf32>
    %c0_21 = arith.constant 0 : index
    %c0_22 = arith.constant 0 : index
    %30 = vector.load %arg9[%c0_21, %c0_22] : memref<1x1xf32, #tpu.memory_space<vmem>>, vector<1x1xf32>
    %31 = vector.broadcast %30 : vector<1x1xf32> to vector<8x1xf32>
    %32 = arith.addf %29, %31 : vector<8x1xf32>
    %33 = arith.negf %32 : vector<8x1xf32>
    %34 = math.exp %33 : vector<8x1xf32>
    %cst_23 = arith.constant 1.000000e+00 : f32
    %35 = vector.broadcast %cst_23 : f32 to vector<8x1xf32>
    %36 = arith.addf %35, %34 : vector<8x1xf32>
    %37 = arith.divf %35, %36 : vector<8x1xf32>
    %c0_24 = arith.constant 0 : index
    %c0_25 = arith.constant 0 : index
    %38 = vector.load %arg10[%c0_24, %c0_25] : memref<8x1xf32, #tpu.memory_space<vmem>>, vector<8x1xf32>
    tpu.vector_store %arg10[%c0_24, %c0_25], %37 {strides = array<i32>} : memref<8x1xf32, #tpu.memory_space<vmem>>, vector<8x1xf32>,
    return
  }
  func.func @transform_0(%arg0: i32) -> (i32, i32) {
    %c0_i32 = arith.constant 0 : i32
    %c0_i32_0 = arith.constant 0 : i32
    return %arg0, %c0_i32 : i32, i32
  }
  func.func @transform_1(%arg0: i32) -> (i32, i32) {
    %c0_i32 = arith.constant 0 : i32
    %c0_i32_0 = arith.constant 0 : i32
    %c0_i32_1 = arith.constant 0 : i32
    return %c0_i32, %c0_i32_0 : i32, i32
  }
  func.func @transform_2(%arg0: i32) -> (i32, i32) {
    %c0_i32 = arith.constant 0 : i32
    %c0_i32_0 = arith.constant 0 : i32
    %c0_i32_1 = arith.constant 0 : i32
    return %c0_i32, %c0_i32_0 : i32, i32
  }
  func.func @transform_3(%arg0: i32) -> (i32, i32) {
    %c0_i32 = arith.constant 0 : i32
    %c0_i32_0 = arith.constant 0 : i32
    %c0_i32_1 = arith.constant 0 : i32
    return %c0_i32, %c0_i32_0 : i32, i32
  }
  func.func @transform_4(%arg0: i32) -> (i32, i32) {
    %c0_i32 = arith.constant 0 : i32
    %c0_i32_0 = arith.constant 0 : i32
    %c0_i32_1 = arith.constant 0 : i32
    return %c0_i32, %c0_i32_0 : i32, i32
  }
  func.func @transform_5(%arg0: i32) -> (i32, i32) {
    %c0_i32 = arith.constant 0 : i32
    %c0_i32_0 = arith.constant 0 : i32
    %c0_i32_1 = arith.constant 0 : i32
    return %c0_i32, %c0_i32_0 : i32, i32
  }
  func.func @transform_6(%arg0: i32) -> (i32, i32) {
    %c0_i32 = arith.constant 0 : i32
    %c0_i32_0 = arith.constant 0 : i32
    %c0_i32_1 = arith.constant 0 : i32
    return %c0_i32, %c0_i32_0 : i32, i32
  }
  func.func @transform_7(%arg0: i32) -> (i32, i32) {
    %c0_i32 = arith.constant 0 : i32
    %c0_i32_0 = arith.constant 0 : i32
    %c0_i32_1 = arith.constant 0 : i32
    return %c0_i32, %c0_i32_0 : i32, i32
  }
  func.func @transform_8(%arg0: i32) -> (i32, i32) {
    %c0_i32 = arith.constant 0 : i32
    %c0_i32_0 = arith.constant 0 : i32
    %c0_i32_1 = arith.constant 0 : i32
    return %c0_i32, %c0_i32_0 : i32, i32
  }
  func.func @transform_9(%arg0: i32) -> (i32, i32) {
    %c0_i32 = arith.constant 0 : i32
    %c0_i32_0 = arith.constant 0 : i32
    return %arg0, %c0_i32 : i32, i32
  }
}

</mosaic_0001>

<llo_original>
// kernel: discriminator_forward.1
$region0: #{discriminator_forward.1}
  #allocation0 [shape = 'u32[]', space=smem, size = 0x4, offset = 0x4, fixed_abs, tag = 'smem constant byte address 0x4 - core index']
  #allocation1 [shape = 'u32[72,128]{1,0:T(1,128)}', space=vmem, size = 0x9000, scoped, tag = 'internal scratch']
  #allocation2 [shape = 'f32[1,1]{1,0:T(1,128)S(1)}', space=vmem, size = 0x200, scoped, tag = 'scoped memory for discriminator_forward.1']
  %s0 = inlined_call_operand.vmem [shape: bf16[8,896], index: 0, kind: input, shape index: {}]
  %s1 = inlined_call_operand.hbm [shape: bf16[896,1024], index: 1, kind: input, shape index: {}]
  %s2 = inlined_call_operand.hbm [shape: f32[1,1024], index: 2, kind: input, shape index: {}]
  %s3 = inlined_call_operand.hbm [shape: bf16[1024,512], index: 3, kind: input, shape index: {}]
  %s4 = inlined_call_operand.hbm [shape: f32[1,512], index: 4, kind: input, shape index: {}]
  %s5 = inlined_call_operand.hbm [shape: bf16[512,256], index: 5, kind: input, shape index: {}]
  %s6 = inlined_call_operand.hbm [shape: f32[1,256], index: 6, kind: input, shape index: {}]
  %s7 = inlined_call_operand.hbm [shape: bf16[1,256], index: 7, kind: input, shape index: {}]
  %s8 = inlined_call_operand.<no memory space> [shape: f32[1,1], index: 8, kind: input, shape index: {}]
  %s9 = inlined_call_operand.vmem [shape: f32[8,1], index: 9, kind: output, shape index: {}]
  %s10 = sld [smem:[#allocation0]]
  $region74: #{discriminator_forward.1} parent=0
    _
  %s12 = ssub.s32 1, %s10
  %s13 = scalar_select 0, %s12, %s10
  %v14 = vstv %s8
  %15 = vst [vmem:[#allocation2] sm:$0x1] %v14
  $region1: #{discriminator_forward.1} parent=0
    #allocation3 [shape = 'u8[1835008]{0}', space=vmem, size = 0x1c0000, scoped, tag = 'input window, operand 1, single buffered']
    #allocation4 [shape = 's32[1]{0}', space=sflag, size = 0x4, scoped, tag = 'scoped memory for discriminator_forward.1']
    #allocation5 [shape = 'u8[4096]{0}', space=vmem, size = 0x1000, scoped, tag = 'input window, operand 2, single buffered']
    #allocation6 [shape = 's32[1]{0}', space=sflag, size = 0x4, scoped, tag = 'scoped memory for discriminator_forward.1']
    #allocation7 [shape = 'u8[1048576]{0}', space=vmem, size = 0x100000, scoped, tag = 'input window, operand 3, single buffered']
    #allocation8 [shape = 'u8[2048]{0}', space=vmem, size = 0x800, scoped, tag = 'input window, operand 4, single buffered']
    #allocation9 [shape = 's32[1]{0}', space=sflag, size = 0x4, scoped, tag = 'scoped memory for discriminator_forward.1']
    #allocation10 [shape = 'u8[262144]{0}', space=vmem, size = 0x40000, scoped, tag = 'input window, operand 5, single buffered']
    #allocation11 [shape = 'u8[1024]{0}', space=vmem, size = 0x400, scoped, tag = 'input window, operand 6, single buffered']
    #allocation12 [shape = 's32[1]{0}', space=sflag, size = 0x4, scoped, tag = 'scoped memory for discriminator_forward.1']
    #allocation13 [shape = 'u8[1024]{0}', space=vmem, size = 0x400, scoped, tag = 'input window, operand 7, single buffered']
    %16 = vsyncpa [#allocation4], 0
    %17 = vsyncpa [#allocation6], 0
    %18 = vsyncpa [#allocation9], 0
    %19 = vsyncpa [#allocation12], 0
    // Predicated region
    $region2: #{discriminator_forward.1} parent=1 // pred_check
      _
    $region3: #{discriminator_forward.1} parent=1 // pred_check_branch
      %21 = sbr.rel (0) target = $region5
    $region4: #{discriminator_forward.1} parent=1 // pred_region
      _
    $region5: #{discriminator_forward.1} parent=1 // pred_fallthru
      _
    // Predicated region
    $region6: #{discriminator_forward.1} parent=1 // pred_check
      _
    $region7: #{discriminator_forward.1} parent=1 // pred_check_branch
      %23 = sbr.rel (0) target = $region9
    $region8: #{discriminator_forward.1} parent=1 // pred_region
      %25 = vsyncadd [#allocation4], 0
      %s26 = sshll.u32 %s1, 4
      %s27 = int_to_ptr.hbm [resolvable:$true] %s26
      %s28 = sshll.u32 [#allocation3], 4
      %s29 = int_to_ptr.vmem [resolvable:$true] %s28
      %34 = dma.hbm_to_vmem [thread:$0]  %s27, 57344, %s29, [#allocation4], 512, 512, 32
    $region9: #{discriminator_forward.1} parent=1 // pred_fallthru
      _
    // Predicated region
    $region10: #{discriminator_forward.1} parent=1 // pred_check
      _
    $region11: #{discriminator_forward.1} parent=1 // pred_check_branch
      %36 = sbr.rel (0) target = $region13
    $region12: #{discriminator_forward.1} parent=1 // pred_region
      %38 = vsyncadd [#allocation6], 0
      %s40 = sshll.u32 %s2, 4
      %s41 = int_to_ptr.hbm [resolvable:$true] %s40
      %s42 = sshll.u32 [#allocation5], 4
      %s43 = int_to_ptr.vmem [resolvable:$true] %s42
      %45 = dma.hbm_to_vmem [thread:$0]  %s41, 128, %s43, [#allocation6]
    $region13: #{discriminator_forward.1} parent=1 // pred_fallthru
      _
    // Predicated region
    $region14: #{discriminator_forward.1} parent=1 // pred_check
      _
    $region15: #{discriminator_forward.1} parent=1 // pred_check_branch
      %47 = sbr.rel (0) target = $region17
    $region16: #{discriminator_forward.1} parent=1 // pred_region
      %49 = vsyncadd [#allocation6], 0
      %s50 = sshll.u32 %s3, 4
      %s51 = int_to_ptr.hbm [resolvable:$true] %s50
      %s52 = sshll.u32 [#allocation7], 4
      %s53 = int_to_ptr.vmem [resolvable:$true] %s52
      %58 = dma.hbm_to_vmem [thread:$0]  %s51, 32768, %s53, [#allocation6], 256, 256, 16
    $region17: #{discriminator_forward.1} parent=1 // pred_fallthru
      _
    // Predicated region
    $region18: #{discriminator_forward.1} parent=1 // pred_check
      _
    $region19: #{discriminator_forward.1} parent=1 // pred_check_branch
      %60 = sbr.rel (0) target = $region21
    $region20: #{discriminator_forward.1} parent=1 // pred_region
      %62 = vsyncadd [#allocation9], 0
      %s64 = sshll.u32 %s4, 4
      %s65 = int_to_ptr.hbm [resolvable:$true] %s64
      %s66 = sshll.u32 [#allocation8], 4
      %s67 = int_to_ptr.vmem [resolvable:$true] %s66
      %69 = dma.hbm_to_vmem [thread:$0]  %s65, 64, %s67, [#allocation9]
    $region21: #{discriminator_forward.1} parent=1 // pred_fallthru
      _
    // Predicated region
    $region22: #{discriminator_forward.1} parent=1 // pred_check
      _
    $region23: #{discriminator_forward.1} parent=1 // pred_check_branch
      %71 = sbr.rel (0) target = $region25
    $region24: #{discriminator_forward.1} parent=1 // pred_region
      %73 = vsyncadd [#allocation9], 0
      %s74 = sshll.u32 %s5, 4
      %s75 = int_to_ptr.hbm [resolvable:$true] %s74
      %s76 = sshll.u32 [#allocation10], 4
      %s77 = int_to_ptr.vmem [resolvable:$true] %s76
      %82 = dma.hbm_to_vmem [thread:$0]  %s75, 8192, %s77, [#allocation9], 128, 128, 8
    $region25: #{discriminator_forward.1} parent=1 // pred_fallthru
      _
    // Predicated region
    $region26: #{discriminator_forward.1} parent=1 // pred_check
      _
    $region27: #{discriminator_forward.1} parent=1 // pred_check_branch
      %84 = sbr.rel (0) target = $region29
    $region28: #{discriminator_forward.1} parent=1 // pred_region
      %86 = vsyncadd [#allocation12], 0
      %s88 = sshll.u32 %s6, 4
      %s89 = int_to_ptr.hbm [resolvable:$true] %s88
      %s90 = sshll.u32 [#allocation11], 4
      %s91 = int_to_ptr.vmem [resolvable:$true] %s90
      %93 = dma.hbm_to_vmem [thread:$0]  %s89, 32, %s91, [#allocation12]
    $region29: #{discriminator_forward.1} parent=1 // pred_fallthru
      _
    // Predicated region
    $region30: #{discriminator_forward.1} parent=1 // pred_check
      _
    $region31: #{discriminator_forward.1} parent=1 // pred_check_branch
      %95 = sbr.rel (0) target = $region33
    $region32: #{discriminator_forward.1} parent=1 // pred_region
      %97 = vsyncadd [#allocation12], 0
      %s99 = sshll.u32 %s7, 4
      %s100 = int_to_ptr.hbm [resolvable:$true] %s99
      %s101 = sshll.u32 [#allocation13], 4
      %s102 = int_to_ptr.vmem [resolvable:$true] %s101
      %104 = dma.hbm_to_vmem [thread:$0]  %s100, 32, %s102, [#allocation12]
    $region33: #{discriminator_forward.1} parent=1 // pred_fallthru
      _
    // Predicated region
    $region34: #{discriminator_forward.1} parent=1 // pred_check
      _
    $region35: #{discriminator_forward.1} parent=1 // pred_check_branch
      %106 = sbr.rel (0) target = $region37
    $region36: #{discriminator_forward.1} parent=1 // pred_region
      _
    $region37: #{discriminator_forward.1} parent=1 // pred_fallthru
      _
    // Predicated region
    $region38: #{discriminator_forward.1} parent=1 // pred_check
      _
    $region39: #{discriminator_forward.1} parent=1 // pred_check_branch
      %108 = sbr.rel (0) target = $region41
    $region40: #{discriminator_forward.1} parent=1 // pred_region
      %110 = dma.done [#allocation4], 57344
    $region41: #{discriminator_forward.1} parent=1 // pred_fallthru
      _
    // Predicated region
    $region42: #{discriminator_forward.1} parent=1 // pred_check
      _
    $region43: #{discriminator_forward.1} parent=1 // pred_check_branch
      %112 = sbr.rel (0) target = $region45
    $region44: #{discriminator_forward.1} parent=1 // pred_region
      %114 = dma.done [#allocation6], 128
    $region45: #{discriminator_forward.1} parent=1 // pred_fallthru
      _
    // Predicated region
    $region46: #{discriminator_forward.1} parent=1 // pred_check
      _
    $region47: #{discriminator_forward.1} parent=1 // pred_check_branch
      %116 = sbr.rel (0) target = $region49
    $region48: #{discriminator_forward.1} parent=1 // pred_region
      %118 = dma.done [#allocation6], 32768
    $region49: #{discriminator_forward.1} parent=1 // pred_fallthru
      _
    // Predicated region
    $region50: #{discriminator_forward.1} parent=1 // pred_check
      _
    $region51: #{discriminator_forward.1} parent=1 // pred_check_branch
      %120 = sbr.rel (0) target = $region53
    $region52: #{discriminator_forward.1} parent=1 // pred_region
      %122 = dma.done [#allocation9], 64
    $region53: #{discriminator_forward.1} parent=1 // pred_fallthru
      _
    // Predicated region
    $region54: #{discriminator_forward.1} parent=1 // pred_check
      _
    $region55: #{discriminator_forward.1} parent=1 // pred_check_branch
      %124 = sbr.rel (0) target = $region57
    $region56: #{discriminator_forward.1} parent=1 // pred_region
      %126 = dma.done [#allocation9], 8192
    $region57: #{discriminator_forward.1} parent=1 // pred_fallthru
      _
    // Predicated region
    $region58: #{discriminator_forward.1} parent=1 // pred_check
      _
    $region59: #{discriminator_forward.1} parent=1 // pred_check_branch
      %128 = sbr.rel (0) target = $region61
    $region60: #{discriminator_forward.1} parent=1 // pred_region
      %130 = dma.done [#allocation12], 32
    $region61: #{discriminator_forward.1} parent=1 // pred_fallthru
      _
    // Predicated region
    $region62: #{discriminator_forward.1} parent=1 // pred_check
      _
    $region63: #{discriminator_forward.1} parent=1 // pred_check_branch
      %132 = sbr.rel (0) target = $region65
    $region64: #{discriminator_forward.1} parent=1 // pred_region
      %134 = dma.done [#allocation12], 32
    $region65: #{discriminator_forward.1} parent=1 // pred_fallthru
      _
    %v135 = vld [vmem:[%s0] sm:$0xff]
    %v136 = vld [vmem:[%s0 + $0x8] sm:$0xff]
    %v137 = vld [vmem:[%s0 + $0x10] sm:$0xff]
    %v138 = vld [vmem:[%s0 + $0x18] sm:$0xf]
    %v139 = vld [vmem:[#allocation3] sm:$0xff]
    %v140 = vld [vmem:[#allocation3 + $0x8] sm:$0xff]
    %v141 = vld [vmem:[#allocation3 + $0x10] sm:$0xff]
    %v142 = vld [vmem:[#allocation3 + $0x18] sm:$0xff]
    %v143 = vld [vmem:[#allocation3 + $0x20] sm:$0xff]
    %v144 = vld [vmem:[#allocation3 + $0x28] sm:$0xff]
    %v145 = vld [vmem:[#allocation3 + $0x30] sm:$0xff]
    %v146 = vld [vmem:[#allocation3 + $0x38] sm:$0xff]
    %v147 = vld [vmem:[#allocation3 + $0x40] sm:$0xff]
    %v148 = vld [vmem:[#allocation3 + $0x48] sm:$0xff]
    %v149 = vld [vmem:[#allocation3 + $0x50] sm:$0xff]
    %v150 = vld [vmem:[#allocation3 + $0x58] sm:$0xff]
    %v151 = vld [vmem:[#allocation3 + $0x60] sm:$0xff]
    %v152 = vld [vmem:[#allocation3 + $0x68] sm:$0xff]
    %v153 = vld [vmem:[#allocation3 + $0x70] sm:$0xff]
    %v154 = vld [vmem:[#allocation3 + $0x78] sm:$0xff]
    %v155 = vld [vmem:[#allocation3 + $0x80] sm:$0xff]
    %v156 = vld [vmem:[#allocation3 + $0x88] sm:$0xff]
    %v157 = vld [vmem:[#allocation3 + $0x90] sm:$0xff]
    %v158 = vld [vmem:[#allocation3 + $0x98] sm:$0xff]
    %v159 = vld [vmem:[#allocation3 + $0xa0] sm:$0xff]
    %v160 = vld [vmem:[#allocation3 + $0xa8] sm:$0xff]
    %v161 = vld [vmem:[#allocation3 + $0xb0] sm:$0xff]
    %v162 = vld [vmem:[#allocation3 + $0xb8] sm:$0xff]
    %v163 = vld [vmem:[#allocation3 + $0xc0] sm:$0xff]
    %v164 = vld [vmem:[#allocation3 + $0xc8] sm:$0xff]
    %v165 = vld [vmem:[#allocation3 + $0xd0] sm:$0xff]
    %v166 = vld [vmem:[#allocation3 + $0xd8] sm:$0xff]
    %v167 = vld [vmem:[#allocation3 + $0xe0] sm:$0xff]
    %v168 = vld [vmem:[#allocation3 + $0xe8] sm:$0xff]
    %v169 = vld [vmem:[#allocation3 + $0xf0] sm:$0xff]
    %v170 = vld [vmem:[#allocation3 + $0xf8] sm:$0xff]
    %v171 = vld [vmem:[#allocation3 + $0x100] sm:$0xff]
    %v172 = vld [vmem:[#allocation3 + $0x108] sm:$0xff]
    %v173 = vld [vmem:[#allocation3 + $0x110] sm:$0xff]
    %v174 = vld [vmem:[#allocation3 + $0x118] sm:$0xff]
    %v175 = vld [vmem:[#allocation3 + $0x120] sm:$0xff]
    %v176 = vld [vmem:[#allocation3 + $0x128] sm:$0xff]
    %v177 = vld [vmem:[#allocation3 + $0x130] sm:$0xff]
    %v178 = vld [vmem:[#allocation3 + $0x138] sm:$0xff]
    %v179 = vld [vmem:[#allocation3 + $0x140] sm:$0xff]
    %v180 = vld [vmem:[#allocation3 + $0x148] sm:$0xff]
    %v181 = vld [vmem:[#allocation3 + $0x150] sm:$0xff]
    %v182 = vld [vmem:[#allocation3 + $0x158] sm:$0xff]
    %v183 = vld [vmem:[#allocation3 + $0x160] sm:$0xff]
    %v184 = vld [vmem:[#allocation3 + $0x168] sm:$0xff]
    %v185 = vld [vmem:[#allocation3 + $0x170] sm:$0xff]
    %v186 = vld [vmem:[#allocation3 + $0x178] sm:$0xff]
    %v187 = vld [vmem:[#allocation3 + $0x180] sm:$0xff]
    %v188 = vld [vmem:[#allocation3 + $0x188] sm:$0xff]
    %v189 = vld [vmem:[#allocation3 + $0x190] sm:$0xff]
    %v190 = vld [vmem:[#allocation3 + $0x198] sm:$0xff]
    %v191 = vld [vmem:[#allocation3 + $0x1a0] sm:$0xff]
    %v192 = vld [vmem:[#allocation3 + $0x1a8] sm:$0xff]
    %v193 = vld [vmem:[#allocation3 + $0x1b0] sm:$0xff]
    %v194 = vld [vmem:[#allocation3 + $0x1b8] sm:$0xff]
    %v195 = vld [vmem:[#allocation3 + $0x1c0] sm:$0xff]
    %v196 = vld [vmem:[#allocation3 + $0x1c8] sm:$0xff]
    %v197 = vld [vmem:[#allocation3 + $0x1d0] sm:$0xff]
    %v198 = vld [vmem:[#allocation3 + $0x1d8] sm:$0xff]
    %v199 = vld [vmem:[#allocation3 + $0x1e0] sm:$0xff]
    %v200 = vld [vmem:[#allocation3 + $0x1e8] sm:$0xff]
    %v201 = vld [vmem:[#allocation3 + $0x1f0] sm:$0xff]
    %v202 = vld [vmem:[#allocation3 + $0x1f8] sm:$0xff]
    %v203 = vld [vmem:[#allocation3 + $0x200] sm:$0xff]
    %v204 = vld [vmem:[#allocation3 + $0x208] sm:$0xff]
    %v205 = vld [vmem:[#allocation3 + $0x210] sm:$0xff]
    %v206 = vld [vmem:[#allocation3 + $0x218] sm:$0xff]
    %v207 = vld [vmem:[#allocation3 + $0x220] sm:$0xff]
    %v208 = vld [vmem:[#allocation3 + $0x228] sm:$0xff]
    %v209 = vld [vmem:[#allocation3 + $0x230] sm:$0xff]
    %v210 = vld [vmem:[#allocation3 + $0x238] sm:$0xff]
    %v211 = vld [vmem:[#allocation3 + $0x240] sm:$0xff]
    %v212 = vld [vmem:[#allocation3 + $0x248] sm:$0xff]
    %v213 = vld [vmem:[#allocation3 + $0x250] sm:$0xff]
    %v214 = vld [vmem:[#allocation3 + $0x258] sm:$0xff]
    %v215 = vld [vmem:[#allocation3 + $0x260] sm:$0xff]
    %v216 = vld [vmem:[#allocation3 + $0x268] sm:$0xff]
    %v217 = vld [vmem:[#allocation3 + $0x270] sm:$0xff]
    %v218 = vld [vmem:[#allocation3 + $0x278] sm:$0xff]
    %v219 = vld [vmem:[#allocation3 + $0x280] sm:$0xff]
    %v220 = vld [vmem:[#allocation3 + $0x288] sm:$0xff]
    %v221 = vld [vmem:[#allocation3 + $0x290] sm:$0xff]
    %v222 = vld [vmem:[#allocation3 + $0x298] sm:$0xff]
    %v223 = vld [vmem:[#allocation3 + $0x2a0] sm:$0xff]
    %v224 = vld [vmem:[#allocation3 + $0x2a8] sm:$0xff]
    %v225 = vld [vmem:[#allocation3 + $0x2b0] sm:$0xff]
    %v226 = vld [vmem:[#allocation3 + $0x2b8] sm:$0xff]
    %v227 = vld [vmem:[#allocation3 + $0x2c0] sm:$0xff]
    %v228 = vld [vmem:[#allocation3 + $0x2c8] sm:$0xff]
    %v229 = vld [vmem:[#allocation3 + $0x2d0] sm:$0xff]
    %v230 = vld [vmem:[#allocation3 + $0x2d8] sm:$0xff]
    %v231 = vld [vmem:[#allocation3 + $0x2e0] sm:$0xff]
    %v232 = vld [vmem:[#allocation3 + $0x2e8] sm:$0xff]
    %v233 = vld [vmem:[#allocation3 + $0x2f0] sm:$0xff]
    %v234 = vld [vmem:[#allocation3 + $0x2f8] sm:$0xff]
    %v235 = vld [vmem:[#allocation3 + $0x300] sm:$0xff]
    %v236 = vld [vmem:[#allocation3 + $0x308] sm:$0xff]
    %v237 = vld [vmem:[#allocation3 + $0x310] sm:$0xff]
    %v238 = vld [vmem:[#allocation3 + $0x318] sm:$0xff]
    %v239 = vld [vmem:[#allocation3 + $0x320] sm:$0xff]
    %v240 = vld [vmem:[#allocation3 + $0x328] sm:$0xff]
    %v241 = vld [vmem:[#allocation3 + $0x330] sm:$0xff]
    %v242 = vld [vmem:[#allocation3 + $0x338] sm:$0xff]
    %v243 = vld [vmem:[#allocation3 + $0x340] sm:$0xff]
    %v244 = vld [vmem:[#allocation3 + $0x348] sm:$0xff]
    %v245 = vld [vmem:[#allocation3 + $0x350] sm:$0xff]
    %v246 = vld [vmem:[#allocation3 + $0x358] sm:$0xff]
    %v247 = vld [vmem:[#allocation3 + $0x360] sm:$0xff]
    %v248 = vld [vmem:[#allocation3 + $0x368] sm:$0xff]
    %v249 = vld [vmem:[#allocation3 + $0x370] sm:$0xff]
    %v250 = vld [vmem:[#allocation3 + $0x378] sm:$0xff]
    %v251 = vld [vmem:[#allocation3 + $0x380] sm:$0xff]
    %v252 = vld [vmem:[#allocation3 + $0x388] sm:$0xff]
    %v253 = vld [vmem:[#allocation3 + $0x390] sm:$0xff]
    %v254 = vld [vmem:[#allocation3 + $0x398] sm:$0xff]
    %v255 = vld [vmem:[#allocation3 + $0x3a0] sm:$0xff]
    %v256 = vld [vmem:[#allocation3 + $0x3a8] sm:$0xff]
    %v257 = vld [vmem:[#allocation3 + $0x3b0] sm:$0xff]
    %v258 = vld [vmem:[#allocation3 + $0x3b8] sm:$0xff]
    %v259 = vld [vmem:[#allocation3 + $0x3c0] sm:$0xff]
    %v260 = vld [vmem:[#allocation3 + $0x3c8] sm:$0xff]
    %v261 = vld [vmem:[#allocation3 + $0x3d0] sm:$0xff]
    %v262 = vld [vmem:[#allocation3 + $0x3d8] sm:$0xff]
    %v263 = vld [vmem:[#allocation3 + $0x3e0] sm:$0xff]
    %v264 = vld [vmem:[#allocation3 + $0x3e8] sm:$0xff]
    %v265 = vld [vmem:[#allocation3 + $0x3f0] sm:$0xff]
    %v266 = vld [vmem:[#allocation3 + $0x3f8] sm:$0xff]
    %v267 = vld [vmem:[#allocation3 + $0x400] sm:$0xff]
    %v268 = vld [vmem:[#allocation3 + $0x408] sm:$0xff]
    %v269 = vld [vmem:[#allocation3 + $0x410] sm:$0xff]
    %v270 = vld [vmem:[#allocation3 + $0x418] sm:$0xff]
    %v271 = vld [vmem:[#allocation3 + $0x420] sm:$0xff]
    %v272 = vld [vmem:[#allocation3 + $0x428] sm:$0xff]
    %v273 = vld [vmem:[#allocation3 + $0x430] sm:$0xff]
    %v274 = vld [vmem:[#allocation3 + $0x438] sm:$0xff]
    %v275 = vld [vmem:[#allocation3 + $0x440] sm:$0xff]
    %v276 = vld [vmem:[#allocation3 + $0x448] sm:$0xff]
    %v277 = vld [vmem:[#allocation3 + $0x450] sm:$0xff]
    %v278 = vld [vmem:[#allocation3 + $0x458] sm:$0xff]
    %v279 = vld [vmem:[#allocation3 + $0x460] sm:$0xff]
    %v280 = vld [vmem:[#allocation3 + $0x468] sm:$0xff]
    %v281 = vld [vmem:[#allocation3 + $0x470] sm:$0xff]
    %v282 = vld [vmem:[#allocation3 + $0x478] sm:$0xff]
    %v283 = vld [vmem:[#allocation3 + $0x480] sm:$0xff]
    %v284 = vld [vmem:[#allocation3 + $0x488] sm:$0xff]
    %v285 = vld [vmem:[#allocation3 + $0x490] sm:$0xff]
    %v286 = vld [vmem:[#allocation3 + $0x498] sm:$0xff]
    %v287 = vld [vmem:[#allocation3 + $0x4a0] sm:$0xff]
    %v288 = vld [vmem:[#allocation3 + $0x4a8] sm:$0xff]
    %v289 = vld [vmem:[#allocation3 + $0x4b0] sm:$0xff]
    %v290 = vld [vmem:[#allocation3 + $0x4b8] sm:$0xff]
    %v291 = vld [vmem:[#allocation3 + $0x4c0] sm:$0xff]
    %v292 = vld [vmem:[#allocation3 + $0x4c8] sm:$0xff]
    %v293 = vld [vmem:[#allocation3 + $0x4d0] sm:$0xff]
    %v294 = vld [vmem:[#allocation3 + $0x4d8] sm:$0xff]
    %v295 = vld [vmem:[#allocation3 + $0x4e0] sm:$0xff]
    %v296 = vld [vmem:[#allocation3 + $0x4e8] sm:$0xff]
    %v297 = vld [vmem:[#allocation3 + $0x4f0] sm:$0xff]
    %v298 = vld [vmem:[#allocation3 + $0x4f8] sm:$0xff]
    %v299 = vld [vmem:[#allocation3 + $0x500] sm:$0xff]
    %v300 = vld [vmem:[#allocation3 + $0x508] sm:$0xff]
    %v301 = vld [vmem:[#allocation3 + $0x510] sm:$0xff]
    %v302 = vld [vmem:[#allocation3 + $0x518] sm:$0xff]
    %v303 = vld [vmem:[#allocation3 + $0x520] sm:$0xff]
    %v304 = vld [vmem:[#allocation3 + $0x528] sm:$0xff]
    %v305 = vld [vmem:[#allocation3 + $0x530] sm:$0xff]
    %v306 = vld [vmem:[#allocation3 + $0x538] sm:$0xff]
    %v307 = vld [vmem:[#allocation3 + $0x540] sm:$0xff]
    %v308 = vld [vmem:[#allocation3 + $0x548] sm:$0xff]
    %v309 = vld [vmem:[#allocation3 + $0x550] sm:$0xff]
    %v310 = vld [vmem:[#allocation3 + $0x558] sm:$0xff]
    %v311 = vld [vmem:[#allocation3 + $0x560] sm:$0xff]
    %v312 = vld [vmem:[#allocation3 + $0x568] sm:$0xff]
    %v313 = vld [vmem:[#allocation3 + $0x570] sm:$0xff]
    %v314 = vld [vmem:[#allocation3 + $0x578] sm:$0xff]
    %v315 = vld [vmem:[#allocation3 + $0x580] sm:$0xff]
    %v316 = vld [vmem:[#allocation3 + $0x588] sm:$0xff]
    %v317 = vld [vmem:[#allocation3 + $0x590] sm:$0xff]
    %v318 = vld [vmem:[#allocation3 + $0x598] sm:$0xff]
    %v319 = vld [vmem:[#allocation3 + $0x5a0] sm:$0xff]
    %v320 = vld [vmem:[#allocation3 + $0x5a8] sm:$0xff]
    %v321 = vld [vmem:[#allocation3 + $0x5b0] sm:$0xff]
    %v322 = vld [vmem:[#allocation3 + $0x5b8] sm:$0xff]
    %v323 = vld [vmem:[#allocation3 + $0x5c0] sm:$0xff]
    %v324 = vld [vmem:[#allocation3 + $0x5c8] sm:$0xff]
    %v325 = vld [vmem:[#allocation3 + $0x5d0] sm:$0xff]
    %v326 = vld [vmem:[#allocation3 + $0x5d8] sm:$0xff]
    %v327 = vld [vmem:[#allocation3 + $0x5e0] sm:$0xff]
    %v328 = vld [vmem:[#allocation3 + $0x5e8] sm:$0xff]
    %v329 = vld [vmem:[#allocation3 + $0x5f0] sm:$0xff]
    %v330 = vld [vmem:[#allocation3 + $0x5f8] sm:$0xff]
    %v331 = vld [vmem:[#allocation3 + $0x600] sm:$0xff]
    %v332 = vld [vmem:[#allocation3 + $0x608] sm:$0xff]
    %v333 = vld [vmem:[#allocation3 + $0x610] sm:$0xff]
    %v334 = vld [vmem:[#allocation3 + $0x618] sm:$0xff]
    %v335 = vld [vmem:[#allocation3 + $0x620] sm:$0xff]
    %v336 = vld [vmem:[#allocation3 + $0x628] sm:$0xff]
    %v337 = vld [vmem:[#allocation3 + $0x630] sm:$0xff]
    %v338 = vld [vmem:[#allocation3 + $0x638] sm:$0xff]
    %v339 = vld [vmem:[#allocation3 + $0x640] sm:$0xff]
    %v340 = vld [vmem:[#allocation3 + $0x648] sm:$0xff]
    %v341 = vld [vmem:[#allocation3 + $0x650] sm:$0xff]
    %v342 = vld [vmem:[#allocation3 + $0x658] sm:$0xff]
    %v343 = vld [vmem:[#allocation3 + $0x660] sm:$0xff]
    %v344 = vld [vmem:[#allocation3 + $0x668] sm:$0xff]
    %v345 = vld [vmem:[#allocation3 + $0x670] sm:$0xff]
    %v346 = vld [vmem:[#allocation3 + $0x678] sm:$0xff]
    %v347 = vld [vmem:[#allocation3 + $0x680] sm:$0xff]
    %v348 = vld [vmem:[#allocation3 + $0x688] sm:$0xff]
    %v349 = vld [vmem:[#allocation3 + $0x690] sm:$0xff]
    %v350 = vld [vmem:[#allocation3 + $0x698] sm:$0xff]
    %v351 = vld [vmem:[#allocation3 + $0x6a0] sm:$0xff]
    %v352 = vld [vmem:[#allocation3 + $0x6a8] sm:$0xff]
    %v353 = vld [vmem:[#allocation3 + $0x6b0] sm:$0xff]
    %v354 = vld [vmem:[#allocation3 + $0x6b8] sm:$0xff]
    %v355 = vld [vmem:[#allocation3 + $0x6c0] sm:$0xff]
    %v356 = vld [vmem:[#allocation3 + $0x6c8] sm:$0xff]
    %v357 = vld [vmem:[#allocation3 + $0x6d0] sm:$0xff]
    %v358 = vld [vmem:[#allocation3 + $0x6d8] sm:$0xff]
    %v359 = vld [vmem:[#allocation3 + $0x6e0] sm:$0xff]
    %v360 = vld [vmem:[#allocation3 + $0x6e8] sm:$0xff]
    %v361 = vld [vmem:[#allocation3 + $0x6f0] sm:$0xff]
    %v362 = vld [vmem:[#allocation3 + $0x6f8] sm:$0xff]
    %v363 = vld [vmem:[#allocation3 + $0x700] sm:$0xff]
    %v364 = vld [vmem:[#allocation3 + $0x708] sm:$0xff]
    %v365 = vld [vmem:[#allocation3 + $0x710] sm:$0xff]
    %v366 = vld [vmem:[#allocation3 + $0x718] sm:$0xff]
    %v367 = vld [vmem:[#allocation3 + $0x720] sm:$0xff]
    %v368 = vld [vmem:[#allocation3 + $0x728] sm:$0xff]
    %v369 = vld [vmem:[#allocation3 + $0x730] sm:$0xff]
    %v370 = vld [vmem:[#allocation3 + $0x738] sm:$0xff]
    %v371 = vld [vmem:[#allocation3 + $0x740] sm:$0xff]
    %v372 = vld [vmem:[#allocation3 + $0x748] sm:$0xff]
    %v373 = vld [vmem:[#allocation3 + $0x750] sm:$0xff]
    %v374 = vld [vmem:[#allocation3 + $0x758] sm:$0xff]
    %v375 = vld [vmem:[#allocation3 + $0x760] sm:$0xff]
    %v376 = vld [vmem:[#allocation3 + $0x768] sm:$0xff]
    %v377 = vld [vmem:[#allocation3 + $0x770] sm:$0xff]
    %v378 = vld [vmem:[#allocation3 + $0x778] sm:$0xff]
    %v379 = vld [vmem:[#allocation3 + $0x780] sm:$0xff]
    %v380 = vld [vmem:[#allocation3 + $0x788] sm:$0xff]
    %v381 = vld [vmem:[#allocation3 + $0x790] sm:$0xff]
    %v382 = vld [vmem:[#allocation3 + $0x798] sm:$0xff]
    %v383 = vld [vmem:[#allocation3 + $0x7a0] sm:$0xff]
    %v384 = vld [vmem:[#allocation3 + $0x7a8] sm:$0xff]
    %v385 = vld [vmem:[#allocation3 + $0x7b0] sm:$0xff]
    %v386 = vld [vmem:[#allocation3 + $0x7b8] sm:$0xff]
    %v387 = vld [vmem:[#allocation3 + $0x7c0] sm:$0xff]
    %v388 = vld [vmem:[#allocation3 + $0x7c8] sm:$0xff]
    %v389 = vld [vmem:[#allocation3 + $0x7d0] sm:$0xff]
    %v390 = vld [vmem:[#allocation3 + $0x7d8] sm:$0xff]
    %v391 = vld [vmem:[#allocation3 + $0x7e0] sm:$0xff]
    %v392 = vld [vmem:[#allocation3 + $0x7e8] sm:$0xff]
    %v393 = vld [vmem:[#allocation3 + $0x7f0] sm:$0xff]
    %v394 = vld [vmem:[#allocation3 + $0x7f8] sm:$0xff]
    %v395 = vld [vmem:[#allocation3 + $0x800] sm:$0xff]
    %v396 = vld [vmem:[#allocation3 + $0x808] sm:$0xff]
    %v397 = vld [vmem:[#allocation3 + $0x810] sm:$0xff]
    %v398 = vld [vmem:[#allocation3 + $0x818] sm:$0xff]
    %v399 = vld [vmem:[#allocation3 + $0x820] sm:$0xff]
    %v400 = vld [vmem:[#allocation3 + $0x828] sm:$0xff]
    %v401 = vld [vmem:[#allocation3 + $0x830] sm:$0xff]
    %v402 = vld [vmem:[#allocation3 + $0x838] sm:$0xff]
    %v403 = vld [vmem:[#allocation3 + $0x840] sm:$0xff]
    %v404 = vld [vmem:[#allocation3 + $0x848] sm:$0xff]
    %v405 = vld [vmem:[#allocation3 + $0x850] sm:$0xff]
    %v406 = vld [vmem:[#allocation3 + $0x858] sm:$0xff]
    %v407 = vld [vmem:[#allocation3 + $0x860] sm:$0xff]
    %v408 = vld [vmem:[#allocation3 + $0x868] sm:$0xff]
    %v409 = vld [vmem:[#allocation3 + $0x870] sm:$0xff]
    %v410 = vld [vmem:[#allocation3 + $0x878] sm:$0xff]
    %v411 = vld [vmem:[#allocation3 + $0x880] sm:$0xff]
    %v412 = vld [vmem:[#allocation3 + $0x888] sm:$0xff]
    %v413 = vld [vmem:[#allocation3 + $0x890] sm:$0xff]
    %v414 = vld [vmem:[#allocation3 + $0x898] sm:$0xff]
    %v415 = vld [vmem:[#allocation3 + $0x8a0] sm:$0xff]
    %v416 = vld [vmem:[#allocation3 + $0x8a8] sm:$0xff]
    %v417 = vld [vmem:[#allocation3 + $0x8b0] sm:$0xff]
    %v418 = vld [vmem:[#allocation3 + $0x8b8] sm:$0xff]
    %v419 = vld [vmem:[#allocation3 + $0x8c0] sm:$0xff]
    %v420 = vld [vmem:[#allocation3 + $0x8c8] sm:$0xff]
    %v421 = vld [vmem:[#allocation3 + $0x8d0] sm:$0xff]
    %v422 = vld [vmem:[#allocation3 + $0x8d8] sm:$0xff]
    %v423 = vld [vmem:[#allocation3 + $0x8e0] sm:$0xff]
    %v424 = vld [vmem:[#allocation3 + $0x8e8] sm:$0xff]
    %v425 = vld [vmem:[#allocation3 + $0x8f0] sm:$0xff]
    %v426 = vld [vmem:[#allocation3 + $0x8f8] sm:$0xff]
    %v427 = vld [vmem:[#allocation3 + $0x900] sm:$0xff]
    %v428 = vld [vmem:[#allocation3 + $0x908] sm:$0xff]
    %v429 = vld [vmem:[#allocation3 + $0x910] sm:$0xff]
    %v430 = vld [vmem:[#allocation3 + $0x918] sm:$0xff]
    %v431 = vld [vmem:[#allocation3 + $0x920] sm:$0xff]
    %v432 = vld [vmem:[#allocation3 + $0x928] sm:$0xff]
    %v433 = vld [vmem:[#allocation3 + $0x930] sm:$0xff]
    %v434 = vld [vmem:[#allocation3 + $0x938] sm:$0xff]
    %v435 = vld [vmem:[#allocation3 + $0x940] sm:$0xff]
    %v436 = vld [vmem:[#allocation3 + $0x948] sm:$0xff]
    %v437 = vld [vmem:[#allocation3 + $0x950] sm:$0xff]
    %v438 = vld [vmem:[#allocation3 + $0x958] sm:$0xff]
    %v439 = vld [vmem:[#allocation3 + $0x960] sm:$0xff]
    %v440 = vld [vmem:[#allocation3 + $0x968] sm:$0xff]
    %v441 = vld [vmem:[#allocation3 + $0x970] sm:$0xff]
    %v442 = vld [vmem:[#allocation3 + $0x978] sm:$0xff]
    %v443 = vld [vmem:[#allocation3 + $0x980] sm:$0xff]
    %v444 = vld [vmem:[#allocation3 + $0x988] sm:$0xff]
    %v445 = vld [vmem:[#allocation3 + $0x990] sm:$0xff]
    %v446 = vld [vmem:[#allocation3 + $0x998] sm:$0xff]
    %v447 = vld [vmem:[#allocation3 + $0x9a0] sm:$0xff]
    %v448 = vld [vmem:[#allocation3 + $0x9a8] sm:$0xff]
    %v449 = vld [vmem:[#allocation3 + $0x9b0] sm:$0xff]
    %v450 = vld [vmem:[#allocation3 + $0x9b8] sm:$0xff]
    %v451 = vld [vmem:[#allocation3 + $0x9c0] sm:$0xff]
    %v452 = vld [vmem:[#allocation3 + $0x9c8] sm:$0xff]
    %v453 = vld [vmem:[#allocation3 + $0x9d0] sm:$0xff]
    %v454 = vld [vmem:[#allocation3 + $0x9d8] sm:$0xff]
    %v455 = vld [vmem:[#allocation3 + $0x9e0] sm:$0xff]
    %v456 = vld [vmem:[#allocation3 + $0x9e8] sm:$0xff]
    %v457 = vld [vmem:[#allocation3 + $0x9f0] sm:$0xff]
    %v458 = vld [vmem:[#allocation3 + $0x9f8] sm:$0xff]
    %v459 = vld [vmem:[#allocation3 + $0xa00] sm:$0xff]
    %v460 = vld [vmem:[#allocation3 + $0xa08] sm:$0xff]
    %v461 = vld [vmem:[#allocation3 + $0xa10] sm:$0xff]
    %v462 = vld [vmem:[#allocation3 + $0xa18] sm:$0xff]
    %v463 = vld [vmem:[#allocation3 + $0xa20] sm:$0xff]
    %v464 = vld [vmem:[#allocation3 + $0xa28] sm:$0xff]
    %v465 = vld [vmem:[#allocation3 + $0xa30] sm:$0xff]
    %v466 = vld [vmem:[#allocation3 + $0xa38] sm:$0xff]
    %v467 = vld [vmem:[#allocation3 + $0xa40] sm:$0xff]
    %v468 = vld [vmem:[#allocation3 + $0xa48] sm:$0xff]
    %v469 = vld [vmem:[#allocation3 + $0xa50] sm:$0xff]
    %v470 = vld [vmem:[#allocation3 + $0xa58] sm:$0xff]
    %v471 = vld [vmem:[#allocation3 + $0xa60] sm:$0xff]
    %v472 = vld [vmem:[#allocation3 + $0xa68] sm:$0xff]
    %v473 = vld [vmem:[#allocation3 + $0xa70] sm:$0xff]
    %v474 = vld [vmem:[#allocation3 + $0xa78] sm:$0xff]
    %v475 = vld [vmem:[#allocation3 + $0xa80] sm:$0xff]
    %v476 = vld [vmem:[#allocation3 + $0xa88] sm:$0xff]
    %v477 = vld [vmem:[#allocation3 + $0xa90] sm:$0xff]
    %v478 = vld [vmem:[#allocation3 + $0xa98] sm:$0xff]
    %v479 = vld [vmem:[#allocation3 + $0xaa0] sm:$0xff]
    %v480 = vld [vmem:[#allocation3 + $0xaa8] sm:$0xff]
    %v481 = vld [vmem:[#allocation3 + $0xab0] sm:$0xff]
    %v482 = vld [vmem:[#allocation3 + $0xab8] sm:$0xff]
    %v483 = vld [vmem:[#allocation3 + $0xac0] sm:$0xff]
    %v484 = vld [vmem:[#allocation3 + $0xac8] sm:$0xff]
    %v485 = vld [vmem:[#allocation3 + $0xad0] sm:$0xff]
    %v486 = vld [vmem:[#allocation3 + $0xad8] sm:$0xff]
    %v487 = vld [vmem:[#allocation3 + $0xae0] sm:$0xff]
    %v488 = vld [vmem:[#allocation3 + $0xae8] sm:$0xff]
    %v489 = vld [vmem:[#allocation3 + $0xaf0] sm:$0xff]
    %v490 = vld [vmem:[#allocation3 + $0xaf8] sm:$0xff]
    %v491 = vld [vmem:[#allocation3 + $0xb00] sm:$0xff]
    %v492 = vld [vmem:[#allocation3 + $0xb08] sm:$0xff]
    %v493 = vld [vmem:[#allocation3 + $0xb10] sm:$0xff]
    %v494 = vld [vmem:[#allocation3 + $0xb18] sm:$0xff]
    %v495 = vld [vmem:[#allocation3 + $0xb20] sm:$0xff]
    %v496 = vld [vmem:[#allocation3 + $0xb28] sm:$0xff]
    %v497 = vld [vmem:[#allocation3 + $0xb30] sm:$0xff]
    %v498 = vld [vmem:[#allocation3 + $0xb38] sm:$0xff]
    %v499 = vld [vmem:[#allocation3 + $0xb40] sm:$0xff]
    %v500 = vld [vmem:[#allocation3 + $0xb48] sm:$0xff]
    %v501 = vld [vmem:[#allocation3 + $0xb50] sm:$0xff]
    %v502 = vld [vmem:[#allocation3 + $0xb58] sm:$0xff]
    %v503 = vld [vmem:[#allocation3 + $0xb60] sm:$0xff]
    %v504 = vld [vmem:[#allocation3 + $0xb68] sm:$0xff]
    %v505 = vld [vmem:[#allocation3 + $0xb70] sm:$0xff]
    %v506 = vld [vmem:[#allocation3 + $0xb78] sm:$0xff]
    %v507 = vld [vmem:[#allocation3 + $0xb80] sm:$0xff]
    %v508 = vld [vmem:[#allocation3 + $0xb88] sm:$0xff]
    %v509 = vld [vmem:[#allocation3 + $0xb90] sm:$0xff]
    %v510 = vld [vmem:[#allocation3 + $0xb98] sm:$0xff]
    %v511 = vld [vmem:[#allocation3 + $0xba0] sm:$0xff]
    %v512 = vld [vmem:[#allocation3 + $0xba8] sm:$0xff]
    %v513 = vld [vmem:[#allocation3 + $0xbb0] sm:$0xff]
    %v514 = vld [vmem:[#allocation3 + $0xbb8] sm:$0xff]
    %v515 = vld [vmem:[#allocation3 + $0xbc0] sm:$0xff]
    %v516 = vld [vmem:[#allocation3 + $0xbc8] sm:$0xff]
    %v517 = vld [vmem:[#allocation3 + $0xbd0] sm:$0xff]
    %v518 = vld [vmem:[#allocation3 + $0xbd8] sm:$0xff]
    %v519 = vld [vmem:[#allocation3 + $0xbe0] sm:$0xff]
    %v520 = vld [vmem:[#allocation3 + $0xbe8] sm:$0xff]
    %v521 = vld [vmem:[#allocation3 + $0xbf0] sm:$0xff]
    %v522 = vld [vmem:[#allocation3 + $0xbf8] sm:$0xff]
    %v523 = vld [vmem:[#allocation3 + $0xc00] sm:$0xff]
    %v524 = vld [vmem:[#allocation3 + $0xc08] sm:$0xff]
    %v525 = vld [vmem:[#allocation3 + $0xc10] sm:$0xff]
    %v526 = vld [vmem:[#allocation3 + $0xc18] sm:$0xff]
    %v527 = vld [vmem:[#allocation3 + $0xc20] sm:$0xff]
    %v528 = vld [vmem:[#allocation3 + $0xc28] sm:$0xff]
    %v529 = vld [vmem:[#allocation3 + $0xc30] sm:$0xff]
    %v530 = vld [vmem:[#allocation3 + $0xc38] sm:$0xff]
    %v531 = vld [vmem:[#allocation3 + $0xc40] sm:$0xff]
    %v532 = vld [vmem:[#allocation3 + $0xc48] sm:$0xff]
    %v533 = vld [vmem:[#allocation3 + $0xc50] sm:$0xff]
    %v534 = vld [vmem:[#allocation3 + $0xc58] sm:$0xff]
    %v535 = vld [vmem:[#allocation3 + $0xc60] sm:$0xff]
    %v536 = vld [vmem:[#allocation3 + $0xc68] sm:$0xff]
    %v537 = vld [vmem:[#allocation3 + $0xc70] sm:$0xff]
    %v538 = vld [vmem:[#allocation3 + $0xc78] sm:$0xff]
    %v539 = vld [vmem:[#allocation3 + $0xc80] sm:$0xff]
    %v540 = vld [vmem:[#allocation3 + $0xc88] sm:$0xff]
    %v541 = vld [vmem:[#allocation3 + $0xc90] sm:$0xff]
    %v542 = vld [vmem:[#allocation3 + $0xc98] sm:$0xff]
    %v543 = vld [vmem:[#allocation3 + $0xca0] sm:$0xff]
    %v544 = vld [vmem:[#allocation3 + $0xca8] sm:$0xff]
    %v545 = vld [vmem:[#allocation3 + $0xcb0] sm:$0xff]
    %v546 = vld [vmem:[#allocation3 + $0xcb8] sm:$0xff]
    %v547 = vld [vmem:[#allocation3 + $0xcc0] sm:$0xff]
    %v548 = vld [vmem:[#allocation3 + $0xcc8] sm:$0xff]
    %v549 = vld [vmem:[#allocation3 + $0xcd0] sm:$0xff]
    %v550 = vld [vmem:[#allocation3 + $0xcd8] sm:$0xff]
    %v551 = vld [vmem:[#allocation3 + $0xce0] sm:$0xff]
    %v552 = vld [vmem:[#allocation3 + $0xce8] sm:$0xff]
    %v553 = vld [vmem:[#allocation3 + $0xcf0] sm:$0xff]
    %v554 = vld [vmem:[#allocation3 + $0xcf8] sm:$0xff]
    %v555 = vld [vmem:[#allocation3 + $0xd00] sm:$0xff]
    %v556 = vld [vmem:[#allocation3 + $0xd08] sm:$0xff]
    %v557 = vld [vmem:[#allocation3 + $0xd10] sm:$0xff]
    %v558 = vld [vmem:[#allocation3 + $0xd18] sm:$0xff]
    %v559 = vld [vmem:[#allocation3 + $0xd20] sm:$0xff]
    %v560 = vld [vmem:[#allocation3 + $0xd28] sm:$0xff]
    %v561 = vld [vmem:[#allocation3 + $0xd30] sm:$0xff]
    %v562 = vld [vmem:[#allocation3 + $0xd38] sm:$0xff]
    %v563 = vld [vmem:[#allocation3 + $0xd40] sm:$0xff]
    %v564 = vld [vmem:[#allocation3 + $0xd48] sm:$0xff]
    %v565 = vld [vmem:[#allocation3 + $0xd50] sm:$0xff]
    %v566 = vld [vmem:[#allocation3 + $0xd58] sm:$0xff]
    %v567 = vld [vmem:[#allocation3 + $0xd60] sm:$0xff]
    %v568 = vld [vmem:[#allocation3 + $0xd68] sm:$0xff]
    %v569 = vld [vmem:[#allocation3 + $0xd70] sm:$0xff]
    %v570 = vld [vmem:[#allocation3 + $0xd78] sm:$0xff]
    %v571 = vld [vmem:[#allocation3 + $0xd80] sm:$0xff]
    %v572 = vld [vmem:[#allocation3 + $0xd88] sm:$0xff]
    %v573 = vld [vmem:[#allocation3 + $0xd90] sm:$0xff]
    %v574 = vld [vmem:[#allocation3 + $0xd98] sm:$0xff]
    %v575 = vld [vmem:[#allocation3 + $0xda0] sm:$0xff]
    %v576 = vld [vmem:[#allocation3 + $0xda8] sm:$0xff]
    %v577 = vld [vmem:[#allocation3 + $0xdb0] sm:$0xff]
    %v578 = vld [vmem:[#allocation3 + $0xdb8] sm:$0xff]
    %v579 = vld [vmem:[#allocation3 + $0xdc0] sm:$0xff]
    %v580 = vld [vmem:[#allocation3 + $0xdc8] sm:$0xff]
    %v581 = vld [vmem:[#allocation3 + $0xdd0] sm:$0xff]
    %v582 = vld [vmem:[#allocation3 + $0xdd8] sm:$0xff]
    %v583 = vld [vmem:[#allocation3 + $0xde0] sm:$0xff]
    %v584 = vld [vmem:[#allocation3 + $0xde8] sm:$0xff]
    %v585 = vld [vmem:[#allocation3 + $0xdf0] sm:$0xff]
    %v586 = vld [vmem:[#allocation3 + $0xdf8] sm:$0xff]
    %v587 = vld [vmem:[#allocation5] sm:$0xff]
    %v589 = vperm.slane %v587, 0
    %v590 = vperm.slane %v587, 1
    %v591 = vperm.slane %v587, 2
    %v592 = vperm.slane %v587, 3
    %v593 = vperm.slane %v587, 4
    %v594 = vperm.slane %v587, 5
    %v595 = vperm.slane %v587, 6
    %v596 = vperm.slane %v587, 7
    %v609 = vunpack.c.l.b16 %v135
    %v610 = vunpack.c.h.b16 %v135
    %v611 = vunpack.c.l.b16 %v136
    %v612 = vunpack.c.h.b16 %v136
    %v613 = vunpack.c.l.b16 %v137
    %v614 = vunpack.c.h.b16 %v137
    %v615 = vunpack.c.l.b16 %v138
    %v616 = vpack.c.b16 %v609, %v609
    %v617 = vpack.c.b16 %v610, %v610
    %v618 = vpack.c.b16 %v611, %v611
    %v619 = vpack.c.b16 %v612, %v612
    %v620 = vpack.c.b16 %v613, %v613
    %v621 = vpack.c.b16 %v614, %v614
    %v622 = vpack.c.b16 %v615, %v615
    %v1078 = vunpack.c.l.b16 %v139
    %v1079 = vunpack.c.h.b16 %v139
    %v1080 = vunpack.c.l.b16 %v140
    %v1081 = vunpack.c.h.b16 %v140
    %v1082 = vunpack.c.l.b16 %v141
    %v1083 = vunpack.c.h.b16 %v141
    %v1084 = vunpack.c.l.b16 %v142
    %v1085 = vunpack.c.h.b16 %v142
    %v1086 = vunpack.c.l.b16 %v143
    %v1087 = vunpack.c.h.b16 %v143
    %v1088 = vunpack.c.l.b16 %v144
    %v1089 = vunpack.c.h.b16 %v144
    %v1090 = vunpack.c.l.b16 %v145
    %v1091 = vunpack.c.h.b16 %v145
    %v1092 = vunpack.c.l.b16 %v146
    %v1093 = vunpack.c.h.b16 %v146
    %v1094 = vunpack.c.l.b16 %v147
    %v1095 = vunpack.c.h.b16 %v147
    %v1096 = vunpack.c.l.b16 %v148
    %v1097 = vunpack.c.h.b16 %v148
    %v1098 = vunpack.c.l.b16 %v149
    %v1099 = vunpack.c.h.b16 %v149
    %v1100 = vunpack.c.l.b16 %v150
    %v1101 = vunpack.c.h.b16 %v150
    %v1102 = vunpack.c.l.b16 %v151
    %v1103 = vunpack.c.h.b16 %v151
    %v1104 = vunpack.c.l.b16 %v152
    %v1105 = vunpack.c.h.b16 %v152
    %v1106 = vunpack.c.l.b16 %v153
    %v1107 = vunpack.c.h.b16 %v153
    %v1108 = vunpack.c.l.b16 %v154
    %v1109 = vunpack.c.h.b16 %v154
    %v1110 = vunpack.c.l.b16 %v155
    %v1111 = vunpack.c.h.b16 %v155
    %v1112 = vunpack.c.l.b16 %v156
    %v1113 = vunpack.c.h.b16 %v156
    %v1114 = vunpack.c.l.b16 %v157
    %v1115 = vunpack.c.h.b16 %v157
    %v1116 = vunpack.c.l.b16 %v158
    %v1117 = vunpack.c.h.b16 %v158
    %v1118 = vunpack.c.l.b16 %v159
    %v1119 = vunpack.c.h.b16 %v159
    %v1120 = vunpack.c.l.b16 %v160
    %v1121 = vunpack.c.h.b16 %v160
    %v1122 = vunpack.c.l.b16 %v161
    %v1123 = vunpack.c.h.b16 %v161
    %v1124 = vunpack.c.l.b16 %v162
    %v1125 = vunpack.c.h.b16 %v162
    %v1126 = vunpack.c.l.b16 %v163
    %v1127 = vunpack.c.h.b16 %v163
    %v1128 = vunpack.c.l.b16 %v164
    %v1129 = vunpack.c.h.b16 %v164
    %v1130 = vunpack.c.l.b16 %v165
    %v1131 = vunpack.c.h.b16 %v165
    %v1132 = vunpack.c.l.b16 %v166
    %v1133 = vunpack.c.h.b16 %v166
    %v1134 = vunpack.c.l.b16 %v167
    %v1135 = vunpack.c.h.b16 %v167
    %v1136 = vunpack.c.l.b16 %v168
    %v1137 = vunpack.c.h.b16 %v168
    %v1138 = vunpack.c.l.b16 %v169
    %v1139 = vunpack.c.h.b16 %v169
    %v1140 = vunpack.c.l.b16 %v170
    %v1141 = vunpack.c.h.b16 %v170
    %v1142 = vunpack.c.l.b16 %v171
    %v1143 = vunpack.c.h.b16 %v171
    %v1144 = vunpack.c.l.b16 %v172
    %v1145 = vunpack.c.h.b16 %v172
    %v1146 = vunpack.c.l.b16 %v173
    %v1147 = vunpack.c.h.b16 %v173
    %v1148 = vunpack.c.l.b16 %v174
    %v1149 = vunpack.c.h.b16 %v174
    %v1150 = vunpack.c.l.b16 %v175
    %v1151 = vunpack.c.h.b16 %v175
    %v1152 = vunpack.c.l.b16 %v176
    %v1153 = vunpack.c.h.b16 %v176
    %v1154 = vunpack.c.l.b16 %v177
    %v1155 = vunpack.c.h.b16 %v177
    %v1156 = vunpack.c.l.b16 %v178
    %v1157 = vunpack.c.h.b16 %v178
    %v1158 = vunpack.c.l.b16 %v179
    %v1159 = vunpack.c.h.b16 %v179
    %v1160 = vunpack.c.l.b16 %v180
    %v1161 = vunpack.c.h.b16 %v180
    %v1162 = vunpack.c.l.b16 %v181
    %v1163 = vunpack.c.h.b16 %v181
    %v1164 = vunpack.c.l.b16 %v182
    %v1165 = vunpack.c.h.b16 %v182
    %v1166 = vunpack.c.l.b16 %v183
    %v1167 = vunpack.c.h.b16 %v183
    %v1168 = vunpack.c.l.b16 %v184
    %v1169 = vunpack.c.h.b16 %v184
    %v1170 = vunpack.c.l.b16 %v185
    %v1171 = vunpack.c.h.b16 %v185
    %v1172 = vunpack.c.l.b16 %v186
    %v1173 = vunpack.c.h.b16 %v186
    %v1174 = vunpack.c.l.b16 %v187
    %v1175 = vunpack.c.h.b16 %v187
    %v1176 = vunpack.c.l.b16 %v188
    %v1177 = vunpack.c.h.b16 %v188
    %v1178 = vunpack.c.l.b16 %v189
    %v1179 = vunpack.c.h.b16 %v189
    %v1180 = vunpack.c.l.b16 %v190
    %v1181 = vunpack.c.h.b16 %v190
    %v1182 = vunpack.c.l.b16 %v191
    %v1183 = vunpack.c.h.b16 %v191
    %v1184 = vunpack.c.l.b16 %v192
    %v1185 = vunpack.c.h.b16 %v192
    %v1186 = vunpack.c.l.b16 %v193
    %v1187 = vunpack.c.h.b16 %v193
    %v1188 = vunpack.c.l.b16 %v194
    %v1189 = vunpack.c.h.b16 %v194
    %v1190 = vunpack.c.l.b16 %v195
    %v1191 = vunpack.c.h.b16 %v195
    %v1192 = vunpack.c.l.b16 %v196
    %v1193 = vunpack.c.h.b16 %v196
    %v1194 = vunpack.c.l.b16 %v197
    %v1195 = vunpack.c.h.b16 %v197
    %v1196 = vunpack.c.l.b16 %v198
    %v1197 = vunpack.c.h.b16 %v198
    %v1198 = vunpack.c.l.b16 %v199
    %v1199 = vunpack.c.h.b16 %v199
    %v1200 = vunpack.c.l.b16 %v200
    %v1201 = vunpack.c.h.b16 %v200
    %v1202 = vunpack.c.l.b16 %v201
    %v1203 = vunpack.c.h.b16 %v201
    %v1204 = vunpack.c.l.b16 %v202
    %v1205 = vunpack.c.h.b16 %v202
    %v1206 = vunpack.c.l.b16 %v203
    %v1207 = vunpack.c.h.b16 %v203
    %v1208 = vunpack.c.l.b16 %v204
    %v1209 = vunpack.c.h.b16 %v204
    %v1210 = vunpack.c.l.b16 %v205
    %v1211 = vunpack.c.h.b16 %v205
    %v1212 = vunpack.c.l.b16 %v206
    %v1213 = vunpack.c.h.b16 %v206
    %v1214 = vunpack.c.l.b16 %v207
    %v1215 = vunpack.c.h.b16 %v207
    %v1216 = vunpack.c.l.b16 %v208
    %v1217 = vunpack.c.h.b16 %v208
    %v1218 = vunpack.c.l.b16 %v209
    %v1219 = vunpack.c.h.b16 %v209
    %v1220 = vunpack.c.l.b16 %v210
    %v1221 = vunpack.c.h.b16 %v210
    %v1222 = vunpack.c.l.b16 %v211
    %v1223 = vunpack.c.h.b16 %v211
    %v1224 = vunpack.c.l.b16 %v212
    %v1225 = vunpack.c.h.b16 %v212
    %v1226 = vunpack.c.l.b16 %v213
    %v1227 = vunpack.c.h.b16 %v213
    %v1228 = vunpack.c.l.b16 %v214
    %v1229 = vunpack.c.h.b16 %v214
    %v1230 = vunpack.c.l.b16 %v215
    %v1231 = vunpack.c.h.b16 %v215
    %v1232 = vunpack.c.l.b16 %v216
    %v1233 = vunpack.c.h.b16 %v216
    %v1234 = vunpack.c.l.b16 %v217
    %v1235 = vunpack.c.h.b16 %v217
    %v1236 = vunpack.c.l.b16 %v218
    %v1237 = vunpack.c.h.b16 %v218
    %v1238 = vunpack.c.l.b16 %v219
    %v1239 = vunpack.c.h.b16 %v219
    %v1240 = vunpack.c.l.b16 %v220
    %v1241 = vunpack.c.h.b16 %v220
    %v1242 = vunpack.c.l.b16 %v221
    %v1243 = vunpack.c.h.b16 %v221
    %v1244 = vunpack.c.l.b16 %v222
    %v1245 = vunpack.c.h.b16 %v222
    %v1246 = vunpack.c.l.b16 %v223
    %v1247 = vunpack.c.h.b16 %v223
    %v1248 = vunpack.c.l.b16 %v224
    %v1249 = vunpack.c.h.b16 %v224
    %v1250 = vunpack.c.l.b16 %v225
    %v1251 = vunpack.c.h.b16 %v225
    %v1252 = vunpack.c.l.b16 %v226
    %v1253 = vunpack.c.h.b16 %v226
    %v1254 = vunpack.c.l.b16 %v227
    %v1255 = vunpack.c.h.b16 %v227
    %v1256 = vunpack.c.l.b16 %v228
    %v1257 = vunpack.c.h.b16 %v228
    %v1258 = vunpack.c.l.b16 %v229
    %v1259 = vunpack.c.h.b16 %v229
    %v1260 = vunpack.c.l.b16 %v230
    %v1261 = vunpack.c.h.b16 %v230
    %v1262 = vunpack.c.l.b16 %v231
    %v1263 = vunpack.c.h.b16 %v231
    %v1264 = vunpack.c.l.b16 %v232
    %v1265 = vunpack.c.h.b16 %v232
    %v1266 = vunpack.c.l.b16 %v233
    %v1267 = vunpack.c.h.b16 %v233
    %v1268 = vunpack.c.l.b16 %v234
    %v1269 = vunpack.c.h.b16 %v234
    %v1270 = vunpack.c.l.b16 %v235
    %v1271 = vunpack.c.h.b16 %v235
    %v1272 = vunpack.c.l.b16 %v236
    %v1273 = vunpack.c.h.b16 %v236
    %v1274 = vunpack.c.l.b16 %v237
    %v1275 = vunpack.c.h.b16 %v237
    %v1276 = vunpack.c.l.b16 %v238
    %v1277 = vunpack.c.h.b16 %v238
    %v1278 = vunpack.c.l.b16 %v239
    %v1279 = vunpack.c.h.b16 %v239
    %v1280 = vunpack.c.l.b16 %v240
    %v1281 = vunpack.c.h.b16 %v240
    %v1282 = vunpack.c.l.b16 %v241
    %v1283 = vunpack.c.h.b16 %v241
    %v1284 = vunpack.c.l.b16 %v242
    %v1285 = vunpack.c.h.b16 %v242
    %v1286 = vunpack.c.l.b16 %v243
    %v1287 = vunpack.c.h.b16 %v243
    %v1288 = vunpack.c.l.b16 %v244
    %v1289 = vunpack.c.h.b16 %v244
    %v1290 = vunpack.c.l.b16 %v245
    %v1291 = vunpack.c.h.b16 %v245
    %v1292 = vunpack.c.l.b16 %v246
    %v1293 = vunpack.c.h.b16 %v246
    %v1294 = vunpack.c.l.b16 %v247
    %v1295 = vunpack.c.h.b16 %v247
    %v1296 = vunpack.c.l.b16 %v248
    %v1297 = vunpack.c.h.b16 %v248
    %v1298 = vunpack.c.l.b16 %v249
    %v1299 = vunpack.c.h.b16 %v249
    %v1300 = vunpack.c.l.b16 %v250
    %v1301 = vunpack.c.h.b16 %v250
    %v1302 = vunpack.c.l.b16 %v251
    %v1303 = vunpack.c.h.b16 %v251
    %v1304 = vunpack.c.l.b16 %v252
    %v1305 = vunpack.c.h.b16 %v252
    %v1306 = vunpack.c.l.b16 %v253
    %v1307 = vunpack.c.h.b16 %v253
    %v1308 = vunpack.c.l.b16 %v254
    %v1309 = vunpack.c.h.b16 %v254
    %v1310 = vunpack.c.l.b16 %v255
    %v1311 = vunpack.c.h.b16 %v255
    %v1312 = vunpack.c.l.b16 %v256
    %v1313 = vunpack.c.h.b16 %v256
    %v1314 = vunpack.c.l.b16 %v257
    %v1315 = vunpack.c.h.b16 %v257
    %v1316 = vunpack.c.l.b16 %v258
    %v1317 = vunpack.c.h.b16 %v258
    %v1318 = vunpack.c.l.b16 %v259
    %v1319 = vunpack.c.h.b16 %v259
    %v1320 = vunpack.c.l.b16 %v260
    %v1321 = vunpack.c.h.b16 %v260
    %v1322 = vunpack.c.l.b16 %v261
    %v1323 = vunpack.c.h.b16 %v261
    %v1324 = vunpack.c.l.b16 %v262
    %v1325 = vunpack.c.h.b16 %v262
    %v1326 = vunpack.c.l.b16 %v263
    %v1327 = vunpack.c.h.b16 %v263
    %v1328 = vunpack.c.l.b16 %v264
    %v1329 = vunpack.c.h.b16 %v264
    %v1330 = vunpack.c.l.b16 %v265
    %v1331 = vunpack.c.h.b16 %v265
    %v1332 = vunpack.c.l.b16 %v266
    %v1333 = vunpack.c.h.b16 %v266
    %v1334 = vunpack.c.l.b16 %v267
    %v1335 = vunpack.c.h.b16 %v267
    %v1336 = vunpack.c.l.b16 %v268
    %v1337 = vunpack.c.h.b16 %v268
    %v1338 = vunpack.c.l.b16 %v269
    %v1339 = vunpack.c.h.b16 %v269
    %v1340 = vunpack.c.l.b16 %v270
    %v1341 = vunpack.c.h.b16 %v270
    %v1342 = vunpack.c.l.b16 %v271
    %v1343 = vunpack.c.h.b16 %v271
    %v1344 = vunpack.c.l.b16 %v272
    %v1345 = vunpack.c.h.b16 %v272
    %v1346 = vunpack.c.l.b16 %v273
    %v1347 = vunpack.c.h.b16 %v273
    %v1348 = vunpack.c.l.b16 %v274
    %v1349 = vunpack.c.h.b16 %v274
    %v1350 = vunpack.c.l.b16 %v275
    %v1351 = vunpack.c.h.b16 %v275
    %v1352 = vunpack.c.l.b16 %v276
    %v1353 = vunpack.c.h.b16 %v276
    %v1354 = vunpack.c.l.b16 %v277
    %v1355 = vunpack.c.h.b16 %v277
    %v1356 = vunpack.c.l.b16 %v278
    %v1357 = vunpack.c.h.b16 %v278
    %v1358 = vunpack.c.l.b16 %v279
    %v1359 = vunpack.c.h.b16 %v279
    %v1360 = vunpack.c.l.b16 %v280
    %v1361 = vunpack.c.h.b16 %v280
    %v1362 = vunpack.c.l.b16 %v281
    %v1363 = vunpack.c.h.b16 %v281
    %v1364 = vunpack.c.l.b16 %v282
    %v1365 = vunpack.c.h.b16 %v282
    %v1366 = vunpack.c.l.b16 %v283
    %v1367 = vunpack.c.h.b16 %v283
    %v1368 = vunpack.c.l.b16 %v284
    %v1369 = vunpack.c.h.b16 %v284
    %v1370 = vunpack.c.l.b16 %v285
    %v1371 = vunpack.c.h.b16 %v285
    %v1372 = vunpack.c.l.b16 %v286
    %v1373 = vunpack.c.h.b16 %v286
    %v1374 = vunpack.c.l.b16 %v287
    %v1375 = vunpack.c.h.b16 %v287
    %v1376 = vunpack.c.l.b16 %v288
    %v1377 = vunpack.c.h.b16 %v288
    %v1378 = vunpack.c.l.b16 %v289
    %v1379 = vunpack.c.h.b16 %v289
    %v1380 = vunpack.c.l.b16 %v290
    %v1381 = vunpack.c.h.b16 %v290
    %v1382 = vunpack.c.l.b16 %v291
    %v1383 = vunpack.c.h.b16 %v291
    %v1384 = vunpack.c.l.b16 %v292
    %v1385 = vunpack.c.h.b16 %v292
    %v1386 = vunpack.c.l.b16 %v293
    %v1387 = vunpack.c.h.b16 %v293
    %v1388 = vunpack.c.l.b16 %v294
    %v1389 = vunpack.c.h.b16 %v294
    %v1390 = vunpack.c.l.b16 %v295
    %v1391 = vunpack.c.h.b16 %v295
    %v1392 = vunpack.c.l.b16 %v296
    %v1393 = vunpack.c.h.b16 %v296
    %v1394 = vunpack.c.l.b16 %v297
    %v1395 = vunpack.c.h.b16 %v297
    %v1396 = vunpack.c.l.b16 %v298
    %v1397 = vunpack.c.h.b16 %v298
    %v1398 = vunpack.c.l.b16 %v299
    %v1399 = vunpack.c.h.b16 %v299
    %v1400 = vunpack.c.l.b16 %v300
    %v1401 = vunpack.c.h.b16 %v300
    %v1402 = vunpack.c.l.b16 %v301
    %v1403 = vunpack.c.h.b16 %v301
    %v1404 = vunpack.c.l.b16 %v302
    %v1405 = vunpack.c.h.b16 %v302
    %v1406 = vunpack.c.l.b16 %v303
    %v1407 = vunpack.c.h.b16 %v303
    %v1408 = vunpack.c.l.b16 %v304
    %v1409 = vunpack.c.h.b16 %v304
    %v1410 = vunpack.c.l.b16 %v305
    %v1411 = vunpack.c.h.b16 %v305
    %v1412 = vunpack.c.l.b16 %v306
    %v1413 = vunpack.c.h.b16 %v306
    %v1414 = vunpack.c.l.b16 %v307
    %v1415 = vunpack.c.h.b16 %v307
    %v1416 = vunpack.c.l.b16 %v308
    %v1417 = vunpack.c.h.b16 %v308
    %v1418 = vunpack.c.l.b16 %v309
    %v1419 = vunpack.c.h.b16 %v309
    %v1420 = vunpack.c.l.b16 %v310
    %v1421 = vunpack.c.h.b16 %v310
    %v1422 = vunpack.c.l.b16 %v311
    %v1423 = vunpack.c.h.b16 %v311
    %v1424 = vunpack.c.l.b16 %v312
    %v1425 = vunpack.c.h.b16 %v312
    %v1426 = vunpack.c.l.b16 %v313
    %v1427 = vunpack.c.h.b16 %v313
    %v1428 = vunpack.c.l.b16 %v314
    %v1429 = vunpack.c.h.b16 %v314
    %v1430 = vunpack.c.l.b16 %v315
    %v1431 = vunpack.c.h.b16 %v315
    %v1432 = vunpack.c.l.b16 %v316
    %v1433 = vunpack.c.h.b16 %v316
    %v1434 = vunpack.c.l.b16 %v317
    %v1435 = vunpack.c.h.b16 %v317
    %v1436 = vunpack.c.l.b16 %v318
    %v1437 = vunpack.c.h.b16 %v318
    %v1438 = vunpack.c.l.b16 %v319
    %v1439 = vunpack.c.h.b16 %v319
    %v1440 = vunpack.c.l.b16 %v320
    %v1441 = vunpack.c.h.b16 %v320
    %v1442 = vunpack.c.l.b16 %v321
    %v1443 = vunpack.c.h.b16 %v321
    %v1444 = vunpack.c.l.b16 %v322
    %v1445 = vunpack.c.h.b16 %v322
    %v1446 = vunpack.c.l.b16 %v323
    %v1447 = vunpack.c.h.b16 %v323
    %v1448 = vunpack.c.l.b16 %v324
    %v1449 = vunpack.c.h.b16 %v324
    %v1450 = vunpack.c.l.b16 %v325
    %v1451 = vunpack.c.h.b16 %v325
    %v1452 = vunpack.c.l.b16 %v326
    %v1453 = vunpack.c.h.b16 %v326
    %v1454 = vunpack.c.l.b16 %v327
    %v1455 = vunpack.c.h.b16 %v327
    %v1456 = vunpack.c.l.b16 %v328
    %v1457 = vunpack.c.h.b16 %v328
    %v1458 = vunpack.c.l.b16 %v329
    %v1459 = vunpack.c.h.b16 %v329
    %v1460 = vunpack.c.l.b16 %v330
    %v1461 = vunpack.c.h.b16 %v330
    %v1462 = vunpack.c.l.b16 %v331
    %v1463 = vunpack.c.h.b16 %v331
    %v1464 = vunpack.c.l.b16 %v332
    %v1465 = vunpack.c.h.b16 %v332
    %v1466 = vunpack.c.l.b16 %v333
    %v1467 = vunpack.c.h.b16 %v333
    %v1468 = vunpack.c.l.b16 %v334
    %v1469 = vunpack.c.h.b16 %v334
    %v1470 = vunpack.c.l.b16 %v335
    %v1471 = vunpack.c.h.b16 %v335
    %v1472 = vunpack.c.l.b16 %v336
    %v1473 = vunpack.c.h.b16 %v336
    %v1474 = vunpack.c.l.b16 %v337
    %v1475 = vunpack.c.h.b16 %v337
    %v1476 = vunpack.c.l.b16 %v338
    %v1477 = vunpack.c.h.b16 %v338
    %v1478 = vunpack.c.l.b16 %v339
    %v1479 = vunpack.c.h.b16 %v339
    %v1480 = vunpack.c.l.b16 %v340
    %v1481 = vunpack.c.h.b16 %v340
    %v1482 = vunpack.c.l.b16 %v341
    %v1483 = vunpack.c.h.b16 %v341
    %v1484 = vunpack.c.l.b16 %v342
    %v1485 = vunpack.c.h.b16 %v342
    %v1486 = vunpack.c.l.b16 %v343
    %v1487 = vunpack.c.h.b16 %v343
    %v1488 = vunpack.c.l.b16 %v344
    %v1489 = vunpack.c.h.b16 %v344
    %v1490 = vunpack.c.l.b16 %v345
    %v1491 = vunpack.c.h.b16 %v345
    %v1492 = vunpack.c.l.b16 %v346
    %v1493 = vunpack.c.h.b16 %v346
    %v1494 = vunpack.c.l.b16 %v347
    %v1495 = vunpack.c.h.b16 %v347
    %v1496 = vunpack.c.l.b16 %v348
    %v1497 = vunpack.c.h.b16 %v348
    %v1498 = vunpack.c.l.b16 %v349
    %v1499 = vunpack.c.h.b16 %v349
    %v1500 = vunpack.c.l.b16 %v350
    %v1501 = vunpack.c.h.b16 %v350
    %v1502 = vunpack.c.l.b16 %v351
    %v1503 = vunpack.c.h.b16 %v351
    %v1504 = vunpack.c.l.b16 %v352
    %v1505 = vunpack.c.h.b16 %v352
    %v1506 = vunpack.c.l.b16 %v353
    %v1507 = vunpack.c.h.b16 %v353
    %v1508 = vunpack.c.l.b16 %v354
    %v1509 = vunpack.c.h.b16 %v354
    %v1510 = vunpack.c.l.b16 %v355
    %v1511 = vunpack.c.h.b16 %v355
    %v1512 = vunpack.c.l.b16 %v356
    %v1513 = vunpack.c.h.b16 %v356
    %v1514 = vunpack.c.l.b16 %v357
    %v1515 = vunpack.c.h.b16 %v357
    %v1516 = vunpack.c.l.b16 %v358
    %v1517 = vunpack.c.h.b16 %v358
    %v1518 = vunpack.c.l.b16 %v359
    %v1519 = vunpack.c.h.b16 %v359
    %v1520 = vunpack.c.l.b16 %v360
    %v1521 = vunpack.c.h.b16 %v360
    %v1522 = vunpack.c.l.b16 %v361
    %v1523 = vunpack.c.h.b16 %v361
    %v1524 = vunpack.c.l.b16 %v362
    %v1525 = vunpack.c.h.b16 %v362
    %v1526 = vunpack.c.l.b16 %v363
    %v1527 = vunpack.c.h.b16 %v363
    %v1528 = vunpack.c.l.b16 %v364
    %v1529 = vunpack.c.h.b16 %v364
    %v1530 = vunpack.c.l.b16 %v365
    %v1531 = vunpack.c.h.b16 %v365
    %v1532 = vunpack.c.l.b16 %v366
    %v1533 = vunpack.c.h.b16 %v366
    %v1534 = vunpack.c.l.b16 %v367
    %v1535 = vunpack.c.h.b16 %v367
    %v1536 = vunpack.c.l.b16 %v368
    %v1537 = vunpack.c.h.b16 %v368
    %v1538 = vunpack.c.l.b16 %v369
    %v1539 = vunpack.c.h.b16 %v369
    %v1540 = vunpack.c.l.b16 %v370
    %v1541 = vunpack.c.h.b16 %v370
    %v1542 = vunpack.c.l.b16 %v371
    %v1543 = vunpack.c.h.b16 %v371
    %v1544 = vunpack.c.l.b16 %v372
    %v1545 = vunpack.c.h.b16 %v372
    %v1546 = vunpack.c.l.b16 %v373
    %v1547 = vunpack.c.h.b16 %v373
    %v1548 = vunpack.c.l.b16 %v374
    %v1549 = vunpack.c.h.b16 %v374
    %v1550 = vunpack.c.l.b16 %v375
    %v1551 = vunpack.c.h.b16 %v375
    %v1552 = vunpack.c.l.b16 %v376
    %v1553 = vunpack.c.h.b16 %v376
    %v1554 = vunpack.c.l.b16 %v377
    %v1555 = vunpack.c.h.b16 %v377
    %v1556 = vunpack.c.l.b16 %v378
    %v1557 = vunpack.c.h.b16 %v378
    %v1558 = vunpack.c.l.b16 %v379
    %v1559 = vunpack.c.h.b16 %v379
    %v1560 = vunpack.c.l.b16 %v380
    %v1561 = vunpack.c.h.b16 %v380
    %v1562 = vunpack.c.l.b16 %v381
    %v1563 = vunpack.c.h.b16 %v381
    %v1564 = vunpack.c.l.b16 %v382
    %v1565 = vunpack.c.h.b16 %v382
    %v1566 = vunpack.c.l.b16 %v383
    %v1567 = vunpack.c.h.b16 %v383
    %v1568 = vunpack.c.l.b16 %v384
    %v1569 = vunpack.c.h.b16 %v384
    %v1570 = vunpack.c.l.b16 %v385
    %v1571 = vunpack.c.h.b16 %v385
    %v1572 = vunpack.c.l.b16 %v386
    %v1573 = vunpack.c.h.b16 %v386
    %v1574 = vunpack.c.l.b16 %v387
    %v1575 = vunpack.c.h.b16 %v387
    %v1576 = vunpack.c.l.b16 %v388
    %v1577 = vunpack.c.h.b16 %v388
    %v1578 = vunpack.c.l.b16 %v389
    %v1579 = vunpack.c.h.b16 %v389
    %v1580 = vunpack.c.l.b16 %v390
    %v1581 = vunpack.c.h.b16 %v390
    %v1582 = vunpack.c.l.b16 %v391
    %v1583 = vunpack.c.h.b16 %v391
    %v1584 = vunpack.c.l.b16 %v392
    %v1585 = vunpack.c.h.b16 %v392
    %v1586 = vunpack.c.l.b16 %v393
    %v1587 = vunpack.c.h.b16 %v393
    %v1588 = vunpack.c.l.b16 %v394
    %v1589 = vunpack.c.h.b16 %v394
    %v1590 = vunpack.c.l.b16 %v395
    %v1591 = vunpack.c.h.b16 %v395
    %v1592 = vunpack.c.l.b16 %v396
    %v1593 = vunpack.c.h.b16 %v396
    %v1594 = vunpack.c.l.b16 %v397
    %v1595 = vunpack.c.h.b16 %v397
    %v1596 = vunpack.c.l.b16 %v398
    %v1597 = vunpack.c.h.b16 %v398
    %v1598 = vunpack.c.l.b16 %v399
    %v1599 = vunpack.c.h.b16 %v399
    %v1600 = vunpack.c.l.b16 %v400
    %v1601 = vunpack.c.h.b16 %v400
    %v1602 = vunpack.c.l.b16 %v401
    %v1603 = vunpack.c.h.b16 %v401
    %v1604 = vunpack.c.l.b16 %v402
    %v1605 = vunpack.c.h.b16 %v402
    %v1606 = vunpack.c.l.b16 %v403
    %v1607 = vunpack.c.h.b16 %v403
    %v1608 = vunpack.c.l.b16 %v404
    %v1609 = vunpack.c.h.b16 %v404
    %v1610 = vunpack.c.l.b16 %v405
    %v1611 = vunpack.c.h.b16 %v405
    %v1612 = vunpack.c.l.b16 %v406
    %v1613 = vunpack.c.h.b16 %v406
    %v1614 = vunpack.c.l.b16 %v407
    %v1615 = vunpack.c.h.b16 %v407
    %v1616 = vunpack.c.l.b16 %v408
    %v1617 = vunpack.c.h.b16 %v408
    %v1618 = vunpack.c.l.b16 %v409
    %v1619 = vunpack.c.h.b16 %v409
    %v1620 = vunpack.c.l.b16 %v410
    %v1621 = vunpack.c.h.b16 %v410
    %v1622 = vunpack.c.l.b16 %v411
    %v1623 = vunpack.c.h.b16 %v411
    %v1624 = vunpack.c.l.b16 %v412
    %v1625 = vunpack.c.h.b16 %v412
    %v1626 = vunpack.c.l.b16 %v413
    %v1627 = vunpack.c.h.b16 %v413
    %v1628 = vunpack.c.l.b16 %v414
    %v1629 = vunpack.c.h.b16 %v414
    %v1630 = vunpack.c.l.b16 %v415
    %v1631 = vunpack.c.h.b16 %v415
    %v1632 = vunpack.c.l.b16 %v416
    %v1633 = vunpack.c.h.b16 %v416
    %v1634 = vunpack.c.l.b16 %v417
    %v1635 = vunpack.c.h.b16 %v417
    %v1636 = vunpack.c.l.b16 %v418
    %v1637 = vunpack.c.h.b16 %v418
    %v1638 = vunpack.c.l.b16 %v419
    %v1639 = vunpack.c.h.b16 %v419
    %v1640 = vunpack.c.l.b16 %v420
    %v1641 = vunpack.c.h.b16 %v420
    %v1642 = vunpack.c.l.b16 %v421
    %v1643 = vunpack.c.h.b16 %v421
    %v1644 = vunpack.c.l.b16 %v422
    %v1645 = vunpack.c.h.b16 %v422
    %v1646 = vunpack.c.l.b16 %v423
    %v1647 = vunpack.c.h.b16 %v423
    %v1648 = vunpack.c.l.b16 %v424
    %v1649 = vunpack.c.h.b16 %v424
    %v1650 = vunpack.c.l.b16 %v425
    %v1651 = vunpack.c.h.b16 %v425
    %v1652 = vunpack.c.l.b16 %v426
    %v1653 = vunpack.c.h.b16 %v426
    %v1654 = vunpack.c.l.b16 %v427
    %v1655 = vunpack.c.h.b16 %v427
    %v1656 = vunpack.c.l.b16 %v428
    %v1657 = vunpack.c.h.b16 %v428
    %v1658 = vunpack.c.l.b16 %v429
    %v1659 = vunpack.c.h.b16 %v429
    %v1660 = vunpack.c.l.b16 %v430
    %v1661 = vunpack.c.h.b16 %v430
    %v1662 = vunpack.c.l.b16 %v431
    %v1663 = vunpack.c.h.b16 %v431
    %v1664 = vunpack.c.l.b16 %v432
    %v1665 = vunpack.c.h.b16 %v432
    %v1666 = vunpack.c.l.b16 %v433
    %v1667 = vunpack.c.h.b16 %v433
    %v1668 = vunpack.c.l.b16 %v434
    %v1669 = vunpack.c.h.b16 %v434
    %v1670 = vunpack.c.l.b16 %v435
    %v1671 = vunpack.c.h.b16 %v435
    %v1672 = vunpack.c.l.b16 %v436
    %v1673 = vunpack.c.h.b16 %v436
    %v1674 = vunpack.c.l.b16 %v437
    %v1675 = vunpack.c.h.b16 %v437
    %v1676 = vunpack.c.l.b16 %v438
    %v1677 = vunpack.c.h.b16 %v438
    %v1678 = vunpack.c.l.b16 %v439
    %v1679 = vunpack.c.h.b16 %v439
    %v1680 = vunpack.c.l.b16 %v440
    %v1681 = vunpack.c.h.b16 %v440
    %v1682 = vunpack.c.l.b16 %v441
    %v1683 = vunpack.c.h.b16 %v441
    %v1684 = vunpack.c.l.b16 %v442
    %v1685 = vunpack.c.h.b16 %v442
    %v1686 = vunpack.c.l.b16 %v443
    %v1687 = vunpack.c.h.b16 %v443
    %v1688 = vunpack.c.l.b16 %v444
    %v1689 = vunpack.c.h.b16 %v444
    %v1690 = vunpack.c.l.b16 %v445
    %v1691 = vunpack.c.h.b16 %v445
    %v1692 = vunpack.c.l.b16 %v446
    %v1693 = vunpack.c.h.b16 %v446
    %v1694 = vunpack.c.l.b16 %v447
    %v1695 = vunpack.c.h.b16 %v447
    %v1696 = vunpack.c.l.b16 %v448
    %v1697 = vunpack.c.h.b16 %v448
    %v1698 = vunpack.c.l.b16 %v449
    %v1699 = vunpack.c.h.b16 %v449
    %v1700 = vunpack.c.l.b16 %v450
    %v1701 = vunpack.c.h.b16 %v450
    %v1702 = vunpack.c.l.b16 %v451
    %v1703 = vunpack.c.h.b16 %v451
    %v1704 = vunpack.c.l.b16 %v452
    %v1705 = vunpack.c.h.b16 %v452
    %v1706 = vunpack.c.l.b16 %v453
    %v1707 = vunpack.c.h.b16 %v453
    %v1708 = vunpack.c.l.b16 %v454
    %v1709 = vunpack.c.h.b16 %v454
    %v1710 = vunpack.c.l.b16 %v455
    %v1711 = vunpack.c.h.b16 %v455
    %v1712 = vunpack.c.l.b16 %v456
    %v1713 = vunpack.c.h.b16 %v456
    %v1714 = vunpack.c.l.b16 %v457
    %v1715 = vunpack.c.h.b16 %v457
    %v1716 = vunpack.c.l.b16 %v458
    %v1717 = vunpack.c.h.b16 %v458
    %v1718 = vunpack.c.l.b16 %v459
    %v1719 = vunpack.c.h.b16 %v459
    %v1720 = vunpack.c.l.b16 %v460
    %v1721 = vunpack.c.h.b16 %v460
    %v1722 = vunpack.c.l.b16 %v461
    %v1723 = vunpack.c.h.b16 %v461
    %v1724 = vunpack.c.l.b16 %v462
    %v1725 = vunpack.c.h.b16 %v462
    %v1726 = vunpack.c.l.b16 %v463
    %v1727 = vunpack.c.h.b16 %v463
    %v1728 = vunpack.c.l.b16 %v464
    %v1729 = vunpack.c.h.b16 %v464
    %v1730 = vunpack.c.l.b16 %v465
    %v1731 = vunpack.c.h.b16 %v465
    %v1732 = vunpack.c.l.b16 %v466
    %v1733 = vunpack.c.h.b16 %v466
    %v1734 = vunpack.c.l.b16 %v467
    %v1735 = vunpack.c.h.b16 %v467
    %v1736 = vunpack.c.l.b16 %v468
    %v1737 = vunpack.c.h.b16 %v468
    %v1738 = vunpack.c.l.b16 %v469
    %v1739 = vunpack.c.h.b16 %v469
    %v1740 = vunpack.c.l.b16 %v470
    %v1741 = vunpack.c.h.b16 %v470
    %v1742 = vunpack.c.l.b16 %v471
    %v1743 = vunpack.c.h.b16 %v471
    %v1744 = vunpack.c.l.b16 %v472
    %v1745 = vunpack.c.h.b16 %v472
    %v1746 = vunpack.c.l.b16 %v473
    %v1747 = vunpack.c.h.b16 %v473
    %v1748 = vunpack.c.l.b16 %v474
    %v1749 = vunpack.c.h.b16 %v474
    %v1750 = vunpack.c.l.b16 %v475
    %v1751 = vunpack.c.h.b16 %v475
    %v1752 = vunpack.c.l.b16 %v476
    %v1753 = vunpack.c.h.b16 %v476
    %v1754 = vunpack.c.l.b16 %v477
    %v1755 = vunpack.c.h.b16 %v477
    %v1756 = vunpack.c.l.b16 %v478
    %v1757 = vunpack.c.h.b16 %v478
    %v1758 = vunpack.c.l.b16 %v479
    %v1759 = vunpack.c.h.b16 %v479
    %v1760 = vunpack.c.l.b16 %v480
    %v1761 = vunpack.c.h.b16 %v480
    %v1762 = vunpack.c.l.b16 %v481
    %v1763 = vunpack.c.h.b16 %v481
    %v1764 = vunpack.c.l.b16 %v482
    %v1765 = vunpack.c.h.b16 %v482
    %v1766 = vunpack.c.l.b16 %v483
    %v1767 = vunpack.c.h.b16 %v483
    %v1768 = vunpack.c.l.b16 %v484
    %v1769 = vunpack.c.h.b16 %v484
    %v1770 = vunpack.c.l.b16 %v485
    %v1771 = vunpack.c.h.b16 %v485
    %v1772 = vunpack.c.l.b16 %v486
    %v1773 = vunpack.c.h.b16 %v486
    %v1774 = vunpack.c.l.b16 %v487
    %v1775 = vunpack.c.h.b16 %v487
    %v1776 = vunpack.c.l.b16 %v488
    %v1777 = vunpack.c.h.b16 %v488
    %v1778 = vunpack.c.l.b16 %v489
    %v1779 = vunpack.c.h.b16 %v489
    %v1780 = vunpack.c.l.b16 %v490
    %v1781 = vunpack.c.h.b16 %v490
    %v1782 = vunpack.c.l.b16 %v491
    %v1783 = vunpack.c.h.b16 %v491
    %v1784 = vunpack.c.l.b16 %v492
    %v1785 = vunpack.c.h.b16 %v492
    %v1786 = vunpack.c.l.b16 %v493
    %v1787 = vunpack.c.h.b16 %v493
    %v1788 = vunpack.c.l.b16 %v494
    %v1789 = vunpack.c.h.b16 %v494
    %v1790 = vunpack.c.l.b16 %v495
    %v1791 = vunpack.c.h.b16 %v495
    %v1792 = vunpack.c.l.b16 %v496
    %v1793 = vunpack.c.h.b16 %v496
    %v1794 = vunpack.c.l.b16 %v497
    %v1795 = vunpack.c.h.b16 %v497
    %v1796 = vunpack.c.l.b16 %v498
    %v1797 = vunpack.c.h.b16 %v498
    %v1798 = vunpack.c.l.b16 %v499
    %v1799 = vunpack.c.h.b16 %v499
    %v1800 = vunpack.c.l.b16 %v500
    %v1801 = vunpack.c.h.b16 %v500
    %v1802 = vunpack.c.l.b16 %v501
    %v1803 = vunpack.c.h.b16 %v501
    %v1804 = vunpack.c.l.b16 %v502
    %v1805 = vunpack.c.h.b16 %v502
    %v1806 = vunpack.c.l.b16 %v503
    %v1807 = vunpack.c.h.b16 %v503
    %v1808 = vunpack.c.l.b16 %v504
    %v1809 = vunpack.c.h.b16 %v504
    %v1810 = vunpack.c.l.b16 %v505
    %v1811 = vunpack.c.h.b16 %v505
    %v1812 = vunpack.c.l.b16 %v506
    %v1813 = vunpack.c.h.b16 %v506
    %v1814 = vunpack.c.l.b16 %v507
    %v1815 = vunpack.c.h.b16 %v507
    %v1816 = vunpack.c.l.b16 %v508
    %v1817 = vunpack.c.h.b16 %v508
    %v1818 = vunpack.c.l.b16 %v509
    %v1819 = vunpack.c.h.b16 %v509
    %v1820 = vunpack.c.l.b16 %v510
    %v1821 = vunpack.c.h.b16 %v510
    %v1822 = vunpack.c.l.b16 %v511
    %v1823 = vunpack.c.h.b16 %v511
    %v1824 = vunpack.c.l.b16 %v512
    %v1825 = vunpack.c.h.b16 %v512
    %v1826 = vunpack.c.l.b16 %v513
    %v1827 = vunpack.c.h.b16 %v513
    %v1828 = vunpack.c.l.b16 %v514
    %v1829 = vunpack.c.h.b16 %v514
    %v1830 = vunpack.c.l.b16 %v515
    %v1831 = vunpack.c.h.b16 %v515
    %v1832 = vunpack.c.l.b16 %v516
    %v1833 = vunpack.c.h.b16 %v516
    %v1834 = vunpack.c.l.b16 %v517
    %v1835 = vunpack.c.h.b16 %v517
    %v1836 = vunpack.c.l.b16 %v518
    %v1837 = vunpack.c.h.b16 %v518
    %v1838 = vunpack.c.l.b16 %v519
    %v1839 = vunpack.c.h.b16 %v519
    %v1840 = vunpack.c.l.b16 %v520
    %v1841 = vunpack.c.h.b16 %v520
    %v1842 = vunpack.c.l.b16 %v521
    %v1843 = vunpack.c.h.b16 %v521
    %v1844 = vunpack.c.l.b16 %v522
    %v1845 = vunpack.c.h.b16 %v522
    %v1846 = vunpack.c.l.b16 %v523
    %v1847 = vunpack.c.h.b16 %v523
    %v1848 = vunpack.c.l.b16 %v524
    %v1849 = vunpack.c.h.b16 %v524
    %v1850 = vunpack.c.l.b16 %v525
    %v1851 = vunpack.c.h.b16 %v525
    %v1852 = vunpack.c.l.b16 %v526
    %v1853 = vunpack.c.h.b16 %v526
    %v1854 = vunpack.c.l.b16 %v527
    %v1855 = vunpack.c.h.b16 %v527
    %v1856 = vunpack.c.l.b16 %v528
    %v1857 = vunpack.c.h.b16 %v528
    %v1858 = vunpack.c.l.b16 %v529
    %v1859 = vunpack.c.h.b16 %v529
    %v1860 = vunpack.c.l.b16 %v530
    %v1861 = vunpack.c.h.b16 %v530
    %v1862 = vunpack.c.l.b16 %v531
    %v1863 = vunpack.c.h.b16 %v531
    %v1864 = vunpack.c.l.b16 %v532
    %v1865 = vunpack.c.h.b16 %v532
    %v1866 = vunpack.c.l.b16 %v533
    %v1867 = vunpack.c.h.b16 %v533
    %v1868 = vunpack.c.l.b16 %v534
    %v1869 = vunpack.c.h.b16 %v534
    %v1870 = vunpack.c.l.b16 %v535
    %v1871 = vunpack.c.h.b16 %v535
    %v1872 = vunpack.c.l.b16 %v536
    %v1873 = vunpack.c.h.b16 %v536
    %v1874 = vunpack.c.l.b16 %v537
    %v1875 = vunpack.c.h.b16 %v537
    %v1876 = vunpack.c.l.b16 %v538
    %v1877 = vunpack.c.h.b16 %v538
    %v1878 = vunpack.c.l.b16 %v539
    %v1879 = vunpack.c.h.b16 %v539
    %v1880 = vunpack.c.l.b16 %v540
    %v1881 = vunpack.c.h.b16 %v540
    %v1882 = vunpack.c.l.b16 %v541
    %v1883 = vunpack.c.h.b16 %v541
    %v1884 = vunpack.c.l.b16 %v542
    %v1885 = vunpack.c.h.b16 %v542
    %v1886 = vunpack.c.l.b16 %v543
    %v1887 = vunpack.c.h.b16 %v543
    %v1888 = vunpack.c.l.b16 %v544
    %v1889 = vunpack.c.h.b16 %v544
    %v1890 = vunpack.c.l.b16 %v545
    %v1891 = vunpack.c.h.b16 %v545
    %v1892 = vunpack.c.l.b16 %v546
    %v1893 = vunpack.c.h.b16 %v546
    %v1894 = vunpack.c.l.b16 %v547
    %v1895 = vunpack.c.h.b16 %v547
    %v1896 = vunpack.c.l.b16 %v548
    %v1897 = vunpack.c.h.b16 %v548
    %v1898 = vunpack.c.l.b16 %v549
    %v1899 = vunpack.c.h.b16 %v549
    %v1900 = vunpack.c.l.b16 %v550
    %v1901 = vunpack.c.h.b16 %v550
    %v1902 = vunpack.c.l.b16 %v551
    %v1903 = vunpack.c.h.b16 %v551
    %v1904 = vunpack.c.l.b16 %v552
    %v1905 = vunpack.c.h.b16 %v552
    %v1906 = vunpack.c.l.b16 %v553
    %v1907 = vunpack.c.h.b16 %v553
    %v1908 = vunpack.c.l.b16 %v554
    %v1909 = vunpack.c.h.b16 %v554
    %v1910 = vunpack.c.l.b16 %v555
    %v1911 = vunpack.c.h.b16 %v555
    %v1912 = vunpack.c.l.b16 %v556
    %v1913 = vunpack.c.h.b16 %v556
    %v1914 = vunpack.c.l.b16 %v557
    %v1915 = vunpack.c.h.b16 %v557
    %v1916 = vunpack.c.l.b16 %v558
    %v1917 = vunpack.c.h.b16 %v558
    %v1918 = vunpack.c.l.b16 %v559
    %v1919 = vunpack.c.h.b16 %v559
    %v1920 = vunpack.c.l.b16 %v560
    %v1921 = vunpack.c.h.b16 %v560
    %v1922 = vunpack.c.l.b16 %v561
    %v1923 = vunpack.c.h.b16 %v561
    %v1924 = vunpack.c.l.b16 %v562
    %v1925 = vunpack.c.h.b16 %v562
    %v1926 = vunpack.c.l.b16 %v563
    %v1927 = vunpack.c.h.b16 %v563
    %v1928 = vunpack.c.l.b16 %v564
    %v1929 = vunpack.c.h.b16 %v564
    %v1930 = vunpack.c.l.b16 %v565
    %v1931 = vunpack.c.h.b16 %v565
    %v1932 = vunpack.c.l.b16 %v566
    %v1933 = vunpack.c.h.b16 %v566
    %v1934 = vunpack.c.l.b16 %v567
    %v1935 = vunpack.c.h.b16 %v567
    %v1936 = vunpack.c.l.b16 %v568
    %v1937 = vunpack.c.h.b16 %v568
    %v1938 = vunpack.c.l.b16 %v569
    %v1939 = vunpack.c.h.b16 %v569
    %v1940 = vunpack.c.l.b16 %v570
    %v1941 = vunpack.c.h.b16 %v570
    %v1942 = vunpack.c.l.b16 %v571
    %v1943 = vunpack.c.h.b16 %v571
    %v1944 = vunpack.c.l.b16 %v572
    %v1945 = vunpack.c.h.b16 %v572
    %v1946 = vunpack.c.l.b16 %v573
    %v1947 = vunpack.c.h.b16 %v573
    %v1948 = vunpack.c.l.b16 %v574
    %v1949 = vunpack.c.h.b16 %v574
    %v1950 = vunpack.c.l.b16 %v575
    %v1951 = vunpack.c.h.b16 %v575
    %v1952 = vunpack.c.l.b16 %v576
    %v1953 = vunpack.c.h.b16 %v576
    %v1954 = vunpack.c.l.b16 %v577
    %v1955 = vunpack.c.h.b16 %v577
    %v1956 = vunpack.c.l.b16 %v578
    %v1957 = vunpack.c.h.b16 %v578
    %v1958 = vunpack.c.l.b16 %v579
    %v1959 = vunpack.c.h.b16 %v579
    %v1960 = vunpack.c.l.b16 %v580
    %v1961 = vunpack.c.h.b16 %v580
    %v1962 = vunpack.c.l.b16 %v581
    %v1963 = vunpack.c.h.b16 %v581
    %v1964 = vunpack.c.l.b16 %v582
    %v1965 = vunpack.c.h.b16 %v582
    %v1966 = vunpack.c.l.b16 %v583
    %v1967 = vunpack.c.h.b16 %v583
    %v1968 = vunpack.c.l.b16 %v584
    %v1969 = vunpack.c.h.b16 %v584
    %v1970 = vunpack.c.l.b16 %v585
    %v1971 = vunpack.c.h.b16 %v585
    %v1972 = vunpack.c.l.b16 %v586
    %v1973 = vunpack.c.h.b16 %v586
    %v1974 = vpack.c.b16 %v1086, %v1078
    %v1975 = vpack.c.b16 %v1087, %v1079
    %v1976 = vpack.c.b16 %v1088, %v1080
    %v1977 = vpack.c.b16 %v1089, %v1081
    %v1978 = vpack.c.b16 %v1090, %v1082
    %v1979 = vpack.c.b16 %v1091, %v1083
    %v1980 = vpack.c.b16 %v1092, %v1084
    %v1981 = vpack.c.b16 %v1093, %v1085
    %v1982 = vpack.c.b16 %v1102, %v1094
    %v1983 = vpack.c.b16 %v1103, %v1095
    %v1984 = vpack.c.b16 %v1104, %v1096
    %v1985 = vpack.c.b16 %v1105, %v1097
    %v1986 = vpack.c.b16 %v1106, %v1098
    %v1987 = vpack.c.b16 %v1107, %v1099
    %v1988 = vpack.c.b16 %v1108, %v1100
    %v1989 = vpack.c.b16 %v1109, %v1101
    %v1990 = vpack.c.b16 %v1118, %v1110
    %v1991 = vpack.c.b16 %v1119, %v1111
    %v1992 = vpack.c.b16 %v1120, %v1112
    %v1993 = vpack.c.b16 %v1121, %v1113
    %v1994 = vpack.c.b16 %v1122, %v1114
    %v1995 = vpack.c.b16 %v1123, %v1115
    %v1996 = vpack.c.b16 %v1124, %v1116
    %v1997 = vpack.c.b16 %v1125, %v1117
    %v1998 = vpack.c.b16 %v1134, %v1126
    %v1999 = vpack.c.b16 %v1135, %v1127
    %v2000 = vpack.c.b16 %v1136, %v1128
    %v2001 = vpack.c.b16 %v1137, %v1129
    %v2002 = vpack.c.b16 %v1138, %v1130
    %v2003 = vpack.c.b16 %v1139, %v1131
    %v2004 = vpack.c.b16 %v1140, %v1132
    %v2005 = vpack.c.b16 %v1141, %v1133
    %v2006 = vpack.c.b16 %v1150, %v1142
    %v2007 = vpack.c.b16 %v1151, %v1143
    %v2008 = vpack.c.b16 %v1152, %v1144
    %v2009 = vpack.c.b16 %v1153, %v1145
    %v2010 = vpack.c.b16 %v1154, %v1146
    %v2011 = vpack.c.b16 %v1155, %v1147
    %v2012 = vpack.c.b16 %v1156, %v1148
    %v2013 = vpack.c.b16 %v1157, %v1149
    %v2014 = vpack.c.b16 %v1166, %v1158
    %v2015 = vpack.c.b16 %v1167, %v1159
    %v2016 = vpack.c.b16 %v1168, %v1160
    %v2017 = vpack.c.b16 %v1169, %v1161
    %v2018 = vpack.c.b16 %v1170, %v1162
    %v2019 = vpack.c.b16 %v1171, %v1163
    %v2020 = vpack.c.b16 %v1172, %v1164
    %v2021 = vpack.c.b16 %v1173, %v1165
    %v2022 = vpack.c.b16 %v1182, %v1174
    %v2023 = vpack.c.b16 %v1183, %v1175
    %v2024 = vpack.c.b16 %v1184, %v1176
    %v2025 = vpack.c.b16 %v1185, %v1177
    %v2026 = vpack.c.b16 %v1186, %v1178
    %v2027 = vpack.c.b16 %v1187, %v1179
    %v2028 = vpack.c.b16 %v1188, %v1180
    %v2029 = vpack.c.b16 %v1189, %v1181
    %v2030 = vpack.c.b16 %v1198, %v1190
    %v2031 = vpack.c.b16 %v1199, %v1191
    %v2032 = vpack.c.b16 %v1200, %v1192
    %v2033 = vpack.c.b16 %v1201, %v1193
    %v2034 = vpack.c.b16 %v1202, %v1194
    %v2035 = vpack.c.b16 %v1203, %v1195
    %v2036 = vpack.c.b16 %v1204, %v1196
    %v2037 = vpack.c.b16 %v1205, %v1197
    %v2038 = vpack.c.b16 %v1214, %v1206
    %v2039 = vpack.c.b16 %v1215, %v1207
    %v2040 = vpack.c.b16 %v1216, %v1208
    %v2041 = vpack.c.b16 %v1217, %v1209
    %v2042 = vpack.c.b16 %v1218, %v1210
    %v2043 = vpack.c.b16 %v1219, %v1211
    %v2044 = vpack.c.b16 %v1220, %v1212
    %v2045 = vpack.c.b16 %v1221, %v1213
    %v2046 = vpack.c.b16 %v1230, %v1222
    %v2047 = vpack.c.b16 %v1231, %v1223
    %v2048 = vpack.c.b16 %v1232, %v1224
    %v2049 = vpack.c.b16 %v1233, %v1225
    %v2050 = vpack.c.b16 %v1234, %v1226
    %v2051 = vpack.c.b16 %v1235, %v1227
    %v2052 = vpack.c.b16 %v1236, %v1228
    %v2053 = vpack.c.b16 %v1237, %v1229
    %v2054 = vpack.c.b16 %v1246, %v1238
    %v2055 = vpack.c.b16 %v1247, %v1239
    %v2056 = vpack.c.b16 %v1248, %v1240
    %v2057 = vpack.c.b16 %v1249, %v1241
    %v2058 = vpack.c.b16 %v1250, %v1242
    %v2059 = vpack.c.b16 %v1251, %v1243
    %v2060 = vpack.c.b16 %v1252, %v1244
    %v2061 = vpack.c.b16 %v1253, %v1245
    %v2062 = vpack.c.b16 %v1262, %v1254
    %v2063 = vpack.c.b16 %v1263, %v1255
    %v2064 = vpack.c.b16 %v1264, %v1256
    %v2065 = vpack.c.b16 %v1265, %v1257
    %v2066 = vpack.c.b16 %v1266, %v1258
    %v2067 = vpack.c.b16 %v1267, %v1259
    %v2068 = vpack.c.b16 %v1268, %v1260
    %v2069 = vpack.c.b16 %v1269, %v1261
    %v2070 = vpack.c.b16 %v1278, %v1270
    %v2071 = vpack.c.b16 %v1279, %v1271
    %v2072 = vpack.c.b16 %v1280, %v1272
    %v2073 = vpack.c.b16 %v1281, %v1273
    %v2074 = vpack.c.b16 %v1282, %v1274
    %v2075 = vpack.c.b16 %v1283, %v1275
    %v2076 = vpack.c.b16 %v1284, %v1276
    %v2077 = vpack.c.b16 %v1285, %v1277
    %v2078 = vpack.c.b16 %v1294, %v1286
    %v2079 = vpack.c.b16 %v1295, %v1287
    %v2080 = vpack.c.b16 %v1296, %v1288
    %v2081 = vpack.c.b16 %v1297, %v1289
    %v2082 = vpack.c.b16 %v1298, %v1290
    %v2083 = vpack.c.b16 %v1299, %v1291
    %v2084 = vpack.c.b16 %v1300, %v1292
    %v2085 = vpack.c.b16 %v1301, %v1293
    %v2086 = vpack.c.b16 %v1310, %v1302
    %v2087 = vpack.c.b16 %v1311, %v1303
    %v2088 = vpack.c.b16 %v1312, %v1304
    %v2089 = vpack.c.b16 %v1313, %v1305
    %v2090 = vpack.c.b16 %v1314, %v1306
    %v2091 = vpack.c.b16 %v1315, %v1307
    %v2092 = vpack.c.b16 %v1316, %v1308
    %v2093 = vpack.c.b16 %v1317, %v1309
    %v2094 = vpack.c.b16 %v1326, %v1318
    %v2095 = vpack.c.b16 %v1327, %v1319
    %v2096 = vpack.c.b16 %v1328, %v1320
    %v2097 = vpack.c.b16 %v1329, %v1321
    %v2098 = vpack.c.b16 %v1330, %v1322
    %v2099 = vpack.c.b16 %v1331, %v1323
    %v2100 = vpack.c.b16 %v1332, %v1324
    %v2101 = vpack.c.b16 %v1333, %v1325
    %v2102 = vpack.c.b16 %v1342, %v1334
    %v2103 = vpack.c.b16 %v1343, %v1335
    %v2104 = vpack.c.b16 %v1344, %v1336
    %v2105 = vpack.c.b16 %v1345, %v1337
    %v2106 = vpack.c.b16 %v1346, %v1338
    %v2107 = vpack.c.b16 %v1347, %v1339
    %v2108 = vpack.c.b16 %v1348, %v1340
    %v2109 = vpack.c.b16 %v1349, %v1341
    %v2110 = vpack.c.b16 %v1358, %v1350
    %v2111 = vpack.c.b16 %v1359, %v1351
    %v2112 = vpack.c.b16 %v1360, %v1352
    %v2113 = vpack.c.b16 %v1361, %v1353
    %v2114 = vpack.c.b16 %v1362, %v1354
    %v2115 = vpack.c.b16 %v1363, %v1355
    %v2116 = vpack.c.b16 %v1364, %v1356
    %v2117 = vpack.c.b16 %v1365, %v1357
    %v2118 = vpack.c.b16 %v1374, %v1366
    %v2119 = vpack.c.b16 %v1375, %v1367
    %v2120 = vpack.c.b16 %v1376, %v1368
    %v2121 = vpack.c.b16 %v1377, %v1369
    %v2122 = vpack.c.b16 %v1378, %v1370
    %v2123 = vpack.c.b16 %v1379, %v1371
    %v2124 = vpack.c.b16 %v1380, %v1372
    %v2125 = vpack.c.b16 %v1381, %v1373
    %v2126 = vpack.c.b16 %v1390, %v1382
    %v2127 = vpack.c.b16 %v1391, %v1383
    %v2128 = vpack.c.b16 %v1392, %v1384
    %v2129 = vpack.c.b16 %v1393, %v1385
    %v2130 = vpack.c.b16 %v1394, %v1386
    %v2131 = vpack.c.b16 %v1395, %v1387
    %v2132 = vpack.c.b16 %v1396, %v1388
    %v2133 = vpack.c.b16 %v1397, %v1389
    %v2134 = vpack.c.b16 %v1406, %v1398
    %v2135 = vpack.c.b16 %v1407, %v1399
    %v2136 = vpack.c.b16 %v1408, %v1400
    %v2137 = vpack.c.b16 %v1409, %v1401
    %v2138 = vpack.c.b16 %v1410, %v1402
    %v2139 = vpack.c.b16 %v1411, %v1403
    %v2140 = vpack.c.b16 %v1412, %v1404
    %v2141 = vpack.c.b16 %v1413, %v1405
    %v2142 = vpack.c.b16 %v1422, %v1414
    %v2143 = vpack.c.b16 %v1423, %v1415
    %v2144 = vpack.c.b16 %v1424, %v1416
    %v2145 = vpack.c.b16 %v1425, %v1417
    %v2146 = vpack.c.b16 %v1426, %v1418
    %v2147 = vpack.c.b16 %v1427, %v1419
    %v2148 = vpack.c.b16 %v1428, %v1420
    %v2149 = vpack.c.b16 %v1429, %v1421
    %v2150 = vpack.c.b16 %v1438, %v1430
    %v2151 = vpack.c.b16 %v1439, %v1431
    %v2152 = vpack.c.b16 %v1440, %v1432
    %v2153 = vpack.c.b16 %v1441, %v1433
    %v2154 = vpack.c.b16 %v1442, %v1434
    %v2155 = vpack.c.b16 %v1443, %v1435
    %v2156 = vpack.c.b16 %v1444, %v1436
    %v2157 = vpack.c.b16 %v1445, %v1437
    %v2158 = vpack.c.b16 %v1454, %v1446
    %v2159 = vpack.c.b16 %v1455, %v1447
    %v2160 = vpack.c.b16 %v1456, %v1448
    %v2161 = vpack.c.b16 %v1457, %v1449
    %v2162 = vpack.c.b16 %v1458, %v1450
    %v2163 = vpack.c.b16 %v1459, %v1451
    %v2164 = vpack.c.b16 %v1460, %v1452
    %v2165 = vpack.c.b16 %v1461, %v1453
    %v2166 = vpack.c.b16 %v1470, %v1462
    %v2167 = vpack.c.b16 %v1471, %v1463
    %v2168 = vpack.c.b16 %v1472, %v1464
    %v2169 = vpack.c.b16 %v1473, %v1465
    %v2170 = vpack.c.b16 %v1474, %v1466
    %v2171 = vpack.c.b16 %v1475, %v1467
    %v2172 = vpack.c.b16 %v1476, %v1468
    %v2173 = vpack.c.b16 %v1477, %v1469
    %v2174 = vpack.c.b16 %v1486, %v1478
    %v2175 = vpack.c.b16 %v1487, %v1479
    %v2176 = vpack.c.b16 %v1488, %v1480
    %v2177 = vpack.c.b16 %v1489, %v1481
    %v2178 = vpack.c.b16 %v1490, %v1482
    %v2179 = vpack.c.b16 %v1491, %v1483
    %v2180 = vpack.c.b16 %v1492, %v1484
    %v2181 = vpack.c.b16 %v1493, %v1485
    %v2182 = vpack.c.b16 %v1502, %v1494
    %v2183 = vpack.c.b16 %v1503, %v1495
    %v2184 = vpack.c.b16 %v1504, %v1496
    %v2185 = vpack.c.b16 %v1505, %v1497
    %v2186 = vpack.c.b16 %v1506, %v1498
    %v2187 = vpack.c.b16 %v1507, %v1499
    %v2188 = vpack.c.b16 %v1508, %v1500
    %v2189 = vpack.c.b16 %v1509, %v1501
    %v2190 = vpack.c.b16 %v1518, %v1510
    %v2191 = vpack.c.b16 %v1519, %v1511
    %v2192 = vpack.c.b16 %v1520, %v1512
    %v2193 = vpack.c.b16 %v1521, %v1513
    %v2194 = vpack.c.b16 %v1522, %v1514
    %v2195 = vpack.c.b16 %v1523, %v1515
    %v2196 = vpack.c.b16 %v1524, %v1516
    %v2197 = vpack.c.b16 %v1525, %v1517
    %v2198 = vpack.c.b16 %v1534, %v1526
    %v2199 = vpack.c.b16 %v1535, %v1527
    %v2200 = vpack.c.b16 %v1536, %v1528
    %v2201 = vpack.c.b16 %v1537, %v1529
    %v2202 = vpack.c.b16 %v1538, %v1530
    %v2203 = vpack.c.b16 %v1539, %v1531
    %v2204 = vpack.c.b16 %v1540, %v1532
    %v2205 = vpack.c.b16 %v1541, %v1533
    %v2206 = vpack.c.b16 %v1550, %v1542
    %v2207 = vpack.c.b16 %v1551, %v1543
    %v2208 = vpack.c.b16 %v1552, %v1544
    %v2209 = vpack.c.b16 %v1553, %v1545
    %v2210 = vpack.c.b16 %v1554, %v1546
    %v2211 = vpack.c.b16 %v1555, %v1547
    %v2212 = vpack.c.b16 %v1556, %v1548
    %v2213 = vpack.c.b16 %v1557, %v1549
    %v2214 = vpack.c.b16 %v1566, %v1558
    %v2215 = vpack.c.b16 %v1567, %v1559
    %v2216 = vpack.c.b16 %v1568, %v1560
    %v2217 = vpack.c.b16 %v1569, %v1561
    %v2218 = vpack.c.b16 %v1570, %v1562
    %v2219 = vpack.c.b16 %v1571, %v1563
    %v2220 = vpack.c.b16 %v1572, %v1564
    %v2221 = vpack.c.b16 %v1573, %v1565
    %v2222 = vpack.c.b16 %v1582, %v1574
    %v2223 = vpack.c.b16 %v1583, %v1575
    %v2224 = vpack.c.b16 %v1584, %v1576
    %v2225 = vpack.c.b16 %v1585, %v1577
    %v2226 = vpack.c.b16 %v1586, %v1578
    %v2227 = vpack.c.b16 %v1587, %v1579
    %v2228 = vpack.c.b16 %v1588, %v1580
    %v2229 = vpack.c.b16 %v1589, %v1581
    %v2230 = vpack.c.b16 %v1598, %v1590
    %v2231 = vpack.c.b16 %v1599, %v1591
    %v2232 = vpack.c.b16 %v1600, %v1592
    %v2233 = vpack.c.b16 %v1601, %v1593
    %v2234 = vpack.c.b16 %v1602, %v1594
    %v2235 = vpack.c.b16 %v1603, %v1595
    %v2236 = vpack.c.b16 %v1604, %v1596
    %v2237 = vpack.c.b16 %v1605, %v1597
    %v2238 = vpack.c.b16 %v1614, %v1606
    %v2239 = vpack.c.b16 %v1615, %v1607
    %v2240 = vpack.c.b16 %v1616, %v1608
    %v2241 = vpack.c.b16 %v1617, %v1609
    %v2242 = vpack.c.b16 %v1618, %v1610
    %v2243 = vpack.c.b16 %v1619, %v1611
    %v2244 = vpack.c.b16 %v1620, %v1612
    %v2245 = vpack.c.b16 %v1621, %v1613
    %v2246 = vpack.c.b16 %v1630, %v1622
    %v2247 = vpack.c.b16 %v1631, %v1623
    %v2248 = vpack.c.b16 %v1632, %v1624
    %v2249 = vpack.c.b16 %v1633, %v1625
    %v2250 = vpack.c.b16 %v1634, %v1626
    %v2251 = vpack.c.b16 %v1635, %v1627
    %v2252 = vpack.c.b16 %v1636, %v1628
    %v2253 = vpack.c.b16 %v1637, %v1629
    %v2254 = vpack.c.b16 %v1646, %v1638
    %v2255 = vpack.c.b16 %v1647, %v1639
    %v2256 = vpack.c.b16 %v1648, %v1640
    %v2257 = vpack.c.b16 %v1649, %v1641
    %v2258 = vpack.c.b16 %v1650, %v1642
    %v2259 = vpack.c.b16 %v1651, %v1643
    %v2260 = vpack.c.b16 %v1652, %v1644
    %v2261 = vpack.c.b16 %v1653, %v1645
    %v2262 = vpack.c.b16 %v1662, %v1654
    %v2263 = vpack.c.b16 %v1663, %v1655
    %v2264 = vpack.c.b16 %v1664, %v1656
    %v2265 = vpack.c.b16 %v1665, %v1657
    %v2266 = vpack.c.b16 %v1666, %v1658
    %v2267 = vpack.c.b16 %v1667, %v1659
    %v2268 = vpack.c.b16 %v1668, %v1660
    %v2269 = vpack.c.b16 %v1669, %v1661
    %v2270 = vpack.c.b16 %v1678, %v1670
    %v2271 = vpack.c.b16 %v1679, %v1671
    %v2272 = vpack.c.b16 %v1680, %v1672
    %v2273 = vpack.c.b16 %v1681, %v1673
    %v2274 = vpack.c.b16 %v1682, %v1674
    %v2275 = vpack.c.b16 %v1683, %v1675
    %v2276 = vpack.c.b16 %v1684, %v1676
    %v2277 = vpack.c.b16 %v1685, %v1677
    %v2278 = vpack.c.b16 %v1694, %v1686
    %v2279 = vpack.c.b16 %v1695, %v1687
    %v2280 = vpack.c.b16 %v1696, %v1688
    %v2281 = vpack.c.b16 %v1697, %v1689
    %v2282 = vpack.c.b16 %v1698, %v1690
    %v2283 = vpack.c.b16 %v1699, %v1691
    %v2284 = vpack.c.b16 %v1700, %v1692
    %v2285 = vpack.c.b16 %v1701, %v1693
    %v2286 = vpack.c.b16 %v1710, %v1702
    %v2287 = vpack.c.b16 %v1711, %v1703
    %v2288 = vpack.c.b16 %v1712, %v1704
    %v2289 = vpack.c.b16 %v1713, %v1705
    %v2290 = vpack.c.b16 %v1714, %v1706
    %v2291 = vpack.c.b16 %v1715, %v1707
    %v2292 = vpack.c.b16 %v1716, %v1708
    %v2293 = vpack.c.b16 %v1717, %v1709
    %v2294 = vpack.c.b16 %v1726, %v1718
    %v2295 = vpack.c.b16 %v1727, %v1719
    %v2296 = vpack.c.b16 %v1728, %v1720
    %v2297 = vpack.c.b16 %v1729, %v1721
    %v2298 = vpack.c.b16 %v1730, %v1722
    %v2299 = vpack.c.b16 %v1731, %v1723
    %v2300 = vpack.c.b16 %v1732, %v1724
    %v2301 = vpack.c.b16 %v1733, %v1725
    %v2302 = vpack.c.b16 %v1742, %v1734
    %v2303 = vpack.c.b16 %v1743, %v1735
    %v2304 = vpack.c.b16 %v1744, %v1736
    %v2305 = vpack.c.b16 %v1745, %v1737
    %v2306 = vpack.c.b16 %v1746, %v1738
    %v2307 = vpack.c.b16 %v1747, %v1739
    %v2308 = vpack.c.b16 %v1748, %v1740
    %v2309 = vpack.c.b16 %v1749, %v1741
    %v2310 = vpack.c.b16 %v1758, %v1750
    %v2311 = vpack.c.b16 %v1759, %v1751
    %v2312 = vpack.c.b16 %v1760, %v1752
    %v2313 = vpack.c.b16 %v1761, %v1753
    %v2314 = vpack.c.b16 %v1762, %v1754
    %v2315 = vpack.c.b16 %v1763, %v1755
    %v2316 = vpack.c.b16 %v1764, %v1756
    %v2317 = vpack.c.b16 %v1765, %v1757
    %v2318 = vpack.c.b16 %v1774, %v1766
    %v2319 = vpack.c.b16 %v1775, %v1767
    %v2320 = vpack.c.b16 %v1776, %v1768
    %v2321 = vpack.c.b16 %v1777, %v1769
    %v2322 = vpack.c.b16 %v1778, %v1770
    %v2323 = vpack.c.b16 %v1779, %v1771
    %v2324 = vpack.c.b16 %v1780, %v1772
    %v2325 = vpack.c.b16 %v1781, %v1773
    %v2326 = vpack.c.b16 %v1790, %v1782
    %v2327 = vpack.c.b16 %v1791, %v1783
    %v2328 = vpack.c.b16 %v1792, %v1784
    %v2329 = vpack.c.b16 %v1793, %v1785
    %v2330 = vpack.c.b16 %v1794, %v1786
    %v2331 = vpack.c.b16 %v1795, %v1787
    %v2332 = vpack.c.b16 %v1796, %v1788
    %v2333 = vpack.c.b16 %v1797, %v1789
    %v2334 = vpack.c.b16 %v1806, %v1798
    %v2335 = vpack.c.b16 %v1807, %v1799
    %v2336 = vpack.c.b16 %v1808, %v1800
    %v2337 = vpack.c.b16 %v1809, %v1801
    %v2338 = vpack.c.b16 %v1810, %v1802
    %v2339 = vpack.c.b16 %v1811, %v1803
    %v2340 = vpack.c.b16 %v1812, %v1804
    %v2341 = vpack.c.b16 %v1813, %v1805
    %v2342 = vpack.c.b16 %v1822, %v1814
    %v2343 = vpack.c.b16 %v1823, %v1815
    %v2344 = vpack.c.b16 %v1824, %v1816
    %v2345 = vpack.c.b16 %v1825, %v1817
    %v2346 = vpack.c.b16 %v1826, %v1818
    %v2347 = vpack.c.b16 %v1827, %v1819
    %v2348 = vpack.c.b16 %v1828, %v1820
    %v2349 = vpack.c.b16 %v1829, %v1821
    %v2350 = vpack.c.b16 %v1838, %v1830
    %v2351 = vpack.c.b16 %v1839, %v1831
    %v2352 = vpack.c.b16 %v1840, %v1832
    %v2353 = vpack.c.b16 %v1841, %v1833
    %v2354 = vpack.c.b16 %v1842, %v1834
    %v2355 = vpack.c.b16 %v1843, %v1835
    %v2356 = vpack.c.b16 %v1844, %v1836
    %v2357 = vpack.c.b16 %v1845, %v1837
    %v2358 = vpack.c.b16 %v1854, %v1846
    %v2359 = vpack.c.b16 %v1855, %v1847
    %v2360 = vpack.c.b16 %v1856, %v1848
    %v2361 = vpack.c.b16 %v1857, %v1849
    %v2362 = vpack.c.b16 %v1858, %v1850
    %v2363 = vpack.c.b16 %v1859, %v1851
    %v2364 = vpack.c.b16 %v1860, %v1852
    %v2365 = vpack.c.b16 %v1861, %v1853
    %v2366 = vpack.c.b16 %v1870, %v1862
    %v2367 = vpack.c.b16 %v1871, %v1863
    %v2368 = vpack.c.b16 %v1872, %v1864
    %v2369 = vpack.c.b16 %v1873, %v1865
    %v2370 = vpack.c.b16 %v1874, %v1866
    %v2371 = vpack.c.b16 %v1875, %v1867
    %v2372 = vpack.c.b16 %v1876, %v1868
    %v2373 = vpack.c.b16 %v1877, %v1869
    %v2374 = vpack.c.b16 %v1886, %v1878
    %v2375 = vpack.c.b16 %v1887, %v1879
    %v2376 = vpack.c.b16 %v1888, %v1880
    %v2377 = vpack.c.b16 %v1889, %v1881
    %v2378 = vpack.c.b16 %v1890, %v1882
    %v2379 = vpack.c.b16 %v1891, %v1883
    %v2380 = vpack.c.b16 %v1892, %v1884
    %v2381 = vpack.c.b16 %v1893, %v1885
    %v2382 = vpack.c.b16 %v1902, %v1894
    %v2383 = vpack.c.b16 %v1903, %v1895
    %v2384 = vpack.c.b16 %v1904, %v1896
    %v2385 = vpack.c.b16 %v1905, %v1897
    %v2386 = vpack.c.b16 %v1906, %v1898
    %v2387 = vpack.c.b16 %v1907, %v1899
    %v2388 = vpack.c.b16 %v1908, %v1900
    %v2389 = vpack.c.b16 %v1909, %v1901
    %v2390 = vpack.c.b16 %v1918, %v1910
    %v2391 = vpack.c.b16 %v1919, %v1911
    %v2392 = vpack.c.b16 %v1920, %v1912
    %v2393 = vpack.c.b16 %v1921, %v1913
    %v2394 = vpack.c.b16 %v1922, %v1914
    %v2395 = vpack.c.b16 %v1923, %v1915
    %v2396 = vpack.c.b16 %v1924, %v1916
    %v2397 = vpack.c.b16 %v1925, %v1917
    %v2398 = vpack.c.b16 %v1934, %v1926
    %v2399 = vpack.c.b16 %v1935, %v1927
    %v2400 = vpack.c.b16 %v1936, %v1928
    %v2401 = vpack.c.b16 %v1937, %v1929
    %v2402 = vpack.c.b16 %v1938, %v1930
    %v2403 = vpack.c.b16 %v1939, %v1931
    %v2404 = vpack.c.b16 %v1940, %v1932
    %v2405 = vpack.c.b16 %v1941, %v1933
    %v2406 = vpack.c.b16 %v1950, %v1942
    %v2407 = vpack.c.b16 %v1951, %v1943
    %v2408 = vpack.c.b16 %v1952, %v1944
    %v2409 = vpack.c.b16 %v1953, %v1945
    %v2410 = vpack.c.b16 %v1954, %v1946
    %v2411 = vpack.c.b16 %v1955, %v1947
    %v2412 = vpack.c.b16 %v1956, %v1948
    %v2413 = vpack.c.b16 %v1957, %v1949
    %v2414 = vpack.c.b16 %v1966, %v1958
    %v2415 = vpack.c.b16 %v1967, %v1959
    %v2416 = vpack.c.b16 %v1968, %v1960
    %v2417 = vpack.c.b16 %v1969, %v1961
    %v2418 = vpack.c.b16 %v1970, %v1962
    %v2419 = vpack.c.b16 %v1971, %v1963
    %v2420 = vpack.c.b16 %v1972, %v1964
    %v2421 = vpack.c.b16 %v1973, %v1965
    %2870 = vmatpush.bf16.msra.mxu0 %v2030
    %2871 = vmatpush.bf16.msra.mxu0 %v2022
    %2872 = vmatpush.bf16.msra.mxu0 %v2014
    %2873 = vmatpush.bf16.msra.mxu0 %v2006
    %2874 = vmatpush.bf16.msra.mxu0 %v1998
    %2875 = vmatpush.bf16.msra.mxu0 %v1990
    %2876 = vmatpush.bf16.msra.mxu0 %v1982
    %2877 = vmatpush.bf16.msra.mxu0 %v1974
    %2878 = vmatmul.bf16.gmra.mxu0 %v616
    %v2879 = vpop.f32.mrf.mxu0
    %v2880 = vadd.f32 %v589, %v2879
    %v2881 = vpop.f32.mrf.mxu0
    %2882 = vdwg.mxu0
    %2883 = vmatpush.bf16.msra.mxu0 %v2094
    %2884 = vmatpush.bf16.msra.mxu0 %v2086
    %2885 = vmatpush.bf16.msra.mxu0 %v2078
    %2886 = vmatpush.bf16.msra.mxu0 %v2070
    %2887 = vmatpush.bf16.msra.mxu0 %v2062
    %2888 = vmatpush.bf16.msra.mxu0 %v2054
    %2889 = vmatpush.bf16.msra.mxu0 %v2046
    %2890 = vmatpush.bf16.msra.mxu0 %v2038
    %2891 = vmatmul.bf16.gmra.mxu0 %v617
    %v2892 = vpop.f32.mrf.mxu0
    %v2893 = vadd.f32 %v2880, %v2892
    %v2894 = vpop.f32.mrf.mxu0
    %2895 = vdwg.mxu0
    %2896 = vmatpush.bf16.msra.mxu0 %v2158
    %2897 = vmatpush.bf16.msra.mxu0 %v2150
    %2898 = vmatpush.bf16.msra.mxu0 %v2142
    %2899 = vmatpush.bf16.msra.mxu0 %v2134
    %2900 = vmatpush.bf16.msra.mxu0 %v2126
    %2901 = vmatpush.bf16.msra.mxu0 %v2118
    %2902 = vmatpush.bf16.msra.mxu0 %v2110
    %2903 = vmatpush.bf16.msra.mxu0 %v2102
    %2904 = vmatmul.bf16.gmra.mxu0 %v618
    %v2905 = vpop.f32.mrf.mxu0
    %v2906 = vadd.f32 %v2893, %v2905
    %v2907 = vpop.f32.mrf.mxu0
    %2908 = vdwg.mxu0
    %2909 = vmatpush.bf16.msra.mxu0 %v2222
    %2910 = vmatpush.bf16.msra.mxu0 %v2214
    %2911 = vmatpush.bf16.msra.mxu0 %v2206
    %2912 = vmatpush.bf16.msra.mxu0 %v2198
    %2913 = vmatpush.bf16.msra.mxu0 %v2190
    %2914 = vmatpush.bf16.msra.mxu0 %v2182
    %2915 = vmatpush.bf16.msra.mxu0 %v2174
    %2916 = vmatpush.bf16.msra.mxu0 %v2166
    %2917 = vmatmul.bf16.gmra.mxu0 %v619
    %v2918 = vpop.f32.mrf.mxu0
    %v2919 = vadd.f32 %v2906, %v2918
    %v2920 = vpop.f32.mrf.mxu0
    %2921 = vdwg.mxu0
    %2922 = vmatpush.bf16.msra.mxu0 %v2286
    %2923 = vmatpush.bf16.msra.mxu0 %v2278
    %2924 = vmatpush.bf16.msra.mxu0 %v2270
    %2925 = vmatpush.bf16.msra.mxu0 %v2262
    %2926 = vmatpush.bf16.msra.mxu0 %v2254
    %2927 = vmatpush.bf16.msra.mxu0 %v2246
    %2928 = vmatpush.bf16.msra.mxu0 %v2238
    %2929 = vmatpush.bf16.msra.mxu0 %v2230
    %2930 = vmatmul.bf16.gmra.mxu0 %v620
    %v2931 = vpop.f32.mrf.mxu0
    %v2932 = vadd.f32 %v2919, %v2931
    %v2933 = vpop.f32.mrf.mxu0
    %2934 = vdwg.mxu0
    %2935 = vmatpush.bf16.msra.mxu0 %v2350
    %2936 = vmatpush.bf16.msra.mxu0 %v2342
    %2937 = vmatpush.bf16.msra.mxu0 %v2334
    %2938 = vmatpush.bf16.msra.mxu0 %v2326
    %2939 = vmatpush.bf16.msra.mxu0 %v2318
    %2940 = vmatpush.bf16.msra.mxu0 %v2310
    %2941 = vmatpush.bf16.msra.mxu0 %v2302
    %2942 = vmatpush.bf16.msra.mxu0 %v2294
    %2943 = vmatmul.bf16.gmra.mxu0 %v621
    %v2944 = vpop.f32.mrf.mxu0
    %v2945 = vadd.f32 %v2932, %v2944
    %v2946 = vpop.f32.mrf.mxu0
    %2947 = vdwg.mxu0
    %2948 = vmatpush.bf16.msra.mxu0 %v2414
    %2949 = vmatpush.bf16.msra.mxu0 %v2406
    %2950 = vmatpush.bf16.msra.mxu0 %v2398
    %2951 = vmatpush.bf16.msra.mxu0 %v2390
    %2952 = vmatpush.bf16.msra.mxu0 %v2382
    %2953 = vmatpush.bf16.msra.mxu0 %v2374
    %2954 = vmatpush.bf16.msra.mxu0 %v2366
    %2955 = vmatpush.bf16.msra.mxu0 %v2358
    %2956 = vmatmul.bf16.gmra.mxu0 %v622
    %v2957 = vpop.f32.mrf.mxu0
    %v2958 = vadd.f32 %v2945, %v2957
    %v2959 = vpop.f32.mrf.mxu0
    %2960 = vdwg.mxu0
    %2961 = vmatpush.bf16.msra.mxu0 %v2031
    %2962 = vmatpush.bf16.msra.mxu0 %v2023
    %2963 = vmatpush.bf16.msra.mxu0 %v2015
    %2964 = vmatpush.bf16.msra.mxu0 %v2007
    %2965 = vmatpush.bf16.msra.mxu0 %v1999
    %2966 = vmatpush.bf16.msra.mxu0 %v1991
    %2967 = vmatpush.bf16.msra.mxu0 %v1983
    %2968 = vmatpush.bf16.msra.mxu0 %v1975
    %2969 = vmatmul.bf16.gmra.mxu0 %v616
    %v2970 = vpop.f32.mrf.mxu0
    %v2971 = vadd.f32 %v590, %v2970
    %v2972 = vpop.f32.mrf.mxu0
    %2973 = vdwg.mxu0
    %2974 = vmatpush.bf16.msra.mxu0 %v2095
    %2975 = vmatpush.bf16.msra.mxu0 %v2087
    %2976 = vmatpush.bf16.msra.mxu0 %v2079
    %2977 = vmatpush.bf16.msra.mxu0 %v2071
    %2978 = vmatpush.bf16.msra.mxu0 %v2063
    %2979 = vmatpush.bf16.msra.mxu0 %v2055
    %2980 = vmatpush.bf16.msra.mxu0 %v2047
    %2981 = vmatpush.bf16.msra.mxu0 %v2039
    %2982 = vmatmul.bf16.gmra.mxu0 %v617
    %v2983 = vpop.f32.mrf.mxu0
    %v2984 = vadd.f32 %v2971, %v2983
    %v2985 = vpop.f32.mrf.mxu0
    %2986 = vdwg.mxu0
    %2987 = vmatpush.bf16.msra.mxu0 %v2159
    %2988 = vmatpush.bf16.msra.mxu0 %v2151
    %2989 = vmatpush.bf16.msra.mxu0 %v2143
    %2990 = vmatpush.bf16.msra.mxu0 %v2135
    %2991 = vmatpush.bf16.msra.mxu0 %v2127
    %2992 = vmatpush.bf16.msra.mxu0 %v2119
    %2993 = vmatpush.bf16.msra.mxu0 %v2111
    %2994 = vmatpush.bf16.msra.mxu0 %v2103
    %2995 = vmatmul.bf16.gmra.mxu0 %v618
    %v2996 = vpop.f32.mrf.mxu0
    %v2997 = vadd.f32 %v2984, %v2996
    %v2998 = vpop.f32.mrf.mxu0
    %2999 = vdwg.mxu0
    %3000 = vmatpush.bf16.msra.mxu0 %v2223
    %3001 = vmatpush.bf16.msra.mxu0 %v2215
    %3002 = vmatpush.bf16.msra.mxu0 %v2207
    %3003 = vmatpush.bf16.msra.mxu0 %v2199
    %3004 = vmatpush.bf16.msra.mxu0 %v2191
    %3005 = vmatpush.bf16.msra.mxu0 %v2183
    %3006 = vmatpush.bf16.msra.mxu0 %v2175
    %3007 = vmatpush.bf16.msra.mxu0 %v2167
    %3008 = vmatmul.bf16.gmra.mxu0 %v619
    %v3009 = vpop.f32.mrf.mxu0
    %v3010 = vadd.f32 %v2997, %v3009
    %v3011 = vpop.f32.mrf.mxu0
    %3012 = vdwg.mxu0
    %3013 = vmatpush.bf16.msra.mxu0 %v2287
    %3014 = vmatpush.bf16.msra.mxu0 %v2279
    %3015 = vmatpush.bf16.msra.mxu0 %v2271
    %3016 = vmatpush.bf16.msra.mxu0 %v2263
    %3017 = vmatpush.bf16.msra.mxu0 %v2255
    %3018 = vmatpush.bf16.msra.mxu0 %v2247
    %3019 = vmatpush.bf16.msra.mxu0 %v2239
    %3020 = vmatpush.bf16.msra.mxu0 %v2231
    %3021 = vmatmul.bf16.gmra.mxu0 %v620
    %v3022 = vpop.f32.mrf.mxu0
    %v3023 = vadd.f32 %v3010, %v3022
    %v3024 = vpop.f32.mrf.mxu0
    %3025 = vdwg.mxu0
    %3026 = vmatpush.bf16.msra.mxu0 %v2351
    %3027 = vmatpush.bf16.msra.mxu0 %v2343
    %3028 = vmatpush.bf16.msra.mxu0 %v2335
    %3029 = vmatpush.bf16.msra.mxu0 %v2327
    %3030 = vmatpush.bf16.msra.mxu0 %v2319
    %3031 = vmatpush.bf16.msra.mxu0 %v2311
    %3032 = vmatpush.bf16.msra.mxu0 %v2303
    %3033 = vmatpush.bf16.msra.mxu0 %v2295
    %3034 = vmatmul.bf16.gmra.mxu0 %v621
    %v3035 = vpop.f32.mrf.mxu0
    %v3036 = vadd.f32 %v3023, %v3035
    %v3037 = vpop.f32.mrf.mxu0
    %3038 = vdwg.mxu0
    %3039 = vmatpush.bf16.msra.mxu0 %v2415
    %3040 = vmatpush.bf16.msra.mxu0 %v2407
    %3041 = vmatpush.bf16.msra.mxu0 %v2399
    %3042 = vmatpush.bf16.msra.mxu0 %v2391
    %3043 = vmatpush.bf16.msra.mxu0 %v2383
    %3044 = vmatpush.bf16.msra.mxu0 %v2375
    %3045 = vmatpush.bf16.msra.mxu0 %v2367
    %3046 = vmatpush.bf16.msra.mxu0 %v2359
    %3047 = vmatmul.bf16.gmra.mxu0 %v622
    %v3048 = vpop.f32.mrf.mxu0
    %v3049 = vadd.f32 %v3036, %v3048
    %v3050 = vpop.f32.mrf.mxu0
    %3051 = vdwg.mxu0
    %3052 = vmatpush.bf16.msra.mxu0 %v2032
    %3053 = vmatpush.bf16.msra.mxu0 %v2024
    %3054 = vmatpush.bf16.msra.mxu0 %v2016
    %3055 = vmatpush.bf16.msra.mxu0 %v2008
    %3056 = vmatpush.bf16.msra.mxu0 %v2000
    %3057 = vmatpush.bf16.msra.mxu0 %v1992
    %3058 = vmatpush.bf16.msra.mxu0 %v1984
    %3059 = vmatpush.bf16.msra.mxu0 %v1976
    %3060 = vmatmul.bf16.gmra.mxu0 %v616
    %v3061 = vpop.f32.mrf.mxu0
    %v3062 = vadd.f32 %v591, %v3061
    %v3063 = vpop.f32.mrf.mxu0
    %3064 = vdwg.mxu0
    %3065 = vmatpush.bf16.msra.mxu0 %v2096
    %3066 = vmatpush.bf16.msra.mxu0 %v2088
    %3067 = vmatpush.bf16.msra.mxu0 %v2080
    %3068 = vmatpush.bf16.msra.mxu0 %v2072
    %3069 = vmatpush.bf16.msra.mxu0 %v2064
    %3070 = vmatpush.bf16.msra.mxu0 %v2056
    %3071 = vmatpush.bf16.msra.mxu0 %v2048
    %3072 = vmatpush.bf16.msra.mxu0 %v2040
    %3073 = vmatmul.bf16.gmra.mxu0 %v617
    %v3074 = vpop.f32.mrf.mxu0
    %v3075 = vadd.f32 %v3062, %v3074
    %v3076 = vpop.f32.mrf.mxu0
    %3077 = vdwg.mxu0
    %3078 = vmatpush.bf16.msra.mxu0 %v2160
    %3079 = vmatpush.bf16.msra.mxu0 %v2152
    %3080 = vmatpush.bf16.msra.mxu0 %v2144
    %3081 = vmatpush.bf16.msra.mxu0 %v2136
    %3082 = vmatpush.bf16.msra.mxu0 %v2128
    %3083 = vmatpush.bf16.msra.mxu0 %v2120
    %3084 = vmatpush.bf16.msra.mxu0 %v2112
    %3085 = vmatpush.bf16.msra.mxu0 %v2104
    %3086 = vmatmul.bf16.gmra.mxu0 %v618
    %v3087 = vpop.f32.mrf.mxu0
    %v3088 = vadd.f32 %v3075, %v3087
    %v3089 = vpop.f32.mrf.mxu0
    %3090 = vdwg.mxu0
    %3091 = vmatpush.bf16.msra.mxu0 %v2224
    %3092 = vmatpush.bf16.msra.mxu0 %v2216
    %3093 = vmatpush.bf16.msra.mxu0 %v2208
    %3094 = vmatpush.bf16.msra.mxu0 %v2200
    %3095 = vmatpush.bf16.msra.mxu0 %v2192
    %3096 = vmatpush.bf16.msra.mxu0 %v2184
    %3097 = vmatpush.bf16.msra.mxu0 %v2176
    %3098 = vmatpush.bf16.msra.mxu0 %v2168
    %3099 = vmatmul.bf16.gmra.mxu0 %v619
    %v3100 = vpop.f32.mrf.mxu0
    %v3101 = vadd.f32 %v3088, %v3100
    %v3102 = vpop.f32.mrf.mxu0
    %3103 = vdwg.mxu0
    %3104 = vmatpush.bf16.msra.mxu0 %v2288
    %3105 = vmatpush.bf16.msra.mxu0 %v2280
    %3106 = vmatpush.bf16.msra.mxu0 %v2272
    %3107 = vmatpush.bf16.msra.mxu0 %v2264
    %3108 = vmatpush.bf16.msra.mxu0 %v2256
    %3109 = vmatpush.bf16.msra.mxu0 %v2248
    %3110 = vmatpush.bf16.msra.mxu0 %v2240
    %3111 = vmatpush.bf16.msra.mxu0 %v2232
    %3112 = vmatmul.bf16.gmra.mxu0 %v620
    %v3113 = vpop.f32.mrf.mxu0
    %v3114 = vadd.f32 %v3101, %v3113
    %v3115 = vpop.f32.mrf.mxu0
    %3116 = vdwg.mxu0
    %3117 = vmatpush.bf16.msra.mxu0 %v2352
    %3118 = vmatpush.bf16.msra.mxu0 %v2344
    %3119 = vmatpush.bf16.msra.mxu0 %v2336
    %3120 = vmatpush.bf16.msra.mxu0 %v2328
    %3121 = vmatpush.bf16.msra.mxu0 %v2320
    %3122 = vmatpush.bf16.msra.mxu0 %v2312
    %3123 = vmatpush.bf16.msra.mxu0 %v2304
    %3124 = vmatpush.bf16.msra.mxu0 %v2296
    %3125 = vmatmul.bf16.gmra.mxu0 %v621
    %v3126 = vpop.f32.mrf.mxu0
    %v3127 = vadd.f32 %v3114, %v3126
    %v3128 = vpop.f32.mrf.mxu0
    %3129 = vdwg.mxu0
    %3130 = vmatpush.bf16.msra.mxu0 %v2416
    %3131 = vmatpush.bf16.msra.mxu0 %v2408
    %3132 = vmatpush.bf16.msra.mxu0 %v2400
    %3133 = vmatpush.bf16.msra.mxu0 %v2392
    %3134 = vmatpush.bf16.msra.mxu0 %v2384
    %3135 = vmatpush.bf16.msra.mxu0 %v2376
    %3136 = vmatpush.bf16.msra.mxu0 %v2368
    %3137 = vmatpush.bf16.msra.mxu0 %v2360
    %3138 = vmatmul.bf16.gmra.mxu0 %v622
    %v3139 = vpop.f32.mrf.mxu0
    %v3140 = vadd.f32 %v3127, %v3139
    %v3141 = vpop.f32.mrf.mxu0
    %3142 = vdwg.mxu0
    %3143 = vmatpush.bf16.msra.mxu0 %v2033
    %3144 = vmatpush.bf16.msra.mxu0 %v2025
    %3145 = vmatpush.bf16.msra.mxu0 %v2017
    %3146 = vmatpush.bf16.msra.mxu0 %v2009
    %3147 = vmatpush.bf16.msra.mxu0 %v2001
    %3148 = vmatpush.bf16.msra.mxu0 %v1993
    %3149 = vmatpush.bf16.msra.mxu0 %v1985
    %3150 = vmatpush.bf16.msra.mxu0 %v1977
    %3151 = vmatmul.bf16.gmra.mxu0 %v616
    %v3152 = vpop.f32.mrf.mxu0
    %v3153 = vadd.f32 %v592, %v3152
    %v3154 = vpop.f32.mrf.mxu0
    %3155 = vdwg.mxu0
    %3156 = vmatpush.bf16.msra.mxu0 %v2097
    %3157 = vmatpush.bf16.msra.mxu0 %v2089
    %3158 = vmatpush.bf16.msra.mxu0 %v2081
    %3159 = vmatpush.bf16.msra.mxu0 %v2073
    %3160 = vmatpush.bf16.msra.mxu0 %v2065
    %3161 = vmatpush.bf16.msra.mxu0 %v2057
    %3162 = vmatpush.bf16.msra.mxu0 %v2049
    %3163 = vmatpush.bf16.msra.mxu0 %v2041
    %3164 = vmatmul.bf16.gmra.mxu0 %v617
    %v3165 = vpop.f32.mrf.mxu0
    %v3166 = vadd.f32 %v3153, %v3165
    %v3167 = vpop.f32.mrf.mxu0
    %3168 = vdwg.mxu0
    %3169 = vmatpush.bf16.msra.mxu0 %v2161
    %3170 = vmatpush.bf16.msra.mxu0 %v2153
    %3171 = vmatpush.bf16.msra.mxu0 %v2145
    %3172 = vmatpush.bf16.msra.mxu0 %v2137
    %3173 = vmatpush.bf16.msra.mxu0 %v2129
    %3174 = vmatpush.bf16.msra.mxu0 %v2121
    %3175 = vmatpush.bf16.msra.mxu0 %v2113
    %3176 = vmatpush.bf16.msra.mxu0 %v2105
    %3177 = vmatmul.bf16.gmra.mxu0 %v618
    %v3178 = vpop.f32.mrf.mxu0
    %v3179 = vadd.f32 %v3166, %v3178
    %v3180 = vpop.f32.mrf.mxu0
    %3181 = vdwg.mxu0
    %3182 = vmatpush.bf16.msra.mxu0 %v2225
    %3183 = vmatpush.bf16.msra.mxu0 %v2217
    %3184 = vmatpush.bf16.msra.mxu0 %v2209
    %3185 = vmatpush.bf16.msra.mxu0 %v2201
    %3186 = vmatpush.bf16.msra.mxu0 %v2193
    %3187 = vmatpush.bf16.msra.mxu0 %v2185
    %3188 = vmatpush.bf16.msra.mxu0 %v2177
    %3189 = vmatpush.bf16.msra.mxu0 %v2169
    %3190 = vmatmul.bf16.gmra.mxu0 %v619
    %v3191 = vpop.f32.mrf.mxu0
    %v3192 = vadd.f32 %v3179, %v3191
    %v3193 = vpop.f32.mrf.mxu0
    %3194 = vdwg.mxu0
    %3195 = vmatpush.bf16.msra.mxu0 %v2289
    %3196 = vmatpush.bf16.msra.mxu0 %v2281
    %3197 = vmatpush.bf16.msra.mxu0 %v2273
    %3198 = vmatpush.bf16.msra.mxu0 %v2265
    %3199 = vmatpush.bf16.msra.mxu0 %v2257
    %3200 = vmatpush.bf16.msra.mxu0 %v2249
    %3201 = vmatpush.bf16.msra.mxu0 %v2241
    %3202 = vmatpush.bf16.msra.mxu0 %v2233
    %3203 = vmatmul.bf16.gmra.mxu0 %v620
    %v3204 = vpop.f32.mrf.mxu0
    %v3205 = vadd.f32 %v3192, %v3204
    %v3206 = vpop.f32.mrf.mxu0
    %3207 = vdwg.mxu0
    %3208 = vmatpush.bf16.msra.mxu0 %v2353
    %3209 = vmatpush.bf16.msra.mxu0 %v2345
    %3210 = vmatpush.bf16.msra.mxu0 %v2337
    %3211 = vmatpush.bf16.msra.mxu0 %v2329
    %3212 = vmatpush.bf16.msra.mxu0 %v2321
    %3213 = vmatpush.bf16.msra.mxu0 %v2313
    %3214 = vmatpush.bf16.msra.mxu0 %v2305
    %3215 = vmatpush.bf16.msra.mxu0 %v2297
    %3216 = vmatmul.bf16.gmra.mxu0 %v621
    %v3217 = vpop.f32.mrf.mxu0
    %v3218 = vadd.f32 %v3205, %v3217
    %v3219 = vpop.f32.mrf.mxu0
    %3220 = vdwg.mxu0
    %3221 = vmatpush.bf16.msra.mxu0 %v2417
    %3222 = vmatpush.bf16.msra.mxu0 %v2409
    %3223 = vmatpush.bf16.msra.mxu0 %v2401
    %3224 = vmatpush.bf16.msra.mxu0 %v2393
    %3225 = vmatpush.bf16.msra.mxu0 %v2385
    %3226 = vmatpush.bf16.msra.mxu0 %v2377
    %3227 = vmatpush.bf16.msra.mxu0 %v2369
    %3228 = vmatpush.bf16.msra.mxu0 %v2361
    %3229 = vmatmul.bf16.gmra.mxu0 %v622
    %v3230 = vpop.f32.mrf.mxu0
    %v3231 = vadd.f32 %v3218, %v3230
    %v3232 = vpop.f32.mrf.mxu0
    %3233 = vdwg.mxu0
    %3234 = vmatpush.bf16.msra.mxu0 %v2034
    %3235 = vmatpush.bf16.msra.mxu0 %v2026
    %3236 = vmatpush.bf16.msra.mxu0 %v2018
    %3237 = vmatpush.bf16.msra.mxu0 %v2010
    %3238 = vmatpush.bf16.msra.mxu0 %v2002
    %3239 = vmatpush.bf16.msra.mxu0 %v1994
    %3240 = vmatpush.bf16.msra.mxu0 %v1986
    %3241 = vmatpush.bf16.msra.mxu0 %v1978
    %3242 = vmatmul.bf16.gmra.mxu0 %v616
    %v3243 = vpop.f32.mrf.mxu0
    %v3244 = vadd.f32 %v593, %v3243
    %v3245 = vpop.f32.mrf.mxu0
    %3246 = vdwg.mxu0
    %3247 = vmatpush.bf16.msra.mxu0 %v2098
    %3248 = vmatpush.bf16.msra.mxu0 %v2090
    %3249 = vmatpush.bf16.msra.mxu0 %v2082
    %3250 = vmatpush.bf16.msra.mxu0 %v2074
    %3251 = vmatpush.bf16.msra.mxu0 %v2066
    %3252 = vmatpush.bf16.msra.mxu0 %v2058
    %3253 = vmatpush.bf16.msra.mxu0 %v2050
    %3254 = vmatpush.bf16.msra.mxu0 %v2042
    %3255 = vmatmul.bf16.gmra.mxu0 %v617
    %v3256 = vpop.f32.mrf.mxu0
    %v3257 = vadd.f32 %v3244, %v3256
    %v3258 = vpop.f32.mrf.mxu0
    %3259 = vdwg.mxu0
    %3260 = vmatpush.bf16.msra.mxu0 %v2162
    %3261 = vmatpush.bf16.msra.mxu0 %v2154
    %3262 = vmatpush.bf16.msra.mxu0 %v2146
    %3263 = vmatpush.bf16.msra.mxu0 %v2138
    %3264 = vmatpush.bf16.msra.mxu0 %v2130
    %3265 = vmatpush.bf16.msra.mxu0 %v2122
    %3266 = vmatpush.bf16.msra.mxu0 %v2114
    %3267 = vmatpush.bf16.msra.mxu0 %v2106
    %3268 = vmatmul.bf16.gmra.mxu0 %v618
    %v3269 = vpop.f32.mrf.mxu0
    %v3270 = vadd.f32 %v3257, %v3269
    %v3271 = vpop.f32.mrf.mxu0
    %3272 = vdwg.mxu0
    %3273 = vmatpush.bf16.msra.mxu0 %v2226
    %3274 = vmatpush.bf16.msra.mxu0 %v2218
    %3275 = vmatpush.bf16.msra.mxu0 %v2210
    %3276 = vmatpush.bf16.msra.mxu0 %v2202
    %3277 = vmatpush.bf16.msra.mxu0 %v2194
    %3278 = vmatpush.bf16.msra.mxu0 %v2186
    %3279 = vmatpush.bf16.msra.mxu0 %v2178
    %3280 = vmatpush.bf16.msra.mxu0 %v2170
    %3281 = vmatmul.bf16.gmra.mxu0 %v619
    %v3282 = vpop.f32.mrf.mxu0
    %v3283 = vadd.f32 %v3270, %v3282
    %v3284 = vpop.f32.mrf.mxu0
    %3285 = vdwg.mxu0
    %3286 = vmatpush.bf16.msra.mxu0 %v2290
    %3287 = vmatpush.bf16.msra.mxu0 %v2282
    %3288 = vmatpush.bf16.msra.mxu0 %v2274
    %3289 = vmatpush.bf16.msra.mxu0 %v2266
    %3290 = vmatpush.bf16.msra.mxu0 %v2258
    %3291 = vmatpush.bf16.msra.mxu0 %v2250
    %3292 = vmatpush.bf16.msra.mxu0 %v2242
    %3293 = vmatpush.bf16.msra.mxu0 %v2234
    %3294 = vmatmul.bf16.gmra.mxu0 %v620
    %v3295 = vpop.f32.mrf.mxu0
    %v3296 = vadd.f32 %v3283, %v3295
    %v3297 = vpop.f32.mrf.mxu0
    %3298 = vdwg.mxu0
    %3299 = vmatpush.bf16.msra.mxu0 %v2354
    %3300 = vmatpush.bf16.msra.mxu0 %v2346
    %3301 = vmatpush.bf16.msra.mxu0 %v2338
    %3302 = vmatpush.bf16.msra.mxu0 %v2330
    %3303 = vmatpush.bf16.msra.mxu0 %v2322
    %3304 = vmatpush.bf16.msra.mxu0 %v2314
    %3305 = vmatpush.bf16.msra.mxu0 %v2306
    %3306 = vmatpush.bf16.msra.mxu0 %v2298
    %3307 = vmatmul.bf16.gmra.mxu0 %v621
    %v3308 = vpop.f32.mrf.mxu0
    %v3309 = vadd.f32 %v3296, %v3308
    %v3310 = vpop.f32.mrf.mxu0
    %3311 = vdwg.mxu0
    %3312 = vmatpush.bf16.msra.mxu0 %v2418
    %3313 = vmatpush.bf16.msra.mxu0 %v2410
    %3314 = vmatpush.bf16.msra.mxu0 %v2402
    %3315 = vmatpush.bf16.msra.mxu0 %v2394
    %3316 = vmatpush.bf16.msra.mxu0 %v2386
    %3317 = vmatpush.bf16.msra.mxu0 %v2378
    %3318 = vmatpush.bf16.msra.mxu0 %v2370
    %3319 = vmatpush.bf16.msra.mxu0 %v2362
    %3320 = vmatmul.bf16.gmra.mxu0 %v622
    %v3321 = vpop.f32.mrf.mxu0
    %v3322 = vadd.f32 %v3309, %v3321
    %v3323 = vpop.f32.mrf.mxu0
    %3324 = vdwg.mxu0
    %3325 = vmatpush.bf16.msra.mxu0 %v2035
    %3326 = vmatpush.bf16.msra.mxu0 %v2027
    %3327 = vmatpush.bf16.msra.mxu0 %v2019
    %3328 = vmatpush.bf16.msra.mxu0 %v2011
    %3329 = vmatpush.bf16.msra.mxu0 %v2003
    %3330 = vmatpush.bf16.msra.mxu0 %v1995
    %3331 = vmatpush.bf16.msra.mxu0 %v1987
    %3332 = vmatpush.bf16.msra.mxu0 %v1979
    %3333 = vmatmul.bf16.gmra.mxu0 %v616
    %v3334 = vpop.f32.mrf.mxu0
    %v3335 = vadd.f32 %v594, %v3334
    %v3336 = vpop.f32.mrf.mxu0
    %3337 = vdwg.mxu0
    %3338 = vmatpush.bf16.msra.mxu0 %v2099
    %3339 = vmatpush.bf16.msra.mxu0 %v2091
    %3340 = vmatpush.bf16.msra.mxu0 %v2083
    %3341 = vmatpush.bf16.msra.mxu0 %v2075
    %3342 = vmatpush.bf16.msra.mxu0 %v2067
    %3343 = vmatpush.bf16.msra.mxu0 %v2059
    %3344 = vmatpush.bf16.msra.mxu0 %v2051
    %3345 = vmatpush.bf16.msra.mxu0 %v2043
    %3346 = vmatmul.bf16.gmra.mxu0 %v617
    %v3347 = vpop.f32.mrf.mxu0
    %v3348 = vadd.f32 %v3335, %v3347
    %v3349 = vpop.f32.mrf.mxu0
    %3350 = vdwg.mxu0
    %3351 = vmatpush.bf16.msra.mxu0 %v2163
    %3352 = vmatpush.bf16.msra.mxu0 %v2155
    %3353 = vmatpush.bf16.msra.mxu0 %v2147
    %3354 = vmatpush.bf16.msra.mxu0 %v2139
    %3355 = vmatpush.bf16.msra.mxu0 %v2131
    %3356 = vmatpush.bf16.msra.mxu0 %v2123
    %3357 = vmatpush.bf16.msra.mxu0 %v2115
    %3358 = vmatpush.bf16.msra.mxu0 %v2107
    %3359 = vmatmul.bf16.gmra.mxu0 %v618
    %v3360 = vpop.f32.mrf.mxu0
    %v3361 = vadd.f32 %v3348, %v3360
    %v3362 = vpop.f32.mrf.mxu0
    %3363 = vdwg.mxu0
    %3364 = vmatpush.bf16.msra.mxu0 %v2227
    %3365 = vmatpush.bf16.msra.mxu0 %v2219
    %3366 = vmatpush.bf16.msra.mxu0 %v2211
    %3367 = vmatpush.bf16.msra.mxu0 %v2203
    %3368 = vmatpush.bf16.msra.mxu0 %v2195
    %3369 = vmatpush.bf16.msra.mxu0 %v2187
    %3370 = vmatpush.bf16.msra.mxu0 %v2179
    %3371 = vmatpush.bf16.msra.mxu0 %v2171
    %3372 = vmatmul.bf16.gmra.mxu0 %v619
    %v3373 = vpop.f32.mrf.mxu0
    %v3374 = vadd.f32 %v3361, %v3373
    %v3375 = vpop.f32.mrf.mxu0
    %3376 = vdwg.mxu0
    %3377 = vmatpush.bf16.msra.mxu0 %v2291
    %3378 = vmatpush.bf16.msra.mxu0 %v2283
    %3379 = vmatpush.bf16.msra.mxu0 %v2275
    %3380 = vmatpush.bf16.msra.mxu0 %v2267
    %3381 = vmatpush.bf16.msra.mxu0 %v2259
    %3382 = vmatpush.bf16.msra.mxu0 %v2251
    %3383 = vmatpush.bf16.msra.mxu0 %v2243
    %3384 = vmatpush.bf16.msra.mxu0 %v2235
    %3385 = vmatmul.bf16.gmra.mxu0 %v620
    %v3386 = vpop.f32.mrf.mxu0
    %v3387 = vadd.f32 %v3374, %v3386
    %v3388 = vpop.f32.mrf.mxu0
    %3389 = vdwg.mxu0
    %3390 = vmatpush.bf16.msra.mxu0 %v2355
    %3391 = vmatpush.bf16.msra.mxu0 %v2347
    %3392 = vmatpush.bf16.msra.mxu0 %v2339
    %3393 = vmatpush.bf16.msra.mxu0 %v2331
    %3394 = vmatpush.bf16.msra.mxu0 %v2323
    %3395 = vmatpush.bf16.msra.mxu0 %v2315
    %3396 = vmatpush.bf16.msra.mxu0 %v2307
    %3397 = vmatpush.bf16.msra.mxu0 %v2299
    %3398 = vmatmul.bf16.gmra.mxu0 %v621
    %v3399 = vpop.f32.mrf.mxu0
    %v3400 = vadd.f32 %v3387, %v3399
    %v3401 = vpop.f32.mrf.mxu0
    %3402 = vdwg.mxu0
    %3403 = vmatpush.bf16.msra.mxu0 %v2419
    %3404 = vmatpush.bf16.msra.mxu0 %v2411
    %3405 = vmatpush.bf16.msra.mxu0 %v2403
    %3406 = vmatpush.bf16.msra.mxu0 %v2395
    %3407 = vmatpush.bf16.msra.mxu0 %v2387
    %3408 = vmatpush.bf16.msra.mxu0 %v2379
    %3409 = vmatpush.bf16.msra.mxu0 %v2371
    %3410 = vmatpush.bf16.msra.mxu0 %v2363
    %3411 = vmatmul.bf16.gmra.mxu0 %v622
    %v3412 = vpop.f32.mrf.mxu0
    %v3413 = vadd.f32 %v3400, %v3412
    %v3414 = vpop.f32.mrf.mxu0
    %3415 = vdwg.mxu0
    %3416 = vmatpush.bf16.msra.mxu0 %v2036
    %3417 = vmatpush.bf16.msra.mxu0 %v2028
    %3418 = vmatpush.bf16.msra.mxu0 %v2020
    %3419 = vmatpush.bf16.msra.mxu0 %v2012
    %3420 = vmatpush.bf16.msra.mxu0 %v2004
    %3421 = vmatpush.bf16.msra.mxu0 %v1996
    %3422 = vmatpush.bf16.msra.mxu0 %v1988
    %3423 = vmatpush.bf16.msra.mxu0 %v1980
    %3424 = vmatmul.bf16.gmra.mxu0 %v616
    %v3425 = vpop.f32.mrf.mxu0
    %v3426 = vadd.f32 %v595, %v3425
    %v3427 = vpop.f32.mrf.mxu0
    %3428 = vdwg.mxu0
    %3429 = vmatpush.bf16.msra.mxu0 %v2100
    %3430 = vmatpush.bf16.msra.mxu0 %v2092
    %3431 = vmatpush.bf16.msra.mxu0 %v2084
    %3432 = vmatpush.bf16.msra.mxu0 %v2076
    %3433 = vmatpush.bf16.msra.mxu0 %v2068
    %3434 = vmatpush.bf16.msra.mxu0 %v2060
    %3435 = vmatpush.bf16.msra.mxu0 %v2052
    %3436 = vmatpush.bf16.msra.mxu0 %v2044
    %3437 = vmatmul.bf16.gmra.mxu0 %v617
    %v3438 = vpop.f32.mrf.mxu0
    %v3439 = vadd.f32 %v3426, %v3438
    %v3440 = vpop.f32.mrf.mxu0
    %3441 = vdwg.mxu0
    %3442 = vmatpush.bf16.msra.mxu0 %v2164
    %3443 = vmatpush.bf16.msra.mxu0 %v2156
    %3444 = vmatpush.bf16.msra.mxu0 %v2148
    %3445 = vmatpush.bf16.msra.mxu0 %v2140
    %3446 = vmatpush.bf16.msra.mxu0 %v2132
    %3447 = vmatpush.bf16.msra.mxu0 %v2124
    %3448 = vmatpush.bf16.msra.mxu0 %v2116
    %3449 = vmatpush.bf16.msra.mxu0 %v2108
    %3450 = vmatmul.bf16.gmra.mxu0 %v618
    %v3451 = vpop.f32.mrf.mxu0
    %v3452 = vadd.f32 %v3439, %v3451
    %v3453 = vpop.f32.mrf.mxu0
    %3454 = vdwg.mxu0
    %3455 = vmatpush.bf16.msra.mxu0 %v2228
    %3456 = vmatpush.bf16.msra.mxu0 %v2220
    %3457 = vmatpush.bf16.msra.mxu0 %v2212
    %3458 = vmatpush.bf16.msra.mxu0 %v2204
    %3459 = vmatpush.bf16.msra.mxu0 %v2196
    %3460 = vmatpush.bf16.msra.mxu0 %v2188
    %3461 = vmatpush.bf16.msra.mxu0 %v2180
    %3462 = vmatpush.bf16.msra.mxu0 %v2172
    %3463 = vmatmul.bf16.gmra.mxu0 %v619
    %v3464 = vpop.f32.mrf.mxu0
    %v3465 = vadd.f32 %v3452, %v3464
    %v3466 = vpop.f32.mrf.mxu0
    %3467 = vdwg.mxu0
    %3468 = vmatpush.bf16.msra.mxu0 %v2292
    %3469 = vmatpush.bf16.msra.mxu0 %v2284
    %3470 = vmatpush.bf16.msra.mxu0 %v2276
    %3471 = vmatpush.bf16.msra.mxu0 %v2268
    %3472 = vmatpush.bf16.msra.mxu0 %v2260
    %3473 = vmatpush.bf16.msra.mxu0 %v2252
    %3474 = vmatpush.bf16.msra.mxu0 %v2244
    %3475 = vmatpush.bf16.msra.mxu0 %v2236
    %3476 = vmatmul.bf16.gmra.mxu0 %v620
    %v3477 = vpop.f32.mrf.mxu0
    %v3478 = vadd.f32 %v3465, %v3477
    %v3479 = vpop.f32.mrf.mxu0
    %3480 = vdwg.mxu0
    %3481 = vmatpush.bf16.msra.mxu0 %v2356
    %3482 = vmatpush.bf16.msra.mxu0 %v2348
    %3483 = vmatpush.bf16.msra.mxu0 %v2340
    %3484 = vmatpush.bf16.msra.mxu0 %v2332
    %3485 = vmatpush.bf16.msra.mxu0 %v2324
    %3486 = vmatpush.bf16.msra.mxu0 %v2316
    %3487 = vmatpush.bf16.msra.mxu0 %v2308
    %3488 = vmatpush.bf16.msra.mxu0 %v2300
    %3489 = vmatmul.bf16.gmra.mxu0 %v621
    %v3490 = vpop.f32.mrf.mxu0
    %v3491 = vadd.f32 %v3478, %v3490
    %v3492 = vpop.f32.mrf.mxu0
    %3493 = vdwg.mxu0
    %3494 = vmatpush.bf16.msra.mxu0 %v2420
    %3495 = vmatpush.bf16.msra.mxu0 %v2412
    %3496 = vmatpush.bf16.msra.mxu0 %v2404
    %3497 = vmatpush.bf16.msra.mxu0 %v2396
    %3498 = vmatpush.bf16.msra.mxu0 %v2388
    %3499 = vmatpush.bf16.msra.mxu0 %v2380
    %3500 = vmatpush.bf16.msra.mxu0 %v2372
    %3501 = vmatpush.bf16.msra.mxu0 %v2364
    %3502 = vmatmul.bf16.gmra.mxu0 %v622
    %v3503 = vpop.f32.mrf.mxu0
    %v3504 = vadd.f32 %v3491, %v3503
    %v3505 = vpop.f32.mrf.mxu0
    %3506 = vdwg.mxu0
    %3507 = vmatpush.bf16.msra.mxu0 %v2037
    %3508 = vmatpush.bf16.msra.mxu0 %v2029
    %3509 = vmatpush.bf16.msra.mxu0 %v2021
    %3510 = vmatpush.bf16.msra.mxu0 %v2013
    %3511 = vmatpush.bf16.msra.mxu0 %v2005
    %3512 = vmatpush.bf16.msra.mxu0 %v1997
    %3513 = vmatpush.bf16.msra.mxu0 %v1989
    %3514 = vmatpush.bf16.msra.mxu0 %v1981
    %3515 = vmatmul.bf16.gmra.mxu0 %v616
    %v3516 = vpop.f32.mrf.mxu0
    %v3517 = vadd.f32 %v596, %v3516
    %v3518 = vpop.f32.mrf.mxu0
    %3519 = vdwg.mxu0
    %3520 = vmatpush.bf16.msra.mxu0 %v2101
    %3521 = vmatpush.bf16.msra.mxu0 %v2093
    %3522 = vmatpush.bf16.msra.mxu0 %v2085
    %3523 = vmatpush.bf16.msra.mxu0 %v2077
    %3524 = vmatpush.bf16.msra.mxu0 %v2069
    %3525 = vmatpush.bf16.msra.mxu0 %v2061
    %3526 = vmatpush.bf16.msra.mxu0 %v2053
    %3527 = vmatpush.bf16.msra.mxu0 %v2045
    %3528 = vmatmul.bf16.gmra.mxu0 %v617
    %v3529 = vpop.f32.mrf.mxu0
    %v3530 = vadd.f32 %v3517, %v3529
    %v3531 = vpop.f32.mrf.mxu0
    %3532 = vdwg.mxu0
    %3533 = vmatpush.bf16.msra.mxu0 %v2165
    %3534 = vmatpush.bf16.msra.mxu0 %v2157
    %3535 = vmatpush.bf16.msra.mxu0 %v2149
    %3536 = vmatpush.bf16.msra.mxu0 %v2141
    %3537 = vmatpush.bf16.msra.mxu0 %v2133
    %3538 = vmatpush.bf16.msra.mxu0 %v2125
    %3539 = vmatpush.bf16.msra.mxu0 %v2117
    %3540 = vmatpush.bf16.msra.mxu0 %v2109
    %3541 = vmatmul.bf16.gmra.mxu0 %v618
    %v3542 = vpop.f32.mrf.mxu0
    %v3543 = vadd.f32 %v3530, %v3542
    %v3544 = vpop.f32.mrf.mxu0
    %3545 = vdwg.mxu0
    %3546 = vmatpush.bf16.msra.mxu0 %v2229
    %3547 = vmatpush.bf16.msra.mxu0 %v2221
    %3548 = vmatpush.bf16.msra.mxu0 %v2213
    %3549 = vmatpush.bf16.msra.mxu0 %v2205
    %3550 = vmatpush.bf16.msra.mxu0 %v2197
    %3551 = vmatpush.bf16.msra.mxu0 %v2189
    %3552 = vmatpush.bf16.msra.mxu0 %v2181
    %3553 = vmatpush.bf16.msra.mxu0 %v2173
    %3554 = vmatmul.bf16.gmra.mxu0 %v619
    %v3555 = vpop.f32.mrf.mxu0
    %v3556 = vadd.f32 %v3543, %v3555
    %v3557 = vpop.f32.mrf.mxu0
    %3558 = vdwg.mxu0
    %3559 = vmatpush.bf16.msra.mxu0 %v2293
    %3560 = vmatpush.bf16.msra.mxu0 %v2285
    %3561 = vmatpush.bf16.msra.mxu0 %v2277
    %3562 = vmatpush.bf16.msra.mxu0 %v2269
    %3563 = vmatpush.bf16.msra.mxu0 %v2261
    %3564 = vmatpush.bf16.msra.mxu0 %v2253
    %3565 = vmatpush.bf16.msra.mxu0 %v2245
    %3566 = vmatpush.bf16.msra.mxu0 %v2237
    %3567 = vmatmul.bf16.gmra.mxu0 %v620
    %v3568 = vpop.f32.mrf.mxu0
    %v3569 = vadd.f32 %v3556, %v3568
    %v3570 = vpop.f32.mrf.mxu0
    %3571 = vdwg.mxu0
    %3572 = vmatpush.bf16.msra.mxu0 %v2357
    %3573 = vmatpush.bf16.msra.mxu0 %v2349
    %3574 = vmatpush.bf16.msra.mxu0 %v2341
    %3575 = vmatpush.bf16.msra.mxu0 %v2333
    %3576 = vmatpush.bf16.msra.mxu0 %v2325
    %3577 = vmatpush.bf16.msra.mxu0 %v2317
    %3578 = vmatpush.bf16.msra.mxu0 %v2309
    %3579 = vmatpush.bf16.msra.mxu0 %v2301
    %3580 = vmatmul.bf16.gmra.mxu0 %v621
    %v3581 = vpop.f32.mrf.mxu0
    %v3582 = vadd.f32 %v3569, %v3581
    %v3583 = vpop.f32.mrf.mxu0
    %3584 = vdwg.mxu0
    %3585 = vmatpush.bf16.msra.mxu0 %v2421
    %3586 = vmatpush.bf16.msra.mxu0 %v2413
    %3587 = vmatpush.bf16.msra.mxu0 %v2405
    %3588 = vmatpush.bf16.msra.mxu0 %v2397
    %3589 = vmatpush.bf16.msra.mxu0 %v2389
    %3590 = vmatpush.bf16.msra.mxu0 %v2381
    %3591 = vmatpush.bf16.msra.mxu0 %v2373
    %3592 = vmatpush.bf16.msra.mxu0 %v2365
    %3593 = vmatmul.bf16.gmra.mxu0 %v622
    %v3594 = vpop.f32.mrf.mxu0
    %v3595 = vadd.f32 %v3582, %v3594
    %v3596 = vpop.f32.mrf.mxu0
    %3597 = vdwg.mxu0
    %v3598 = vmax.f32 %v2958, 0.0
    %v3599 = vmax.f32 %v3049, 0.0
    %v3600 = vmax.f32 %v3140, 0.0
    %v3601 = vmax.f32 %v3231, 0.0
    %v3602 = vmax.f32 %v3322, 0.0
    %v3603 = vmax.f32 %v3413, 0.0
    %v3604 = vmax.f32 %v3504, 0.0
    %v3605 = vmax.f32 %v3595, 0.0
    %v3606 = vpack.c.bf16 %v3598, %v3598
    %v3607 = vpack.c.bf16 %v3599, %v3599
    %v3608 = vpack.c.bf16 %v3600, %v3600
    %v3609 = vpack.c.bf16 %v3601, %v3601
    %v3610 = vpack.c.bf16 %v3602, %v3602
    %v3611 = vpack.c.bf16 %v3603, %v3603
    %v3612 = vpack.c.bf16 %v3604, %v3604
    %v3613 = vpack.c.bf16 %v3605, %v3605
    %v3614 = vld [vmem:[#allocation7] sm:$0xff]
    %v3615 = vld [vmem:[#allocation7 + $0x8] sm:$0xff]
    %v3616 = vld [vmem:[#allocation7 + $0x10] sm:$0xff]
    %v3617 = vld [vmem:[#allocation7 + $0x18] sm:$0xff]
    %v3618 = vld [vmem:[#allocation7 + $0x20] sm:$0xff]
    %v3619 = vld [vmem:[#allocation7 + $0x28] sm:$0xff]
    %v3620 = vld [vmem:[#allocation7 + $0x30] sm:$0xff]
    %v3621 = vld [vmem:[#allocation7 + $0x38] sm:$0xff]
    %v3622 = vld [vmem:[#allocation7 + $0x40] sm:$0xff]
    %v3623 = vld [vmem:[#allocation7 + $0x48] sm:$0xff]
    %v3624 = vld [vmem:[#allocation7 + $0x50] sm:$0xff]
    %v3625 = vld [vmem:[#allocation7 + $0x58] sm:$0xff]
    %v3626 = vld [vmem:[#allocation7 + $0x60] sm:$0xff]
    %v3627 = vld [vmem:[#allocation7 + $0x68] sm:$0xff]
    %v3628 = vld [vmem:[#allocation7 + $0x70] sm:$0xff]
    %v3629 = vld [vmem:[#allocation7 + $0x78] sm:$0xff]
    %v3630 = vld [vmem:[#allocation7 + $0x80] sm:$0xff]
    %v3631 = vld [vmem:[#allocation7 + $0x88] sm:$0xff]
    %v3632 = vld [vmem:[#allocation7 + $0x90] sm:$0xff]
    %v3633 = vld [vmem:[#allocation7 + $0x98] sm:$0xff]
    %v3634 = vld [vmem:[#allocation7 + $0xa0] sm:$0xff]
    %v3635 = vld [vmem:[#allocation7 + $0xa8] sm:$0xff]
    %v3636 = vld [vmem:[#allocation7 + $0xb0] sm:$0xff]
    %v3637 = vld [vmem:[#allocation7 + $0xb8] sm:$0xff]
    %v3638 = vld [vmem:[#allocation7 + $0xc0] sm:$0xff]
    %v3639 = vld [vmem:[#allocation7 + $0xc8] sm:$0xff]
    %v3640 = vld [vmem:[#allocation7 + $0xd0] sm:$0xff]
    %v3641 = vld [vmem:[#allocation7 + $0xd8] sm:$0xff]
    %v3642 = vld [vmem:[#allocation7 + $0xe0] sm:$0xff]
    %v3643 = vld [vmem:[#allocation7 + $0xe8] sm:$0xff]
    %v3644 = vld [vmem:[#allocation7 + $0xf0] sm:$0xff]
    %v3645 = vld [vmem:[#allocation7 + $0xf8] sm:$0xff]
    %v3646 = vld [vmem:[#allocation7 + $0x100] sm:$0xff]
    %v3647 = vld [vmem:[#allocation7 + $0x108] sm:$0xff]
    %v3648 = vld [vmem:[#allocation7 + $0x110] sm:$0xff]
    %v3649 = vld [vmem:[#allocation7 + $0x118] sm:$0xff]
    %v3650 = vld [vmem:[#allocation7 + $0x120] sm:$0xff]
    %v3651 = vld [vmem:[#allocation7 + $0x128] sm:$0xff]
    %v3652 = vld [vmem:[#allocation7 + $0x130] sm:$0xff]
    %v3653 = vld [vmem:[#allocation7 + $0x138] sm:$0xff]
    %v3654 = vld [vmem:[#allocation7 + $0x140] sm:$0xff]
    %v3655 = vld [vmem:[#allocation7 + $0x148] sm:$0xff]
    %v3656 = vld [vmem:[#allocation7 + $0x150] sm:$0xff]
    %v3657 = vld [vmem:[#allocation7 + $0x158] sm:$0xff]
    %v3658 = vld [vmem:[#allocation7 + $0x160] sm:$0xff]
    %v3659 = vld [vmem:[#allocation7 + $0x168] sm:$0xff]
    %v3660 = vld [vmem:[#allocation7 + $0x170] sm:$0xff]
    %v3661 = vld [vmem:[#allocation7 + $0x178] sm:$0xff]
    %v3662 = vld [vmem:[#allocation7 + $0x180] sm:$0xff]
    %v3663 = vld [vmem:[#allocation7 + $0x188] sm:$0xff]
    %v3664 = vld [vmem:[#allocation7 + $0x190] sm:$0xff]
    %v3665 = vld [vmem:[#allocation7 + $0x198] sm:$0xff]
    %v3666 = vld [vmem:[#allocation7 + $0x1a0] sm:$0xff]
    %v3667 = vld [vmem:[#allocation7 + $0x1a8] sm:$0xff]
    %v3668 = vld [vmem:[#allocation7 + $0x1b0] sm:$0xff]
    %v3669 = vld [vmem:[#allocation7 + $0x1b8] sm:$0xff]
    %v3670 = vld [vmem:[#allocation7 + $0x1c0] sm:$0xff]
    %v3671 = vld [vmem:[#allocation7 + $0x1c8] sm:$0xff]
    %v3672 = vld [vmem:[#allocation7 + $0x1d0] sm:$0xff]
    %v3673 = vld [vmem:[#allocation7 + $0x1d8] sm:$0xff]
    %v3674 = vld [vmem:[#allocation7 + $0x1e0] sm:$0xff]
    %v3675 = vld [vmem:[#allocation7 + $0x1e8] sm:$0xff]
    %v3676 = vld [vmem:[#allocation7 + $0x1f0] sm:$0xff]
    %v3677 = vld [vmem:[#allocation7 + $0x1f8] sm:$0xff]
    %v3678 = vld [vmem:[#allocation7 + $0x200] sm:$0xff]
    %v3679 = vld [vmem:[#allocation7 + $0x208] sm:$0xff]
    %v3680 = vld [vmem:[#allocation7 + $0x210] sm:$0xff]
    %v3681 = vld [vmem:[#allocation7 + $0x218] sm:$0xff]
    %v3682 = vld [vmem:[#allocation7 + $0x220] sm:$0xff]
    %v3683 = vld [vmem:[#allocation7 + $0x228] sm:$0xff]
    %v3684 = vld [vmem:[#allocation7 + $0x230] sm:$0xff]
    %v3685 = vld [vmem:[#allocation7 + $0x238] sm:$0xff]
    %v3686 = vld [vmem:[#allocation7 + $0x240] sm:$0xff]
    %v3687 = vld [vmem:[#allocation7 + $0x248] sm:$0xff]
    %v3688 = vld [vmem:[#allocation7 + $0x250] sm:$0xff]
    %v3689 = vld [vmem:[#allocation7 + $0x258] sm:$0xff]
    %v3690 = vld [vmem:[#allocation7 + $0x260] sm:$0xff]
    %v3691 = vld [vmem:[#allocation7 + $0x268] sm:$0xff]
    %v3692 = vld [vmem:[#allocation7 + $0x270] sm:$0xff]
    %v3693 = vld [vmem:[#allocation7 + $0x278] sm:$0xff]
    %v3694 = vld [vmem:[#allocation7 + $0x280] sm:$0xff]
    %v3695 = vld [vmem:[#allocation7 + $0x288] sm:$0xff]
    %v3696 = vld [vmem:[#allocation7 + $0x290] sm:$0xff]
    %v3697 = vld [vmem:[#allocation7 + $0x298] sm:$0xff]
    %v3698 = vld [vmem:[#allocation7 + $0x2a0] sm:$0xff]
    %v3699 = vld [vmem:[#allocation7 + $0x2a8] sm:$0xff]
    %v3700 = vld [vmem:[#allocation7 + $0x2b0] sm:$0xff]
    %v3701 = vld [vmem:[#allocation7 + $0x2b8] sm:$0xff]
    %v3702 = vld [vmem:[#allocation7 + $0x2c0] sm:$0xff]
    %v3703 = vld [vmem:[#allocation7 + $0x2c8] sm:$0xff]
    %v3704 = vld [vmem:[#allocation7 + $0x2d0] sm:$0xff]
    %v3705 = vld [vmem:[#allocation7 + $0x2d8] sm:$0xff]
    %v3706 = vld [vmem:[#allocation7 + $0x2e0] sm:$0xff]
    %v3707 = vld [vmem:[#allocation7 + $0x2e8] sm:$0xff]
    %v3708 = vld [vmem:[#allocation7 + $0x2f0] sm:$0xff]
    %v3709 = vld [vmem:[#allocation7 + $0x2f8] sm:$0xff]
    %v3710 = vld [vmem:[#allocation7 + $0x300] sm:$0xff]
    %v3711 = vld [vmem:[#allocation7 + $0x308] sm:$0xff]
    %v3712 = vld [vmem:[#allocation7 + $0x310] sm:$0xff]
    %v3713 = vld [vmem:[#allocation7 + $0x318] sm:$0xff]
    %v3714 = vld [vmem:[#allocation7 + $0x320] sm:$0xff]
    %v3715 = vld [vmem:[#allocation7 + $0x328] sm:$0xff]
    %v3716 = vld [vmem:[#allocation7 + $0x330] sm:$0xff]
    %v3717 = vld [vmem:[#allocation7 + $0x338] sm:$0xff]
    %v3718 = vld [vmem:[#allocation7 + $0x340] sm:$0xff]
    %v3719 = vld [vmem:[#allocation7 + $0x348] sm:$0xff]
    %v3720 = vld [vmem:[#allocation7 + $0x350] sm:$0xff]
    %v3721 = vld [vmem:[#allocation7 + $0x358] sm:$0xff]
    %v3722 = vld [vmem:[#allocation7 + $0x360] sm:$0xff]
    %v3723 = vld [vmem:[#allocation7 + $0x368] sm:$0xff]
    %v3724 = vld [vmem:[#allocation7 + $0x370] sm:$0xff]
    %v3725 = vld [vmem:[#allocation7 + $0x378] sm:$0xff]
    %v3726 = vld [vmem:[#allocation7 + $0x380] sm:$0xff]
    %v3727 = vld [vmem:[#allocation7 + $0x388] sm:$0xff]
    %v3728 = vld [vmem:[#allocation7 + $0x390] sm:$0xff]
    %v3729 = vld [vmem:[#allocation7 + $0x398] sm:$0xff]
    %v3730 = vld [vmem:[#allocation7 + $0x3a0] sm:$0xff]
    %v3731 = vld [vmem:[#allocation7 + $0x3a8] sm:$0xff]
    %v3732 = vld [vmem:[#allocation7 + $0x3b0] sm:$0xff]
    %v3733 = vld [vmem:[#allocation7 + $0x3b8] sm:$0xff]
    %v3734 = vld [vmem:[#allocation7 + $0x3c0] sm:$0xff]
    %v3735 = vld [vmem:[#allocation7 + $0x3c8] sm:$0xff]
    %v3736 = vld [vmem:[#allocation7 + $0x3d0] sm:$0xff]
    %v3737 = vld [vmem:[#allocation7 + $0x3d8] sm:$0xff]
    %v3738 = vld [vmem:[#allocation7 + $0x3e0] sm:$0xff]
    %v3739 = vld [vmem:[#allocation7 + $0x3e8] sm:$0xff]
    %v3740 = vld [vmem:[#allocation7 + $0x3f0] sm:$0xff]
    %v3741 = vld [vmem:[#allocation7 + $0x3f8] sm:$0xff]
    %v3742 = vld [vmem:[#allocation7 + $0x400] sm:$0xff]
    %v3743 = vld [vmem:[#allocation7 + $0x408] sm:$0xff]
    %v3744 = vld [vmem:[#allocation7 + $0x410] sm:$0xff]
    %v3745 = vld [vmem:[#allocation7 + $0x418] sm:$0xff]
    %v3746 = vld [vmem:[#allocation7 + $0x420] sm:$0xff]
    %v3747 = vld [vmem:[#allocation7 + $0x428] sm:$0xff]
    %v3748 = vld [vmem:[#allocation7 + $0x430] sm:$0xff]
    %v3749 = vld [vmem:[#allocation7 + $0x438] sm:$0xff]
    %v3750 = vld [vmem:[#allocation7 + $0x440] sm:$0xff]
    %v3751 = vld [vmem:[#allocation7 + $0x448] sm:$0xff]
    %v3752 = vld [vmem:[#allocation7 + $0x450] sm:$0xff]
    %v3753 = vld [vmem:[#allocation7 + $0x458] sm:$0xff]
    %v3754 = vld [vmem:[#allocation7 + $0x460] sm:$0xff]
    %v3755 = vld [vmem:[#allocation7 + $0x468] sm:$0xff]
    %v3756 = vld [vmem:[#allocation7 + $0x470] sm:$0xff]
    %v3757 = vld [vmem:[#allocation7 + $0x478] sm:$0xff]
    %v3758 = vld [vmem:[#allocation7 + $0x480] sm:$0xff]
    %v3759 = vld [vmem:[#allocation7 + $0x488] sm:$0xff]
    %v3760 = vld [vmem:[#allocation7 + $0x490] sm:$0xff]
    %v3761 = vld [vmem:[#allocation7 + $0x498] sm:$0xff]
    %v3762 = vld [vmem:[#allocation7 + $0x4a0] sm:$0xff]
    %v3763 = vld [vmem:[#allocation7 + $0x4a8] sm:$0xff]
    %v3764 = vld [vmem:[#allocation7 + $0x4b0] sm:$0xff]
    %v3765 = vld [vmem:[#allocation7 + $0x4b8] sm:$0xff]
    %v3766 = vld [vmem:[#allocation7 + $0x4c0] sm:$0xff]
    %v3767 = vld [vmem:[#allocation7 + $0x4c8] sm:$0xff]
    %v3768 = vld [vmem:[#allocation7 + $0x4d0] sm:$0xff]
    %v3769 = vld [vmem:[#allocation7 + $0x4d8] sm:$0xff]
    %v3770 = vld [vmem:[#allocation7 + $0x4e0] sm:$0xff]
    %v3771 = vld [vmem:[#allocation7 + $0x4e8] sm:$0xff]
    %v3772 = vld [vmem:[#allocation7 + $0x4f0] sm:$0xff]
    %v3773 = vld [vmem:[#allocation7 + $0x4f8] sm:$0xff]
    %v3774 = vld [vmem:[#allocation7 + $0x500] sm:$0xff]
    %v3775 = vld [vmem:[#allocation7 + $0x508] sm:$0xff]
    %v3776 = vld [vmem:[#allocation7 + $0x510] sm:$0xff]
    %v3777 = vld [vmem:[#allocation7 + $0x518] sm:$0xff]
    %v3778 = vld [vmem:[#allocation7 + $0x520] sm:$0xff]
    %v3779 = vld [vmem:[#allocation7 + $0x528] sm:$0xff]
    %v3780 = vld [vmem:[#allocation7 + $0x530] sm:$0xff]
    %v3781 = vld [vmem:[#allocation7 + $0x538] sm:$0xff]
    %v3782 = vld [vmem:[#allocation7 + $0x540] sm:$0xff]
    %v3783 = vld [vmem:[#allocation7 + $0x548] sm:$0xff]
    %v3784 = vld [vmem:[#allocation7 + $0x550] sm:$0xff]
    %v3785 = vld [vmem:[#allocation7 + $0x558] sm:$0xff]
    %v3786 = vld [vmem:[#allocation7 + $0x560] sm:$0xff]
    %v3787 = vld [vmem:[#allocation7 + $0x568] sm:$0xff]
    %v3788 = vld [vmem:[#allocation7 + $0x570] sm:$0xff]
    %v3789 = vld [vmem:[#allocation7 + $0x578] sm:$0xff]
    %v3790 = vld [vmem:[#allocation7 + $0x580] sm:$0xff]
    %v3791 = vld [vmem:[#allocation7 + $0x588] sm:$0xff]
    %v3792 = vld [vmem:[#allocation7 + $0x590] sm:$0xff]
    %v3793 = vld [vmem:[#allocation7 + $0x598] sm:$0xff]
    %v3794 = vld [vmem:[#allocation7 + $0x5a0] sm:$0xff]
    %v3795 = vld [vmem:[#allocation7 + $0x5a8] sm:$0xff]
    %v3796 = vld [vmem:[#allocation7 + $0x5b0] sm:$0xff]
    %v3797 = vld [vmem:[#allocation7 + $0x5b8] sm:$0xff]
    %v3798 = vld [vmem:[#allocation7 + $0x5c0] sm:$0xff]
    %v3799 = vld [vmem:[#allocation7 + $0x5c8] sm:$0xff]
    %v3800 = vld [vmem:[#allocation7 + $0x5d0] sm:$0xff]
    %v3801 = vld [vmem:[#allocation7 + $0x5d8] sm:$0xff]
    %v3802 = vld [vmem:[#allocation7 + $0x5e0] sm:$0xff]
    %v3803 = vld [vmem:[#allocation7 + $0x5e8] sm:$0xff]
    %v3804 = vld [vmem:[#allocation7 + $0x5f0] sm:$0xff]
    %v3805 = vld [vmem:[#allocation7 + $0x5f8] sm:$0xff]
    %v3806 = vld [vmem:[#allocation7 + $0x600] sm:$0xff]
    %v3807 = vld [vmem:[#allocation7 + $0x608] sm:$0xff]
    %v3808 = vld [vmem:[#allocation7 + $0x610] sm:$0xff]
    %v3809 = vld [vmem:[#allocation7 + $0x618] sm:$0xff]
    %v3810 = vld [vmem:[#allocation7 + $0x620] sm:$0xff]
    %v3811 = vld [vmem:[#allocation7 + $0x628] sm:$0xff]
    %v3812 = vld [vmem:[#allocation7 + $0x630] sm:$0xff]
    %v3813 = vld [vmem:[#allocation7 + $0x638] sm:$0xff]
    %v3814 = vld [vmem:[#allocation7 + $0x640] sm:$0xff]
    %v3815 = vld [vmem:[#allocation7 + $0x648] sm:$0xff]
    %v3816 = vld [vmem:[#allocation7 + $0x650] sm:$0xff]
    %v3817 = vld [vmem:[#allocation7 + $0x658] sm:$0xff]
    %v3818 = vld [vmem:[#allocation7 + $0x660] sm:$0xff]
    %v3819 = vld [vmem:[#allocation7 + $0x668] sm:$0xff]
    %v3820 = vld [vmem:[#allocation7 + $0x670] sm:$0xff]
    %v3821 = vld [vmem:[#allocation7 + $0x678] sm:$0xff]
    %v3822 = vld [vmem:[#allocation7 + $0x680] sm:$0xff]
    %v3823 = vld [vmem:[#allocation7 + $0x688] sm:$0xff]
    %v3824 = vld [vmem:[#allocation7 + $0x690] sm:$0xff]
    %v3825 = vld [vmem:[#allocation7 + $0x698] sm:$0xff]
    %v3826 = vld [vmem:[#allocation7 + $0x6a0] sm:$0xff]
    %v3827 = vld [vmem:[#allocation7 + $0x6a8] sm:$0xff]
    %v3828 = vld [vmem:[#allocation7 + $0x6b0] sm:$0xff]
    %v3829 = vld [vmem:[#allocation7 + $0x6b8] sm:$0xff]
    %v3830 = vld [vmem:[#allocation7 + $0x6c0] sm:$0xff]
    %v3831 = vld [vmem:[#allocation7 + $0x6c8] sm:$0xff]
    %v3832 = vld [vmem:[#allocation7 + $0x6d0] sm:$0xff]
    %v3833 = vld [vmem:[#allocation7 + $0x6d8] sm:$0xff]
    %v3834 = vld [vmem:[#allocation7 + $0x6e0] sm:$0xff]
    %v3835 = vld [vmem:[#allocation7 + $0x6e8] sm:$0xff]
    %v3836 = vld [vmem:[#allocation7 + $0x6f0] sm:$0xff]
    %v3837 = vld [vmem:[#allocation7 + $0x6f8] sm:$0xff]
    %v3838 = vld [vmem:[#allocation7 + $0x700] sm:$0xff]
    %v3839 = vld [vmem:[#allocation7 + $0x708] sm:$0xff]
    %v3840 = vld [vmem:[#allocation7 + $0x710] sm:$0xff]
    %v3841 = vld [vmem:[#allocation7 + $0x718] sm:$0xff]
    %v3842 = vld [vmem:[#allocation7 + $0x720] sm:$0xff]
    %v3843 = vld [vmem:[#allocation7 + $0x728] sm:$0xff]
    %v3844 = vld [vmem:[#allocation7 + $0x730] sm:$0xff]
    %v3845 = vld [vmem:[#allocation7 + $0x738] sm:$0xff]
    %v3846 = vld [vmem:[#allocation7 + $0x740] sm:$0xff]
    %v3847 = vld [vmem:[#allocation7 + $0x748] sm:$0xff]
    %v3848 = vld [vmem:[#allocation7 + $0x750] sm:$0xff]
    %v3849 = vld [vmem:[#allocation7 + $0x758] sm:$0xff]
    %v3850 = vld [vmem:[#allocation7 + $0x760] sm:$0xff]
    %v3851 = vld [vmem:[#allocation7 + $0x768] sm:$0xff]
    %v3852 = vld [vmem:[#allocation7 + $0x770] sm:$0xff]
    %v3853 = vld [vmem:[#allocation7 + $0x778] sm:$0xff]
    %v3854 = vld [vmem:[#allocation7 + $0x780] sm:$0xff]
    %v3855 = vld [vmem:[#allocation7 + $0x788] sm:$0xff]
    %v3856 = vld [vmem:[#allocation7 + $0x790] sm:$0xff]
    %v3857 = vld [vmem:[#allocation7 + $0x798] sm:$0xff]
    %v3858 = vld [vmem:[#allocation7 + $0x7a0] sm:$0xff]
    %v3859 = vld [vmem:[#allocation7 + $0x7a8] sm:$0xff]
    %v3860 = vld [vmem:[#allocation7 + $0x7b0] sm:$0xff]
    %v3861 = vld [vmem:[#allocation7 + $0x7b8] sm:$0xff]
    %v3862 = vld [vmem:[#allocation7 + $0x7c0] sm:$0xff]
    %v3863 = vld [vmem:[#allocation7 + $0x7c8] sm:$0xff]
    %v3864 = vld [vmem:[#allocation7 + $0x7d0] sm:$0xff]
    %v3865 = vld [vmem:[#allocation7 + $0x7d8] sm:$0xff]
    %v3866 = vld [vmem:[#allocation7 + $0x7e0] sm:$0xff]
    %v3867 = vld [vmem:[#allocation7 + $0x7e8] sm:$0xff]
    %v3868 = vld [vmem:[#allocation7 + $0x7f0] sm:$0xff]
    %v3869 = vld [vmem:[#allocation7 + $0x7f8] sm:$0xff]
    %v3870 = vld [vmem:[#allocation8] sm:$0xf]
    %v3872 = vperm.slane %v3870, 0
    %v3873 = vperm.slane %v3870, 1
    %v3874 = vperm.slane %v3870, 2
    %v3875 = vperm.slane %v3870, 3
    %v4136 = vunpack.c.l.b16 %v3614
    %v4137 = vunpack.c.h.b16 %v3614
    %v4138 = vunpack.c.l.b16 %v3615
    %v4139 = vunpack.c.h.b16 %v3615
    %v4140 = vunpack.c.l.b16 %v3616
    %v4141 = vunpack.c.h.b16 %v3616
    %v4142 = vunpack.c.l.b16 %v3617
    %v4143 = vunpack.c.h.b16 %v3617
    %v4144 = vunpack.c.l.b16 %v3618
    %v4145 = vunpack.c.h.b16 %v3618
    %v4146 = vunpack.c.l.b16 %v3619
    %v4147 = vunpack.c.h.b16 %v3619
    %v4148 = vunpack.c.l.b16 %v3620
    %v4149 = vunpack.c.h.b16 %v3620
    %v4150 = vunpack.c.l.b16 %v3621
    %v4151 = vunpack.c.h.b16 %v3621
    %v4152 = vunpack.c.l.b16 %v3622
    %v4153 = vunpack.c.h.b16 %v3622
    %v4154 = vunpack.c.l.b16 %v3623
    %v4155 = vunpack.c.h.b16 %v3623
    %v4156 = vunpack.c.l.b16 %v3624
    %v4157 = vunpack.c.h.b16 %v3624
    %v4158 = vunpack.c.l.b16 %v3625
    %v4159 = vunpack.c.h.b16 %v3625
    %v4160 = vunpack.c.l.b16 %v3626
    %v4161 = vunpack.c.h.b16 %v3626
    %v4162 = vunpack.c.l.b16 %v3627
    %v4163 = vunpack.c.h.b16 %v3627
    %v4164 = vunpack.c.l.b16 %v3628
    %v4165 = vunpack.c.h.b16 %v3628
    %v4166 = vunpack.c.l.b16 %v3629
    %v4167 = vunpack.c.h.b16 %v3629
    %v4168 = vunpack.c.l.b16 %v3630
    %v4169 = vunpack.c.h.b16 %v3630
    %v4170 = vunpack.c.l.b16 %v3631
    %v4171 = vunpack.c.h.b16 %v3631
    %v4172 = vunpack.c.l.b16 %v3632
    %v4173 = vunpack.c.h.b16 %v3632
    %v4174 = vunpack.c.l.b16 %v3633
    %v4175 = vunpack.c.h.b16 %v3633
    %v4176 = vunpack.c.l.b16 %v3634
    %v4177 = vunpack.c.h.b16 %v3634
    %v4178 = vunpack.c.l.b16 %v3635
    %v4179 = vunpack.c.h.b16 %v3635
    %v4180 = vunpack.c.l.b16 %v3636
    %v4181 = vunpack.c.h.b16 %v3636
    %v4182 = vunpack.c.l.b16 %v3637
    %v4183 = vunpack.c.h.b16 %v3637
    %v4184 = vunpack.c.l.b16 %v3638
    %v4185 = vunpack.c.h.b16 %v3638
    %v4186 = vunpack.c.l.b16 %v3639
    %v4187 = vunpack.c.h.b16 %v3639
    %v4188 = vunpack.c.l.b16 %v3640
    %v4189 = vunpack.c.h.b16 %v3640
    %v4190 = vunpack.c.l.b16 %v3641
    %v4191 = vunpack.c.h.b16 %v3641
    %v4192 = vunpack.c.l.b16 %v3642
    %v4193 = vunpack.c.h.b16 %v3642
    %v4194 = vunpack.c.l.b16 %v3643
    %v4195 = vunpack.c.h.b16 %v3643
    %v4196 = vunpack.c.l.b16 %v3644
    %v4197 = vunpack.c.h.b16 %v3644
    %v4198 = vunpack.c.l.b16 %v3645
    %v4199 = vunpack.c.h.b16 %v3645
    %v4200 = vunpack.c.l.b16 %v3646
    %v4201 = vunpack.c.h.b16 %v3646
    %v4202 = vunpack.c.l.b16 %v3647
    %v4203 = vunpack.c.h.b16 %v3647
    %v4204 = vunpack.c.l.b16 %v3648
    %v4205 = vunpack.c.h.b16 %v3648
    %v4206 = vunpack.c.l.b16 %v3649
    %v4207 = vunpack.c.h.b16 %v3649
    %v4208 = vunpack.c.l.b16 %v3650
    %v4209 = vunpack.c.h.b16 %v3650
    %v4210 = vunpack.c.l.b16 %v3651
    %v4211 = vunpack.c.h.b16 %v3651
    %v4212 = vunpack.c.l.b16 %v3652
    %v4213 = vunpack.c.h.b16 %v3652
    %v4214 = vunpack.c.l.b16 %v3653
    %v4215 = vunpack.c.h.b16 %v3653
    %v4216 = vunpack.c.l.b16 %v3654
    %v4217 = vunpack.c.h.b16 %v3654
    %v4218 = vunpack.c.l.b16 %v3655
    %v4219 = vunpack.c.h.b16 %v3655
    %v4220 = vunpack.c.l.b16 %v3656
    %v4221 = vunpack.c.h.b16 %v3656
    %v4222 = vunpack.c.l.b16 %v3657
    %v4223 = vunpack.c.h.b16 %v3657
    %v4224 = vunpack.c.l.b16 %v3658
    %v4225 = vunpack.c.h.b16 %v3658
    %v4226 = vunpack.c.l.b16 %v3659
    %v4227 = vunpack.c.h.b16 %v3659
    %v4228 = vunpack.c.l.b16 %v3660
    %v4229 = vunpack.c.h.b16 %v3660
    %v4230 = vunpack.c.l.b16 %v3661
    %v4231 = vunpack.c.h.b16 %v3661
    %v4232 = vunpack.c.l.b16 %v3662
    %v4233 = vunpack.c.h.b16 %v3662
    %v4234 = vunpack.c.l.b16 %v3663
    %v4235 = vunpack.c.h.b16 %v3663
    %v4236 = vunpack.c.l.b16 %v3664
    %v4237 = vunpack.c.h.b16 %v3664
    %v4238 = vunpack.c.l.b16 %v3665
    %v4239 = vunpack.c.h.b16 %v3665
    %v4240 = vunpack.c.l.b16 %v3666
    %v4241 = vunpack.c.h.b16 %v3666
    %v4242 = vunpack.c.l.b16 %v3667
    %v4243 = vunpack.c.h.b16 %v3667
    %v4244 = vunpack.c.l.b16 %v3668
    %v4245 = vunpack.c.h.b16 %v3668
    %v4246 = vunpack.c.l.b16 %v3669
    %v4247 = vunpack.c.h.b16 %v3669
    %v4248 = vunpack.c.l.b16 %v3670
    %v4249 = vunpack.c.h.b16 %v3670
    %v4250 = vunpack.c.l.b16 %v3671
    %v4251 = vunpack.c.h.b16 %v3671
    %v4252 = vunpack.c.l.b16 %v3672
    %v4253 = vunpack.c.h.b16 %v3672
    %v4254 = vunpack.c.l.b16 %v3673
    %v4255 = vunpack.c.h.b16 %v3673
    %v4256 = vunpack.c.l.b16 %v3674
    %v4257 = vunpack.c.h.b16 %v3674
    %v4258 = vunpack.c.l.b16 %v3675
    %v4259 = vunpack.c.h.b16 %v3675
    %v4260 = vunpack.c.l.b16 %v3676
    %v4261 = vunpack.c.h.b16 %v3676
    %v4262 = vunpack.c.l.b16 %v3677
    %v4263 = vunpack.c.h.b16 %v3677
    %v4264 = vunpack.c.l.b16 %v3678
    %v4265 = vunpack.c.h.b16 %v3678
    %v4266 = vunpack.c.l.b16 %v3679
    %v4267 = vunpack.c.h.b16 %v3679
    %v4268 = vunpack.c.l.b16 %v3680
    %v4269 = vunpack.c.h.b16 %v3680
    %v4270 = vunpack.c.l.b16 %v3681
    %v4271 = vunpack.c.h.b16 %v3681
    %v4272 = vunpack.c.l.b16 %v3682
    %v4273 = vunpack.c.h.b16 %v3682
    %v4274 = vunpack.c.l.b16 %v3683
    %v4275 = vunpack.c.h.b16 %v3683
    %v4276 = vunpack.c.l.b16 %v3684
    %v4277 = vunpack.c.h.b16 %v3684
    %v4278 = vunpack.c.l.b16 %v3685
    %v4279 = vunpack.c.h.b16 %v3685
    %v4280 = vunpack.c.l.b16 %v3686
    %v4281 = vunpack.c.h.b16 %v3686
    %v4282 = vunpack.c.l.b16 %v3687
    %v4283 = vunpack.c.h.b16 %v3687
    %v4284 = vunpack.c.l.b16 %v3688
    %v4285 = vunpack.c.h.b16 %v3688
    %v4286 = vunpack.c.l.b16 %v3689
    %v4287 = vunpack.c.h.b16 %v3689
    %v4288 = vunpack.c.l.b16 %v3690
    %v4289 = vunpack.c.h.b16 %v3690
    %v4290 = vunpack.c.l.b16 %v3691
    %v4291 = vunpack.c.h.b16 %v3691
    %v4292 = vunpack.c.l.b16 %v3692
    %v4293 = vunpack.c.h.b16 %v3692
    %v4294 = vunpack.c.l.b16 %v3693
    %v4295 = vunpack.c.h.b16 %v3693
    %v4296 = vunpack.c.l.b16 %v3694
    %v4297 = vunpack.c.h.b16 %v3694
    %v4298 = vunpack.c.l.b16 %v3695
    %v4299 = vunpack.c.h.b16 %v3695
    %v4300 = vunpack.c.l.b16 %v3696
    %v4301 = vunpack.c.h.b16 %v3696
    %v4302 = vunpack.c.l.b16 %v3697
    %v4303 = vunpack.c.h.b16 %v3697
    %v4304 = vunpack.c.l.b16 %v3698
    %v4305 = vunpack.c.h.b16 %v3698
    %v4306 = vunpack.c.l.b16 %v3699
    %v4307 = vunpack.c.h.b16 %v3699
    %v4308 = vunpack.c.l.b16 %v3700
    %v4309 = vunpack.c.h.b16 %v3700
    %v4310 = vunpack.c.l.b16 %v3701
    %v4311 = vunpack.c.h.b16 %v3701
    %v4312 = vunpack.c.l.b16 %v3702
    %v4313 = vunpack.c.h.b16 %v3702
    %v4314 = vunpack.c.l.b16 %v3703
    %v4315 = vunpack.c.h.b16 %v3703
    %v4316 = vunpack.c.l.b16 %v3704
    %v4317 = vunpack.c.h.b16 %v3704
    %v4318 = vunpack.c.l.b16 %v3705
    %v4319 = vunpack.c.h.b16 %v3705
    %v4320 = vunpack.c.l.b16 %v3706
    %v4321 = vunpack.c.h.b16 %v3706
    %v4322 = vunpack.c.l.b16 %v3707
    %v4323 = vunpack.c.h.b16 %v3707
    %v4324 = vunpack.c.l.b16 %v3708
    %v4325 = vunpack.c.h.b16 %v3708
    %v4326 = vunpack.c.l.b16 %v3709
    %v4327 = vunpack.c.h.b16 %v3709
    %v4328 = vunpack.c.l.b16 %v3710
    %v4329 = vunpack.c.h.b16 %v3710
    %v4330 = vunpack.c.l.b16 %v3711
    %v4331 = vunpack.c.h.b16 %v3711
    %v4332 = vunpack.c.l.b16 %v3712
    %v4333 = vunpack.c.h.b16 %v3712
    %v4334 = vunpack.c.l.b16 %v3713
    %v4335 = vunpack.c.h.b16 %v3713
    %v4336 = vunpack.c.l.b16 %v3714
    %v4337 = vunpack.c.h.b16 %v3714
    %v4338 = vunpack.c.l.b16 %v3715
    %v4339 = vunpack.c.h.b16 %v3715
    %v4340 = vunpack.c.l.b16 %v3716
    %v4341 = vunpack.c.h.b16 %v3716
    %v4342 = vunpack.c.l.b16 %v3717
    %v4343 = vunpack.c.h.b16 %v3717
    %v4344 = vunpack.c.l.b16 %v3718
    %v4345 = vunpack.c.h.b16 %v3718
    %v4346 = vunpack.c.l.b16 %v3719
    %v4347 = vunpack.c.h.b16 %v3719
    %v4348 = vunpack.c.l.b16 %v3720
    %v4349 = vunpack.c.h.b16 %v3720
    %v4350 = vunpack.c.l.b16 %v3721
    %v4351 = vunpack.c.h.b16 %v3721
    %v4352 = vunpack.c.l.b16 %v3722
    %v4353 = vunpack.c.h.b16 %v3722
    %v4354 = vunpack.c.l.b16 %v3723
    %v4355 = vunpack.c.h.b16 %v3723
    %v4356 = vunpack.c.l.b16 %v3724
    %v4357 = vunpack.c.h.b16 %v3724
    %v4358 = vunpack.c.l.b16 %v3725
    %v4359 = vunpack.c.h.b16 %v3725
    %v4360 = vunpack.c.l.b16 %v3726
    %v4361 = vunpack.c.h.b16 %v3726
    %v4362 = vunpack.c.l.b16 %v3727
    %v4363 = vunpack.c.h.b16 %v3727
    %v4364 = vunpack.c.l.b16 %v3728
    %v4365 = vunpack.c.h.b16 %v3728
    %v4366 = vunpack.c.l.b16 %v3729
    %v4367 = vunpack.c.h.b16 %v3729
    %v4368 = vunpack.c.l.b16 %v3730
    %v4369 = vunpack.c.h.b16 %v3730
    %v4370 = vunpack.c.l.b16 %v3731
    %v4371 = vunpack.c.h.b16 %v3731
    %v4372 = vunpack.c.l.b16 %v3732
    %v4373 = vunpack.c.h.b16 %v3732
    %v4374 = vunpack.c.l.b16 %v3733
    %v4375 = vunpack.c.h.b16 %v3733
    %v4376 = vunpack.c.l.b16 %v3734
    %v4377 = vunpack.c.h.b16 %v3734
    %v4378 = vunpack.c.l.b16 %v3735
    %v4379 = vunpack.c.h.b16 %v3735
    %v4380 = vunpack.c.l.b16 %v3736
    %v4381 = vunpack.c.h.b16 %v3736
    %v4382 = vunpack.c.l.b16 %v3737
    %v4383 = vunpack.c.h.b16 %v3737
    %v4384 = vunpack.c.l.b16 %v3738
    %v4385 = vunpack.c.h.b16 %v3738
    %v4386 = vunpack.c.l.b16 %v3739
    %v4387 = vunpack.c.h.b16 %v3739
    %v4388 = vunpack.c.l.b16 %v3740
    %v4389 = vunpack.c.h.b16 %v3740
    %v4390 = vunpack.c.l.b16 %v3741
    %v4391 = vunpack.c.h.b16 %v3741
    %v4392 = vunpack.c.l.b16 %v3742
    %v4393 = vunpack.c.h.b16 %v3742
    %v4394 = vunpack.c.l.b16 %v3743
    %v4395 = vunpack.c.h.b16 %v3743
    %v4396 = vunpack.c.l.b16 %v3744
    %v4397 = vunpack.c.h.b16 %v3744
    %v4398 = vunpack.c.l.b16 %v3745
    %v4399 = vunpack.c.h.b16 %v3745
    %v4400 = vunpack.c.l.b16 %v3746
    %v4401 = vunpack.c.h.b16 %v3746
    %v4402 = vunpack.c.l.b16 %v3747
    %v4403 = vunpack.c.h.b16 %v3747
    %v4404 = vunpack.c.l.b16 %v3748
    %v4405 = vunpack.c.h.b16 %v3748
    %v4406 = vunpack.c.l.b16 %v3749
    %v4407 = vunpack.c.h.b16 %v3749
    %v4408 = vunpack.c.l.b16 %v3750
    %v4409 = vunpack.c.h.b16 %v3750
    %v4410 = vunpack.c.l.b16 %v3751
    %v4411 = vunpack.c.h.b16 %v3751
    %v4412 = vunpack.c.l.b16 %v3752
    %v4413 = vunpack.c.h.b16 %v3752
    %v4414 = vunpack.c.l.b16 %v3753
    %v4415 = vunpack.c.h.b16 %v3753
    %v4416 = vunpack.c.l.b16 %v3754
    %v4417 = vunpack.c.h.b16 %v3754
    %v4418 = vunpack.c.l.b16 %v3755
    %v4419 = vunpack.c.h.b16 %v3755
    %v4420 = vunpack.c.l.b16 %v3756
    %v4421 = vunpack.c.h.b16 %v3756
    %v4422 = vunpack.c.l.b16 %v3757
    %v4423 = vunpack.c.h.b16 %v3757
    %v4424 = vunpack.c.l.b16 %v3758
    %v4425 = vunpack.c.h.b16 %v3758
    %v4426 = vunpack.c.l.b16 %v3759
    %v4427 = vunpack.c.h.b16 %v3759
    %v4428 = vunpack.c.l.b16 %v3760
    %v4429 = vunpack.c.h.b16 %v3760
    %v4430 = vunpack.c.l.b16 %v3761
    %v4431 = vunpack.c.h.b16 %v3761
    %v4432 = vunpack.c.l.b16 %v3762
    %v4433 = vunpack.c.h.b16 %v3762
    %v4434 = vunpack.c.l.b16 %v3763
    %v4435 = vunpack.c.h.b16 %v3763
    %v4436 = vunpack.c.l.b16 %v3764
    %v4437 = vunpack.c.h.b16 %v3764
    %v4438 = vunpack.c.l.b16 %v3765
    %v4439 = vunpack.c.h.b16 %v3765
    %v4440 = vunpack.c.l.b16 %v3766
    %v4441 = vunpack.c.h.b16 %v3766
    %v4442 = vunpack.c.l.b16 %v3767
    %v4443 = vunpack.c.h.b16 %v3767
    %v4444 = vunpack.c.l.b16 %v3768
    %v4445 = vunpack.c.h.b16 %v3768
    %v4446 = vunpack.c.l.b16 %v3769
    %v4447 = vunpack.c.h.b16 %v3769
    %v4448 = vunpack.c.l.b16 %v3770
    %v4449 = vunpack.c.h.b16 %v3770
    %v4450 = vunpack.c.l.b16 %v3771
    %v4451 = vunpack.c.h.b16 %v3771
    %v4452 = vunpack.c.l.b16 %v3772
    %v4453 = vunpack.c.h.b16 %v3772
    %v4454 = vunpack.c.l.b16 %v3773
    %v4455 = vunpack.c.h.b16 %v3773
    %v4456 = vunpack.c.l.b16 %v3774
    %v4457 = vunpack.c.h.b16 %v3774
    %v4458 = vunpack.c.l.b16 %v3775
    %v4459 = vunpack.c.h.b16 %v3775
    %v4460 = vunpack.c.l.b16 %v3776
    %v4461 = vunpack.c.h.b16 %v3776
    %v4462 = vunpack.c.l.b16 %v3777
    %v4463 = vunpack.c.h.b16 %v3777
    %v4464 = vunpack.c.l.b16 %v3778
    %v4465 = vunpack.c.h.b16 %v3778
    %v4466 = vunpack.c.l.b16 %v3779
    %v4467 = vunpack.c.h.b16 %v3779
    %v4468 = vunpack.c.l.b16 %v3780
    %v4469 = vunpack.c.h.b16 %v3780
    %v4470 = vunpack.c.l.b16 %v3781
    %v4471 = vunpack.c.h.b16 %v3781
    %v4472 = vunpack.c.l.b16 %v3782
    %v4473 = vunpack.c.h.b16 %v3782
    %v4474 = vunpack.c.l.b16 %v3783
    %v4475 = vunpack.c.h.b16 %v3783
    %v4476 = vunpack.c.l.b16 %v3784
    %v4477 = vunpack.c.h.b16 %v3784
    %v4478 = vunpack.c.l.b16 %v3785
    %v4479 = vunpack.c.h.b16 %v3785
    %v4480 = vunpack.c.l.b16 %v3786
    %v4481 = vunpack.c.h.b16 %v3786
    %v4482 = vunpack.c.l.b16 %v3787
    %v4483 = vunpack.c.h.b16 %v3787
    %v4484 = vunpack.c.l.b16 %v3788
    %v4485 = vunpack.c.h.b16 %v3788
    %v4486 = vunpack.c.l.b16 %v3789
    %v4487 = vunpack.c.h.b16 %v3789
    %v4488 = vunpack.c.l.b16 %v3790
    %v4489 = vunpack.c.h.b16 %v3790
    %v4490 = vunpack.c.l.b16 %v3791
    %v4491 = vunpack.c.h.b16 %v3791
    %v4492 = vunpack.c.l.b16 %v3792
    %v4493 = vunpack.c.h.b16 %v3792
    %v4494 = vunpack.c.l.b16 %v3793
    %v4495 = vunpack.c.h.b16 %v3793
    %v4496 = vunpack.c.l.b16 %v3794
    %v4497 = vunpack.c.h.b16 %v3794
    %v4498 = vunpack.c.l.b16 %v3795
    %v4499 = vunpack.c.h.b16 %v3795
    %v4500 = vunpack.c.l.b16 %v3796
    %v4501 = vunpack.c.h.b16 %v3796
    %v4502 = vunpack.c.l.b16 %v3797
    %v4503 = vunpack.c.h.b16 %v3797
    %v4504 = vunpack.c.l.b16 %v3798
    %v4505 = vunpack.c.h.b16 %v3798
    %v4506 = vunpack.c.l.b16 %v3799
    %v4507 = vunpack.c.h.b16 %v3799
    %v4508 = vunpack.c.l.b16 %v3800
    %v4509 = vunpack.c.h.b16 %v3800
    %v4510 = vunpack.c.l.b16 %v3801
    %v4511 = vunpack.c.h.b16 %v3801
    %v4512 = vunpack.c.l.b16 %v3802
    %v4513 = vunpack.c.h.b16 %v3802
    %v4514 = vunpack.c.l.b16 %v3803
    %v4515 = vunpack.c.h.b16 %v3803
    %v4516 = vunpack.c.l.b16 %v3804
    %v4517 = vunpack.c.h.b16 %v3804
    %v4518 = vunpack.c.l.b16 %v3805
    %v4519 = vunpack.c.h.b16 %v3805
    %v4520 = vunpack.c.l.b16 %v3806
    %v4521 = vunpack.c.h.b16 %v3806
    %v4522 = vunpack.c.l.b16 %v3807
    %v4523 = vunpack.c.h.b16 %v3807
    %v4524 = vunpack.c.l.b16 %v3808
    %v4525 = vunpack.c.h.b16 %v3808
    %v4526 = vunpack.c.l.b16 %v3809
    %v4527 = vunpack.c.h.b16 %v3809
    %v4528 = vunpack.c.l.b16 %v3810
    %v4529 = vunpack.c.h.b16 %v3810
    %v4530 = vunpack.c.l.b16 %v3811
    %v4531 = vunpack.c.h.b16 %v3811
    %v4532 = vunpack.c.l.b16 %v3812
    %v4533 = vunpack.c.h.b16 %v3812
    %v4534 = vunpack.c.l.b16 %v3813
    %v4535 = vunpack.c.h.b16 %v3813
    %v4536 = vunpack.c.l.b16 %v3814
    %v4537 = vunpack.c.h.b16 %v3814
    %v4538 = vunpack.c.l.b16 %v3815
    %v4539 = vunpack.c.h.b16 %v3815
    %v4540 = vunpack.c.l.b16 %v3816
    %v4541 = vunpack.c.h.b16 %v3816
    %v4542 = vunpack.c.l.b16 %v3817
    %v4543 = vunpack.c.h.b16 %v3817
    %v4544 = vunpack.c.l.b16 %v3818
    %v4545 = vunpack.c.h.b16 %v3818
    %v4546 = vunpack.c.l.b16 %v3819
    %v4547 = vunpack.c.h.b16 %v3819
    %v4548 = vunpack.c.l.b16 %v3820
    %v4549 = vunpack.c.h.b16 %v3820
    %v4550 = vunpack.c.l.b16 %v3821
    %v4551 = vunpack.c.h.b16 %v3821
    %v4552 = vunpack.c.l.b16 %v3822
    %v4553 = vunpack.c.h.b16 %v3822
    %v4554 = vunpack.c.l.b16 %v3823
    %v4555 = vunpack.c.h.b16 %v3823
    %v4556 = vunpack.c.l.b16 %v3824
    %v4557 = vunpack.c.h.b16 %v3824
    %v4558 = vunpack.c.l.b16 %v3825
    %v4559 = vunpack.c.h.b16 %v3825
    %v4560 = vunpack.c.l.b16 %v3826
    %v4561 = vunpack.c.h.b16 %v3826
    %v4562 = vunpack.c.l.b16 %v3827
    %v4563 = vunpack.c.h.b16 %v3827
    %v4564 = vunpack.c.l.b16 %v3828
    %v4565 = vunpack.c.h.b16 %v3828
    %v4566 = vunpack.c.l.b16 %v3829
    %v4567 = vunpack.c.h.b16 %v3829
    %v4568 = vunpack.c.l.b16 %v3830
    %v4569 = vunpack.c.h.b16 %v3830
    %v4570 = vunpack.c.l.b16 %v3831
    %v4571 = vunpack.c.h.b16 %v3831
    %v4572 = vunpack.c.l.b16 %v3832
    %v4573 = vunpack.c.h.b16 %v3832
    %v4574 = vunpack.c.l.b16 %v3833
    %v4575 = vunpack.c.h.b16 %v3833
    %v4576 = vunpack.c.l.b16 %v3834
    %v4577 = vunpack.c.h.b16 %v3834
    %v4578 = vunpack.c.l.b16 %v3835
    %v4579 = vunpack.c.h.b16 %v3835
    %v4580 = vunpack.c.l.b16 %v3836
    %v4581 = vunpack.c.h.b16 %v3836
    %v4582 = vunpack.c.l.b16 %v3837
    %v4583 = vunpack.c.h.b16 %v3837
    %v4584 = vunpack.c.l.b16 %v3838
    %v4585 = vunpack.c.h.b16 %v3838
    %v4586 = vunpack.c.l.b16 %v3839
    %v4587 = vunpack.c.h.b16 %v3839
    %v4588 = vunpack.c.l.b16 %v3840
    %v4589 = vunpack.c.h.b16 %v3840
    %v4590 = vunpack.c.l.b16 %v3841
    %v4591 = vunpack.c.h.b16 %v3841
    %v4592 = vunpack.c.l.b16 %v3842
    %v4593 = vunpack.c.h.b16 %v3842
    %v4594 = vunpack.c.l.b16 %v3843
    %v4595 = vunpack.c.h.b16 %v3843
    %v4596 = vunpack.c.l.b16 %v3844
    %v4597 = vunpack.c.h.b16 %v3844
    %v4598 = vunpack.c.l.b16 %v3845
    %v4599 = vunpack.c.h.b16 %v3845
    %v4600 = vunpack.c.l.b16 %v3846
    %v4601 = vunpack.c.h.b16 %v3846
    %v4602 = vunpack.c.l.b16 %v3847
    %v4603 = vunpack.c.h.b16 %v3847
    %v4604 = vunpack.c.l.b16 %v3848
    %v4605 = vunpack.c.h.b16 %v3848
    %v4606 = vunpack.c.l.b16 %v3849
    %v4607 = vunpack.c.h.b16 %v3849
    %v4608 = vunpack.c.l.b16 %v3850
    %v4609 = vunpack.c.h.b16 %v3850
    %v4610 = vunpack.c.l.b16 %v3851
    %v4611 = vunpack.c.h.b16 %v3851
    %v4612 = vunpack.c.l.b16 %v3852
    %v4613 = vunpack.c.h.b16 %v3852
    %v4614 = vunpack.c.l.b16 %v3853
    %v4615 = vunpack.c.h.b16 %v3853
    %v4616 = vunpack.c.l.b16 %v3854
    %v4617 = vunpack.c.h.b16 %v3854
    %v4618 = vunpack.c.l.b16 %v3855
    %v4619 = vunpack.c.h.b16 %v3855
    %v4620 = vunpack.c.l.b16 %v3856
    %v4621 = vunpack.c.h.b16 %v3856
    %v4622 = vunpack.c.l.b16 %v3857
    %v4623 = vunpack.c.h.b16 %v3857
    %v4624 = vunpack.c.l.b16 %v3858
    %v4625 = vunpack.c.h.b16 %v3858
    %v4626 = vunpack.c.l.b16 %v3859
    %v4627 = vunpack.c.h.b16 %v3859
    %v4628 = vunpack.c.l.b16 %v3860
    %v4629 = vunpack.c.h.b16 %v3860
    %v4630 = vunpack.c.l.b16 %v3861
    %v4631 = vunpack.c.h.b16 %v3861
    %v4632 = vunpack.c.l.b16 %v3862
    %v4633 = vunpack.c.h.b16 %v3862
    %v4634 = vunpack.c.l.b16 %v3863
    %v4635 = vunpack.c.h.b16 %v3863
    %v4636 = vunpack.c.l.b16 %v3864
    %v4637 = vunpack.c.h.b16 %v3864
    %v4638 = vunpack.c.l.b16 %v3865
    %v4639 = vunpack.c.h.b16 %v3865
    %v4640 = vunpack.c.l.b16 %v3866
    %v4641 = vunpack.c.h.b16 %v3866
    %v4642 = vunpack.c.l.b16 %v3867
    %v4643 = vunpack.c.h.b16 %v3867
    %v4644 = vunpack.c.l.b16 %v3868
    %v4645 = vunpack.c.h.b16 %v3868
    %v4646 = vunpack.c.l.b16 %v3869
    %v4647 = vunpack.c.h.b16 %v3869
    %v4648 = vpack.c.b16 %v4140, %v4136
    %v4649 = vpack.c.b16 %v4141, %v4137
    %v4650 = vpack.c.b16 %v4142, %v4138
    %v4651 = vpack.c.b16 %v4143, %v4139
    %v4652 = vpack.c.b16 %v4148, %v4144
    %v4653 = vpack.c.b16 %v4149, %v4145
    %v4654 = vpack.c.b16 %v4150, %v4146
    %v4655 = vpack.c.b16 %v4151, %v4147
    %v4656 = vpack.c.b16 %v4156, %v4152
    %v4657 = vpack.c.b16 %v4157, %v4153
    %v4658 = vpack.c.b16 %v4158, %v4154
    %v4659 = vpack.c.b16 %v4159, %v4155
    %v4660 = vpack.c.b16 %v4164, %v4160
    %v4661 = vpack.c.b16 %v4165, %v4161
    %v4662 = vpack.c.b16 %v4166, %v4162
    %v4663 = vpack.c.b16 %v4167, %v4163
    %v4664 = vpack.c.b16 %v4172, %v4168
    %v4665 = vpack.c.b16 %v4173, %v4169
    %v4666 = vpack.c.b16 %v4174, %v4170
    %v4667 = vpack.c.b16 %v4175, %v4171
    %v4668 = vpack.c.b16 %v4180, %v4176
    %v4669 = vpack.c.b16 %v4181, %v4177
    %v4670 = vpack.c.b16 %v4182, %v4178
    %v4671 = vpack.c.b16 %v4183, %v4179
    %v4672 = vpack.c.b16 %v4188, %v4184
    %v4673 = vpack.c.b16 %v4189, %v4185
    %v4674 = vpack.c.b16 %v4190, %v4186
    %v4675 = vpack.c.b16 %v4191, %v4187
    %v4676 = vpack.c.b16 %v4196, %v4192
    %v4677 = vpack.c.b16 %v4197, %v4193
    %v4678 = vpack.c.b16 %v4198, %v4194
    %v4679 = vpack.c.b16 %v4199, %v4195
    %v4680 = vpack.c.b16 %v4204, %v4200
    %v4681 = vpack.c.b16 %v4205, %v4201
    %v4682 = vpack.c.b16 %v4206, %v4202
    %v4683 = vpack.c.b16 %v4207, %v4203
    %v4684 = vpack.c.b16 %v4212, %v4208
    %v4685 = vpack.c.b16 %v4213, %v4209
    %v4686 = vpack.c.b16 %v4214, %v4210
    %v4687 = vpack.c.b16 %v4215, %v4211
    %v4688 = vpack.c.b16 %v4220, %v4216
    %v4689 = vpack.c.b16 %v4221, %v4217
    %v4690 = vpack.c.b16 %v4222, %v4218
    %v4691 = vpack.c.b16 %v4223, %v4219
    %v4692 = vpack.c.b16 %v4228, %v4224
    %v4693 = vpack.c.b16 %v4229, %v4225
    %v4694 = vpack.c.b16 %v4230, %v4226
    %v4695 = vpack.c.b16 %v4231, %v4227
    %v4696 = vpack.c.b16 %v4236, %v4232
    %v4697 = vpack.c.b16 %v4237, %v4233
    %v4698 = vpack.c.b16 %v4238, %v4234
    %v4699 = vpack.c.b16 %v4239, %v4235
    %v4700 = vpack.c.b16 %v4244, %v4240
    %v4701 = vpack.c.b16 %v4245, %v4241
    %v4702 = vpack.c.b16 %v4246, %v4242
    %v4703 = vpack.c.b16 %v4247, %v4243
    %v4704 = vpack.c.b16 %v4252, %v4248
    %v4705 = vpack.c.b16 %v4253, %v4249
    %v4706 = vpack.c.b16 %v4254, %v4250
    %v4707 = vpack.c.b16 %v4255, %v4251
    %v4708 = vpack.c.b16 %v4260, %v4256
    %v4709 = vpack.c.b16 %v4261, %v4257
    %v4710 = vpack.c.b16 %v4262, %v4258
    %v4711 = vpack.c.b16 %v4263, %v4259
    %v4712 = vpack.c.b16 %v4268, %v4264
    %v4713 = vpack.c.b16 %v4269, %v4265
    %v4714 = vpack.c.b16 %v4270, %v4266
    %v4715 = vpack.c.b16 %v4271, %v4267
    %v4716 = vpack.c.b16 %v4276, %v4272
    %v4717 = vpack.c.b16 %v4277, %v4273
    %v4718 = vpack.c.b16 %v4278, %v4274
    %v4719 = vpack.c.b16 %v4279, %v4275
    %v4720 = vpack.c.b16 %v4284, %v4280
    %v4721 = vpack.c.b16 %v4285, %v4281
    %v4722 = vpack.c.b16 %v4286, %v4282
    %v4723 = vpack.c.b16 %v4287, %v4283
    %v4724 = vpack.c.b16 %v4292, %v4288
    %v4725 = vpack.c.b16 %v4293, %v4289
    %v4726 = vpack.c.b16 %v4294, %v4290
    %v4727 = vpack.c.b16 %v4295, %v4291
    %v4728 = vpack.c.b16 %v4300, %v4296
    %v4729 = vpack.c.b16 %v4301, %v4297
    %v4730 = vpack.c.b16 %v4302, %v4298
    %v4731 = vpack.c.b16 %v4303, %v4299
    %v4732 = vpack.c.b16 %v4308, %v4304
    %v4733 = vpack.c.b16 %v4309, %v4305
    %v4734 = vpack.c.b16 %v4310, %v4306
    %v4735 = vpack.c.b16 %v4311, %v4307
    %v4736 = vpack.c.b16 %v4316, %v4312
    %v4737 = vpack.c.b16 %v4317, %v4313
    %v4738 = vpack.c.b16 %v4318, %v4314
    %v4739 = vpack.c.b16 %v4319, %v4315
    %v4740 = vpack.c.b16 %v4324, %v4320
    %v4741 = vpack.c.b16 %v4325, %v4321
    %v4742 = vpack.c.b16 %v4326, %v4322
    %v4743 = vpack.c.b16 %v4327, %v4323
    %v4744 = vpack.c.b16 %v4332, %v4328
    %v4745 = vpack.c.b16 %v4333, %v4329
    %v4746 = vpack.c.b16 %v4334, %v4330
    %v4747 = vpack.c.b16 %v4335, %v4331
    %v4748 = vpack.c.b16 %v4340, %v4336
    %v4749 = vpack.c.b16 %v4341, %v4337
    %v4750 = vpack.c.b16 %v4342, %v4338
    %v4751 = vpack.c.b16 %v4343, %v4339
    %v4752 = vpack.c.b16 %v4348, %v4344
    %v4753 = vpack.c.b16 %v4349, %v4345
    %v4754 = vpack.c.b16 %v4350, %v4346
    %v4755 = vpack.c.b16 %v4351, %v4347
    %v4756 = vpack.c.b16 %v4356, %v4352
    %v4757 = vpack.c.b16 %v4357, %v4353
    %v4758 = vpack.c.b16 %v4358, %v4354
    %v4759 = vpack.c.b16 %v4359, %v4355
    %v4760 = vpack.c.b16 %v4364, %v4360
    %v4761 = vpack.c.b16 %v4365, %v4361
    %v4762 = vpack.c.b16 %v4366, %v4362
    %v4763 = vpack.c.b16 %v4367, %v4363
    %v4764 = vpack.c.b16 %v4372, %v4368
    %v4765 = vpack.c.b16 %v4373, %v4369
    %v4766 = vpack.c.b16 %v4374, %v4370
    %v4767 = vpack.c.b16 %v4375, %v4371
    %v4768 = vpack.c.b16 %v4380, %v4376
    %v4769 = vpack.c.b16 %v4381, %v4377
    %v4770 = vpack.c.b16 %v4382, %v4378
    %v4771 = vpack.c.b16 %v4383, %v4379
    %v4772 = vpack.c.b16 %v4388, %v4384
    %v4773 = vpack.c.b16 %v4389, %v4385
    %v4774 = vpack.c.b16 %v4390, %v4386
    %v4775 = vpack.c.b16 %v4391, %v4387
    %v4776 = vpack.c.b16 %v4396, %v4392
    %v4777 = vpack.c.b16 %v4397, %v4393
    %v4778 = vpack.c.b16 %v4398, %v4394
    %v4779 = vpack.c.b16 %v4399, %v4395
    %v4780 = vpack.c.b16 %v4404, %v4400
    %v4781 = vpack.c.b16 %v4405, %v4401
    %v4782 = vpack.c.b16 %v4406, %v4402
    %v4783 = vpack.c.b16 %v4407, %v4403
    %v4784 = vpack.c.b16 %v4412, %v4408
    %v4785 = vpack.c.b16 %v4413, %v4409
    %v4786 = vpack.c.b16 %v4414, %v4410
    %v4787 = vpack.c.b16 %v4415, %v4411
    %v4788 = vpack.c.b16 %v4420, %v4416
    %v4789 = vpack.c.b16 %v4421, %v4417
    %v4790 = vpack.c.b16 %v4422, %v4418
    %v4791 = vpack.c.b16 %v4423, %v4419
    %v4792 = vpack.c.b16 %v4428, %v4424
    %v4793 = vpack.c.b16 %v4429, %v4425
    %v4794 = vpack.c.b16 %v4430, %v4426
    %v4795 = vpack.c.b16 %v4431, %v4427
    %v4796 = vpack.c.b16 %v4436, %v4432
    %v4797 = vpack.c.b16 %v4437, %v4433
    %v4798 = vpack.c.b16 %v4438, %v4434
    %v4799 = vpack.c.b16 %v4439, %v4435
    %v4800 = vpack.c.b16 %v4444, %v4440
    %v4801 = vpack.c.b16 %v4445, %v4441
    %v4802 = vpack.c.b16 %v4446, %v4442
    %v4803 = vpack.c.b16 %v4447, %v4443
    %v4804 = vpack.c.b16 %v4452, %v4448
    %v4805 = vpack.c.b16 %v4453, %v4449
    %v4806 = vpack.c.b16 %v4454, %v4450
    %v4807 = vpack.c.b16 %v4455, %v4451
    %v4808 = vpack.c.b16 %v4460, %v4456
    %v4809 = vpack.c.b16 %v4461, %v4457
    %v4810 = vpack.c.b16 %v4462, %v4458
    %v4811 = vpack.c.b16 %v4463, %v4459
    %v4812 = vpack.c.b16 %v4468, %v4464
    %v4813 = vpack.c.b16 %v4469, %v4465
    %v4814 = vpack.c.b16 %v4470, %v4466
    %v4815 = vpack.c.b16 %v4471, %v4467
    %v4816 = vpack.c.b16 %v4476, %v4472
    %v4817 = vpack.c.b16 %v4477, %v4473
    %v4818 = vpack.c.b16 %v4478, %v4474
    %v4819 = vpack.c.b16 %v4479, %v4475
    %v4820 = vpack.c.b16 %v4484, %v4480
    %v4821 = vpack.c.b16 %v4485, %v4481
    %v4822 = vpack.c.b16 %v4486, %v4482
    %v4823 = vpack.c.b16 %v4487, %v4483
    %v4824 = vpack.c.b16 %v4492, %v4488
    %v4825 = vpack.c.b16 %v4493, %v4489
    %v4826 = vpack.c.b16 %v4494, %v4490
    %v4827 = vpack.c.b16 %v4495, %v4491
    %v4828 = vpack.c.b16 %v4500, %v4496
    %v4829 = vpack.c.b16 %v4501, %v4497
    %v4830 = vpack.c.b16 %v4502, %v4498
    %v4831 = vpack.c.b16 %v4503, %v4499
    %v4832 = vpack.c.b16 %v4508, %v4504
    %v4833 = vpack.c.b16 %v4509, %v4505
    %v4834 = vpack.c.b16 %v4510, %v4506
    %v4835 = vpack.c.b16 %v4511, %v4507
    %v4836 = vpack.c.b16 %v4516, %v4512
    %v4837 = vpack.c.b16 %v4517, %v4513
    %v4838 = vpack.c.b16 %v4518, %v4514
    %v4839 = vpack.c.b16 %v4519, %v4515
    %v4840 = vpack.c.b16 %v4524, %v4520
    %v4841 = vpack.c.b16 %v4525, %v4521
    %v4842 = vpack.c.b16 %v4526, %v4522
    %v4843 = vpack.c.b16 %v4527, %v4523
    %v4844 = vpack.c.b16 %v4532, %v4528
    %v4845 = vpack.c.b16 %v4533, %v4529
    %v4846 = vpack.c.b16 %v4534, %v4530
    %v4847 = vpack.c.b16 %v4535, %v4531
    %v4848 = vpack.c.b16 %v4540, %v4536
    %v4849 = vpack.c.b16 %v4541, %v4537
    %v4850 = vpack.c.b16 %v4542, %v4538
    %v4851 = vpack.c.b16 %v4543, %v4539
    %v4852 = vpack.c.b16 %v4548, %v4544
    %v4853 = vpack.c.b16 %v4549, %v4545
    %v4854 = vpack.c.b16 %v4550, %v4546
    %v4855 = vpack.c.b16 %v4551, %v4547
    %v4856 = vpack.c.b16 %v4556, %v4552
    %v4857 = vpack.c.b16 %v4557, %v4553
    %v4858 = vpack.c.b16 %v4558, %v4554
    %v4859 = vpack.c.b16 %v4559, %v4555
    %v4860 = vpack.c.b16 %v4564, %v4560
    %v4861 = vpack.c.b16 %v4565, %v4561
    %v4862 = vpack.c.b16 %v4566, %v4562
    %v4863 = vpack.c.b16 %v4567, %v4563
    %v4864 = vpack.c.b16 %v4572, %v4568
    %v4865 = vpack.c.b16 %v4573, %v4569
    %v4866 = vpack.c.b16 %v4574, %v4570
    %v4867 = vpack.c.b16 %v4575, %v4571
    %v4868 = vpack.c.b16 %v4580, %v4576
    %v4869 = vpack.c.b16 %v4581, %v4577
    %v4870 = vpack.c.b16 %v4582, %v4578
    %v4871 = vpack.c.b16 %v4583, %v4579
    %v4872 = vpack.c.b16 %v4588, %v4584
    %v4873 = vpack.c.b16 %v4589, %v4585
    %v4874 = vpack.c.b16 %v4590, %v4586
    %v4875 = vpack.c.b16 %v4591, %v4587
    %v4876 = vpack.c.b16 %v4596, %v4592
    %v4877 = vpack.c.b16 %v4597, %v4593
    %v4878 = vpack.c.b16 %v4598, %v4594
    %v4879 = vpack.c.b16 %v4599, %v4595
    %v4880 = vpack.c.b16 %v4604, %v4600
    %v4881 = vpack.c.b16 %v4605, %v4601
    %v4882 = vpack.c.b16 %v4606, %v4602
    %v4883 = vpack.c.b16 %v4607, %v4603
    %v4884 = vpack.c.b16 %v4612, %v4608
    %v4885 = vpack.c.b16 %v4613, %v4609
    %v4886 = vpack.c.b16 %v4614, %v4610
    %v4887 = vpack.c.b16 %v4615, %v4611
    %v4888 = vpack.c.b16 %v4620, %v4616
    %v4889 = vpack.c.b16 %v4621, %v4617
    %v4890 = vpack.c.b16 %v4622, %v4618
    %v4891 = vpack.c.b16 %v4623, %v4619
    %v4892 = vpack.c.b16 %v4628, %v4624
    %v4893 = vpack.c.b16 %v4629, %v4625
    %v4894 = vpack.c.b16 %v4630, %v4626
    %v4895 = vpack.c.b16 %v4631, %v4627
    %v4896 = vpack.c.b16 %v4636, %v4632
    %v4897 = vpack.c.b16 %v4637, %v4633
    %v4898 = vpack.c.b16 %v4638, %v4634
    %v4899 = vpack.c.b16 %v4639, %v4635
    %v4900 = vpack.c.b16 %v4644, %v4640
    %v4901 = vpack.c.b16 %v4645, %v4641
    %v4902 = vpack.c.b16 %v4646, %v4642
    %v4903 = vpack.c.b16 %v4647, %v4643
    %5160 = vmatpush.bf16.msra.mxu0 %v4676
    %5161 = vmatpush.bf16.msra.mxu0 %v4672
    %5162 = vmatpush.bf16.msra.mxu0 %v4668
    %5163 = vmatpush.bf16.msra.mxu0 %v4664
    %5164 = vmatpush.bf16.msra.mxu0 %v4660
    %5165 = vmatpush.bf16.msra.mxu0 %v4656
    %5166 = vmatpush.bf16.msra.mxu0 %v4652
    %5167 = vmatpush.bf16.msra.mxu0 %v4648
    %5168 = vmatmul.bf16.gmra.mxu0 %v3606
    %v5169 = vpop.f32.mrf.mxu0
    %v5170 = vadd.f32 %v3872, %v5169
    %v5171 = vpop.f32.mrf.mxu0
    %5172 = vdwg.mxu0
    %5173 = vmatpush.bf16.msra.mxu0 %v4708
    %5174 = vmatpush.bf16.msra.mxu0 %v4704
    %5175 = vmatpush.bf16.msra.mxu0 %v4700
    %5176 = vmatpush.bf16.msra.mxu0 %v4696
    %5177 = vmatpush.bf16.msra.mxu0 %v4692
    %5178 = vmatpush.bf16.msra.mxu0 %v4688
    %5179 = vmatpush.bf16.msra.mxu0 %v4684
    %5180 = vmatpush.bf16.msra.mxu0 %v4680
    %5181 = vmatmul.bf16.gmra.mxu0 %v3607
    %v5182 = vpop.f32.mrf.mxu0
    %v5183 = vadd.f32 %v5170, %v5182
    %v5184 = vpop.f32.mrf.mxu0
    %5185 = vdwg.mxu0
    %5186 = vmatpush.bf16.msra.mxu0 %v4740
    %5187 = vmatpush.bf16.msra.mxu0 %v4736
    %5188 = vmatpush.bf16.msra.mxu0 %v4732
    %5189 = vmatpush.bf16.msra.mxu0 %v4728
    %5190 = vmatpush.bf16.msra.mxu0 %v4724
    %5191 = vmatpush.bf16.msra.mxu0 %v4720
    %5192 = vmatpush.bf16.msra.mxu0 %v4716
    %5193 = vmatpush.bf16.msra.mxu0 %v4712
    %5194 = vmatmul.bf16.gmra.mxu0 %v3608
    %v5195 = vpop.f32.mrf.mxu0
    %v5196 = vadd.f32 %v5183, %v5195
    %v5197 = vpop.f32.mrf.mxu0
    %5198 = vdwg.mxu0
    %5199 = vmatpush.bf16.msra.mxu0 %v4772
    %5200 = vmatpush.bf16.msra.mxu0 %v4768
    %5201 = vmatpush.bf16.msra.mxu0 %v4764
    %5202 = vmatpush.bf16.msra.mxu0 %v4760
    %5203 = vmatpush.bf16.msra.mxu0 %v4756
    %5204 = vmatpush.bf16.msra.mxu0 %v4752
    %5205 = vmatpush.bf16.msra.mxu0 %v4748
    %5206 = vmatpush.bf16.msra.mxu0 %v4744
    %5207 = vmatmul.bf16.gmra.mxu0 %v3609
    %v5208 = vpop.f32.mrf.mxu0
    %v5209 = vadd.f32 %v5196, %v5208
    %v5210 = vpop.f32.mrf.mxu0
    %5211 = vdwg.mxu0
    %5212 = vmatpush.bf16.msra.mxu0 %v4804
    %5213 = vmatpush.bf16.msra.mxu0 %v4800
    %5214 = vmatpush.bf16.msra.mxu0 %v4796
    %5215 = vmatpush.bf16.msra.mxu0 %v4792
    %5216 = vmatpush.bf16.msra.mxu0 %v4788
    %5217 = vmatpush.bf16.msra.mxu0 %v4784
    %5218 = vmatpush.bf16.msra.mxu0 %v4780
    %5219 = vmatpush.bf16.msra.mxu0 %v4776
    %5220 = vmatmul.bf16.gmra.mxu0 %v3610
    %v5221 = vpop.f32.mrf.mxu0
    %v5222 = vadd.f32 %v5209, %v5221
    %v5223 = vpop.f32.mrf.mxu0
    %5224 = vdwg.mxu0
    %5225 = vmatpush.bf16.msra.mxu0 %v4836
    %5226 = vmatpush.bf16.msra.mxu0 %v4832
    %5227 = vmatpush.bf16.msra.mxu0 %v4828
    %5228 = vmatpush.bf16.msra.mxu0 %v4824
    %5229 = vmatpush.bf16.msra.mxu0 %v4820
    %5230 = vmatpush.bf16.msra.mxu0 %v4816
    %5231 = vmatpush.bf16.msra.mxu0 %v4812
    %5232 = vmatpush.bf16.msra.mxu0 %v4808
    %5233 = vmatmul.bf16.gmra.mxu0 %v3611
    %v5234 = vpop.f32.mrf.mxu0
    %v5235 = vadd.f32 %v5222, %v5234
    %v5236 = vpop.f32.mrf.mxu0
    %5237 = vdwg.mxu0
    %5238 = vmatpush.bf16.msra.mxu0 %v4868
    %5239 = vmatpush.bf16.msra.mxu0 %v4864
    %5240 = vmatpush.bf16.msra.mxu0 %v4860
    %5241 = vmatpush.bf16.msra.mxu0 %v4856
    %5242 = vmatpush.bf16.msra.mxu0 %v4852
    %5243 = vmatpush.bf16.msra.mxu0 %v4848
    %5244 = vmatpush.bf16.msra.mxu0 %v4844
    %5245 = vmatpush.bf16.msra.mxu0 %v4840
    %5246 = vmatmul.bf16.gmra.mxu0 %v3612
    %v5247 = vpop.f32.mrf.mxu0
    %v5248 = vadd.f32 %v5235, %v5247
    %v5249 = vpop.f32.mrf.mxu0
    %5250 = vdwg.mxu0
    %5251 = vmatpush.bf16.msra.mxu0 %v4900
    %5252 = vmatpush.bf16.msra.mxu0 %v4896
    %5253 = vmatpush.bf16.msra.mxu0 %v4892
    %5254 = vmatpush.bf16.msra.mxu0 %v4888
    %5255 = vmatpush.bf16.msra.mxu0 %v4884
    %5256 = vmatpush.bf16.msra.mxu0 %v4880
    %5257 = vmatpush.bf16.msra.mxu0 %v4876
    %5258 = vmatpush.bf16.msra.mxu0 %v4872
    %5259 = vmatmul.bf16.gmra.mxu0 %v3613
    %v5260 = vpop.f32.mrf.mxu0
    %v5261 = vadd.f32 %v5248, %v5260
    %v5262 = vpop.f32.mrf.mxu0
    %5263 = vdwg.mxu0
    %5264 = vmatpush.bf16.msra.mxu0 %v4677
    %5265 = vmatpush.bf16.msra.mxu0 %v4673
    %5266 = vmatpush.bf16.msra.mxu0 %v4669
    %5267 = vmatpush.bf16.msra.mxu0 %v4665
    %5268 = vmatpush.bf16.msra.mxu0 %v4661
    %5269 = vmatpush.bf16.msra.mxu0 %v4657
    %5270 = vmatpush.bf16.msra.mxu0 %v4653
    %5271 = vmatpush.bf16.msra.mxu0 %v4649
    %5272 = vmatmul.bf16.gmra.mxu0 %v3606
    %v5273 = vpop.f32.mrf.mxu0
    %v5274 = vadd.f32 %v3873, %v5273
    %v5275 = vpop.f32.mrf.mxu0
    %5276 = vdwg.mxu0
    %5277 = vmatpush.bf16.msra.mxu0 %v4709
    %5278 = vmatpush.bf16.msra.mxu0 %v4705
    %5279 = vmatpush.bf16.msra.mxu0 %v4701
    %5280 = vmatpush.bf16.msra.mxu0 %v4697
    %5281 = vmatpush.bf16.msra.mxu0 %v4693
    %5282 = vmatpush.bf16.msra.mxu0 %v4689
    %5283 = vmatpush.bf16.msra.mxu0 %v4685
    %5284 = vmatpush.bf16.msra.mxu0 %v4681
    %5285 = vmatmul.bf16.gmra.mxu0 %v3607
    %v5286 = vpop.f32.mrf.mxu0
    %v5287 = vadd.f32 %v5274, %v5286
    %v5288 = vpop.f32.mrf.mxu0
    %5289 = vdwg.mxu0
    %5290 = vmatpush.bf16.msra.mxu0 %v4741
    %5291 = vmatpush.bf16.msra.mxu0 %v4737
    %5292 = vmatpush.bf16.msra.mxu0 %v4733
    %5293 = vmatpush.bf16.msra.mxu0 %v4729
    %5294 = vmatpush.bf16.msra.mxu0 %v4725
    %5295 = vmatpush.bf16.msra.mxu0 %v4721
    %5296 = vmatpush.bf16.msra.mxu0 %v4717
    %5297 = vmatpush.bf16.msra.mxu0 %v4713
    %5298 = vmatmul.bf16.gmra.mxu0 %v3608
    %v5299 = vpop.f32.mrf.mxu0
    %v5300 = vadd.f32 %v5287, %v5299
    %v5301 = vpop.f32.mrf.mxu0
    %5302 = vdwg.mxu0
    %5303 = vmatpush.bf16.msra.mxu0 %v4773
    %5304 = vmatpush.bf16.msra.mxu0 %v4769
    %5305 = vmatpush.bf16.msra.mxu0 %v4765
    %5306 = vmatpush.bf16.msra.mxu0 %v4761
    %5307 = vmatpush.bf16.msra.mxu0 %v4757
    %5308 = vmatpush.bf16.msra.mxu0 %v4753
    %5309 = vmatpush.bf16.msra.mxu0 %v4749
    %5310 = vmatpush.bf16.msra.mxu0 %v4745
    %5311 = vmatmul.bf16.gmra.mxu0 %v3609
    %v5312 = vpop.f32.mrf.mxu0
    %v5313 = vadd.f32 %v5300, %v5312
    %v5314 = vpop.f32.mrf.mxu0
    %5315 = vdwg.mxu0
    %5316 = vmatpush.bf16.msra.mxu0 %v4805
    %5317 = vmatpush.bf16.msra.mxu0 %v4801
    %5318 = vmatpush.bf16.msra.mxu0 %v4797
    %5319 = vmatpush.bf16.msra.mxu0 %v4793
    %5320 = vmatpush.bf16.msra.mxu0 %v4789
    %5321 = vmatpush.bf16.msra.mxu0 %v4785
    %5322 = vmatpush.bf16.msra.mxu0 %v4781
    %5323 = vmatpush.bf16.msra.mxu0 %v4777
    %5324 = vmatmul.bf16.gmra.mxu0 %v3610
    %v5325 = vpop.f32.mrf.mxu0
    %v5326 = vadd.f32 %v5313, %v5325
    %v5327 = vpop.f32.mrf.mxu0
    %5328 = vdwg.mxu0
    %5329 = vmatpush.bf16.msra.mxu0 %v4837
    %5330 = vmatpush.bf16.msra.mxu0 %v4833
    %5331 = vmatpush.bf16.msra.mxu0 %v4829
    %5332 = vmatpush.bf16.msra.mxu0 %v4825
    %5333 = vmatpush.bf16.msra.mxu0 %v4821
    %5334 = vmatpush.bf16.msra.mxu0 %v4817
    %5335 = vmatpush.bf16.msra.mxu0 %v4813
    %5336 = vmatpush.bf16.msra.mxu0 %v4809
    %5337 = vmatmul.bf16.gmra.mxu0 %v3611
    %v5338 = vpop.f32.mrf.mxu0
    %v5339 = vadd.f32 %v5326, %v5338
    %v5340 = vpop.f32.mrf.mxu0
    %5341 = vdwg.mxu0
    %5342 = vmatpush.bf16.msra.mxu0 %v4869
    %5343 = vmatpush.bf16.msra.mxu0 %v4865
    %5344 = vmatpush.bf16.msra.mxu0 %v4861
    %5345 = vmatpush.bf16.msra.mxu0 %v4857
    %5346 = vmatpush.bf16.msra.mxu0 %v4853
    %5347 = vmatpush.bf16.msra.mxu0 %v4849
    %5348 = vmatpush.bf16.msra.mxu0 %v4845
    %5349 = vmatpush.bf16.msra.mxu0 %v4841
    %5350 = vmatmul.bf16.gmra.mxu0 %v3612
    %v5351 = vpop.f32.mrf.mxu0
    %v5352 = vadd.f32 %v5339, %v5351
    %v5353 = vpop.f32.mrf.mxu0
    %5354 = vdwg.mxu0
    %5355 = vmatpush.bf16.msra.mxu0 %v4901
    %5356 = vmatpush.bf16.msra.mxu0 %v4897
    %5357 = vmatpush.bf16.msra.mxu0 %v4893
    %5358 = vmatpush.bf16.msra.mxu0 %v4889
    %5359 = vmatpush.bf16.msra.mxu0 %v4885
    %5360 = vmatpush.bf16.msra.mxu0 %v4881
    %5361 = vmatpush.bf16.msra.mxu0 %v4877
    %5362 = vmatpush.bf16.msra.mxu0 %v4873
    %5363 = vmatmul.bf16.gmra.mxu0 %v3613
    %v5364 = vpop.f32.mrf.mxu0
    %v5365 = vadd.f32 %v5352, %v5364
    %v5366 = vpop.f32.mrf.mxu0
    %5367 = vdwg.mxu0
    %5368 = vmatpush.bf16.msra.mxu0 %v4678
    %5369 = vmatpush.bf16.msra.mxu0 %v4674
    %5370 = vmatpush.bf16.msra.mxu0 %v4670
    %5371 = vmatpush.bf16.msra.mxu0 %v4666
    %5372 = vmatpush.bf16.msra.mxu0 %v4662
    %5373 = vmatpush.bf16.msra.mxu0 %v4658
    %5374 = vmatpush.bf16.msra.mxu0 %v4654
    %5375 = vmatpush.bf16.msra.mxu0 %v4650
    %5376 = vmatmul.bf16.gmra.mxu0 %v3606
    %v5377 = vpop.f32.mrf.mxu0
    %v5378 = vadd.f32 %v3874, %v5377
    %v5379 = vpop.f32.mrf.mxu0
    %5380 = vdwg.mxu0
    %5381 = vmatpush.bf16.msra.mxu0 %v4710
    %5382 = vmatpush.bf16.msra.mxu0 %v4706
    %5383 = vmatpush.bf16.msra.mxu0 %v4702
    %5384 = vmatpush.bf16.msra.mxu0 %v4698
    %5385 = vmatpush.bf16.msra.mxu0 %v4694
    %5386 = vmatpush.bf16.msra.mxu0 %v4690
    %5387 = vmatpush.bf16.msra.mxu0 %v4686
    %5388 = vmatpush.bf16.msra.mxu0 %v4682
    %5389 = vmatmul.bf16.gmra.mxu0 %v3607
    %v5390 = vpop.f32.mrf.mxu0
    %v5391 = vadd.f32 %v5378, %v5390
    %v5392 = vpop.f32.mrf.mxu0
    %5393 = vdwg.mxu0
    %5394 = vmatpush.bf16.msra.mxu0 %v4742
    %5395 = vmatpush.bf16.msra.mxu0 %v4738
    %5396 = vmatpush.bf16.msra.mxu0 %v4734
    %5397 = vmatpush.bf16.msra.mxu0 %v4730
    %5398 = vmatpush.bf16.msra.mxu0 %v4726
    %5399 = vmatpush.bf16.msra.mxu0 %v4722
    %5400 = vmatpush.bf16.msra.mxu0 %v4718
    %5401 = vmatpush.bf16.msra.mxu0 %v4714
    %5402 = vmatmul.bf16.gmra.mxu0 %v3608
    %v5403 = vpop.f32.mrf.mxu0
    %v5404 = vadd.f32 %v5391, %v5403
    %v5405 = vpop.f32.mrf.mxu0
    %5406 = vdwg.mxu0
    %5407 = vmatpush.bf16.msra.mxu0 %v4774
    %5408 = vmatpush.bf16.msra.mxu0 %v4770
    %5409 = vmatpush.bf16.msra.mxu0 %v4766
    %5410 = vmatpush.bf16.msra.mxu0 %v4762
    %5411 = vmatpush.bf16.msra.mxu0 %v4758
    %5412 = vmatpush.bf16.msra.mxu0 %v4754
    %5413 = vmatpush.bf16.msra.mxu0 %v4750
    %5414 = vmatpush.bf16.msra.mxu0 %v4746
    %5415 = vmatmul.bf16.gmra.mxu0 %v3609
    %v5416 = vpop.f32.mrf.mxu0
    %v5417 = vadd.f32 %v5404, %v5416
    %v5418 = vpop.f32.mrf.mxu0
    %5419 = vdwg.mxu0
    %5420 = vmatpush.bf16.msra.mxu0 %v4806
    %5421 = vmatpush.bf16.msra.mxu0 %v4802
    %5422 = vmatpush.bf16.msra.mxu0 %v4798
    %5423 = vmatpush.bf16.msra.mxu0 %v4794
    %5424 = vmatpush.bf16.msra.mxu0 %v4790
    %5425 = vmatpush.bf16.msra.mxu0 %v4786
    %5426 = vmatpush.bf16.msra.mxu0 %v4782
    %5427 = vmatpush.bf16.msra.mxu0 %v4778
    %5428 = vmatmul.bf16.gmra.mxu0 %v3610
    %v5429 = vpop.f32.mrf.mxu0
    %v5430 = vadd.f32 %v5417, %v5429
    %v5431 = vpop.f32.mrf.mxu0
    %5432 = vdwg.mxu0
    %5433 = vmatpush.bf16.msra.mxu0 %v4838
    %5434 = vmatpush.bf16.msra.mxu0 %v4834
    %5435 = vmatpush.bf16.msra.mxu0 %v4830
    %5436 = vmatpush.bf16.msra.mxu0 %v4826
    %5437 = vmatpush.bf16.msra.mxu0 %v4822
    %5438 = vmatpush.bf16.msra.mxu0 %v4818
    %5439 = vmatpush.bf16.msra.mxu0 %v4814
    %5440 = vmatpush.bf16.msra.mxu0 %v4810
    %5441 = vmatmul.bf16.gmra.mxu0 %v3611
    %v5442 = vpop.f32.mrf.mxu0
    %v5443 = vadd.f32 %v5430, %v5442
    %v5444 = vpop.f32.mrf.mxu0
    %5445 = vdwg.mxu0
    %5446 = vmatpush.bf16.msra.mxu0 %v4870
    %5447 = vmatpush.bf16.msra.mxu0 %v4866
    %5448 = vmatpush.bf16.msra.mxu0 %v4862
    %5449 = vmatpush.bf16.msra.mxu0 %v4858
    %5450 = vmatpush.bf16.msra.mxu0 %v4854
    %5451 = vmatpush.bf16.msra.mxu0 %v4850
    %5452 = vmatpush.bf16.msra.mxu0 %v4846
    %5453 = vmatpush.bf16.msra.mxu0 %v4842
    %5454 = vmatmul.bf16.gmra.mxu0 %v3612
    %v5455 = vpop.f32.mrf.mxu0
    %v5456 = vadd.f32 %v5443, %v5455
    %v5457 = vpop.f32.mrf.mxu0
    %5458 = vdwg.mxu0
    %5459 = vmatpush.bf16.msra.mxu0 %v4902
    %5460 = vmatpush.bf16.msra.mxu0 %v4898
    %5461 = vmatpush.bf16.msra.mxu0 %v4894
    %5462 = vmatpush.bf16.msra.mxu0 %v4890
    %5463 = vmatpush.bf16.msra.mxu0 %v4886
    %5464 = vmatpush.bf16.msra.mxu0 %v4882
    %5465 = vmatpush.bf16.msra.mxu0 %v4878
    %5466 = vmatpush.bf16.msra.mxu0 %v4874
    %5467 = vmatmul.bf16.gmra.mxu0 %v3613
    %v5468 = vpop.f32.mrf.mxu0
    %v5469 = vadd.f32 %v5456, %v5468
    %v5470 = vpop.f32.mrf.mxu0
    %5471 = vdwg.mxu0
    %5472 = vmatpush.bf16.msra.mxu0 %v4679
    %5473 = vmatpush.bf16.msra.mxu0 %v4675
    %5474 = vmatpush.bf16.msra.mxu0 %v4671
    %5475 = vmatpush.bf16.msra.mxu0 %v4667
    %5476 = vmatpush.bf16.msra.mxu0 %v4663
    %5477 = vmatpush.bf16.msra.mxu0 %v4659
    %5478 = vmatpush.bf16.msra.mxu0 %v4655
    %5479 = vmatpush.bf16.msra.mxu0 %v4651
    %5480 = vmatmul.bf16.gmra.mxu0 %v3606
    %v5481 = vpop.f32.mrf.mxu0
    %v5482 = vadd.f32 %v3875, %v5481
    %v5483 = vpop.f32.mrf.mxu0
    %5484 = vdwg.mxu0
    %5485 = vmatpush.bf16.msra.mxu0 %v4711
    %5486 = vmatpush.bf16.msra.mxu0 %v4707
    %5487 = vmatpush.bf16.msra.mxu0 %v4703
    %5488 = vmatpush.bf16.msra.mxu0 %v4699
    %5489 = vmatpush.bf16.msra.mxu0 %v4695
    %5490 = vmatpush.bf16.msra.mxu0 %v4691
    %5491 = vmatpush.bf16.msra.mxu0 %v4687
    %5492 = vmatpush.bf16.msra.mxu0 %v4683
    %5493 = vmatmul.bf16.gmra.mxu0 %v3607
    %v5494 = vpop.f32.mrf.mxu0
    %v5495 = vadd.f32 %v5482, %v5494
    %v5496 = vpop.f32.mrf.mxu0
    %5497 = vdwg.mxu0
    %5498 = vmatpush.bf16.msra.mxu0 %v4743
    %5499 = vmatpush.bf16.msra.mxu0 %v4739
    %5500 = vmatpush.bf16.msra.mxu0 %v4735
    %5501 = vmatpush.bf16.msra.mxu0 %v4731
    %5502 = vmatpush.bf16.msra.mxu0 %v4727
    %5503 = vmatpush.bf16.msra.mxu0 %v4723
    %5504 = vmatpush.bf16.msra.mxu0 %v4719
    %5505 = vmatpush.bf16.msra.mxu0 %v4715
    %5506 = vmatmul.bf16.gmra.mxu0 %v3608
    %v5507 = vpop.f32.mrf.mxu0
    %v5508 = vadd.f32 %v5495, %v5507
    %v5509 = vpop.f32.mrf.mxu0
    %5510 = vdwg.mxu0
    %5511 = vmatpush.bf16.msra.mxu0 %v4775
    %5512 = vmatpush.bf16.msra.mxu0 %v4771
    %5513 = vmatpush.bf16.msra.mxu0 %v4767
    %5514 = vmatpush.bf16.msra.mxu0 %v4763
    %5515 = vmatpush.bf16.msra.mxu0 %v4759
    %5516 = vmatpush.bf16.msra.mxu0 %v4755
    %5517 = vmatpush.bf16.msra.mxu0 %v4751
    %5518 = vmatpush.bf16.msra.mxu0 %v4747
    %5519 = vmatmul.bf16.gmra.mxu0 %v3609
    %v5520 = vpop.f32.mrf.mxu0
    %v5521 = vadd.f32 %v5508, %v5520
    %v5522 = vpop.f32.mrf.mxu0
    %5523 = vdwg.mxu0
    %5524 = vmatpush.bf16.msra.mxu0 %v4807
    %5525 = vmatpush.bf16.msra.mxu0 %v4803
    %5526 = vmatpush.bf16.msra.mxu0 %v4799
    %5527 = vmatpush.bf16.msra.mxu0 %v4795
    %5528 = vmatpush.bf16.msra.mxu0 %v4791
    %5529 = vmatpush.bf16.msra.mxu0 %v4787
    %5530 = vmatpush.bf16.msra.mxu0 %v4783
    %5531 = vmatpush.bf16.msra.mxu0 %v4779
    %5532 = vmatmul.bf16.gmra.mxu0 %v3610
    %v5533 = vpop.f32.mrf.mxu0
    %v5534 = vadd.f32 %v5521, %v5533
    %v5535 = vpop.f32.mrf.mxu0
    %5536 = vdwg.mxu0
    %5537 = vmatpush.bf16.msra.mxu0 %v4839
    %5538 = vmatpush.bf16.msra.mxu0 %v4835
    %5539 = vmatpush.bf16.msra.mxu0 %v4831
    %5540 = vmatpush.bf16.msra.mxu0 %v4827
    %5541 = vmatpush.bf16.msra.mxu0 %v4823
    %5542 = vmatpush.bf16.msra.mxu0 %v4819
    %5543 = vmatpush.bf16.msra.mxu0 %v4815
    %5544 = vmatpush.bf16.msra.mxu0 %v4811
    %5545 = vmatmul.bf16.gmra.mxu0 %v3611
    %v5546 = vpop.f32.mrf.mxu0
    %v5547 = vadd.f32 %v5534, %v5546
    %v5548 = vpop.f32.mrf.mxu0
    %5549 = vdwg.mxu0
    %5550 = vmatpush.bf16.msra.mxu0 %v4871
    %5551 = vmatpush.bf16.msra.mxu0 %v4867
    %5552 = vmatpush.bf16.msra.mxu0 %v4863
    %5553 = vmatpush.bf16.msra.mxu0 %v4859
    %5554 = vmatpush.bf16.msra.mxu0 %v4855
    %5555 = vmatpush.bf16.msra.mxu0 %v4851
    %5556 = vmatpush.bf16.msra.mxu0 %v4847
    %5557 = vmatpush.bf16.msra.mxu0 %v4843
    %5558 = vmatmul.bf16.gmra.mxu0 %v3612
    %v5559 = vpop.f32.mrf.mxu0
    %v5560 = vadd.f32 %v5547, %v5559
    %v5561 = vpop.f32.mrf.mxu0
    %5562 = vdwg.mxu0
    %5563 = vmatpush.bf16.msra.mxu0 %v4903
    %5564 = vmatpush.bf16.msra.mxu0 %v4899
    %5565 = vmatpush.bf16.msra.mxu0 %v4895
    %5566 = vmatpush.bf16.msra.mxu0 %v4891
    %5567 = vmatpush.bf16.msra.mxu0 %v4887
    %5568 = vmatpush.bf16.msra.mxu0 %v4883
    %5569 = vmatpush.bf16.msra.mxu0 %v4879
    %5570 = vmatpush.bf16.msra.mxu0 %v4875
    %5571 = vmatmul.bf16.gmra.mxu0 %v3613
    %v5572 = vpop.f32.mrf.mxu0
    %v5573 = vadd.f32 %v5560, %v5572
    %v5574 = vpop.f32.mrf.mxu0
    %5575 = vdwg.mxu0
    %v5576 = vmax.f32 %v5261, 0.0
    %v5577 = vmax.f32 %v5365, 0.0
    %v5578 = vmax.f32 %v5469, 0.0
    %v5579 = vmax.f32 %v5573, 0.0
    %v5580 = vpack.c.bf16 %v5576, %v5576
    %v5581 = vpack.c.bf16 %v5577, %v5577
    %v5582 = vpack.c.bf16 %v5578, %v5578
    %v5583 = vpack.c.bf16 %v5579, %v5579
    %v5584 = vld [vmem:[#allocation10] sm:$0xff]
    %v5585 = vld [vmem:[#allocation10 + $0x8] sm:$0xff]
    %v5586 = vld [vmem:[#allocation10 + $0x10] sm:$0xff]
    %v5587 = vld [vmem:[#allocation10 + $0x18] sm:$0xff]
    %v5588 = vld [vmem:[#allocation10 + $0x20] sm:$0xff]
    %v5589 = vld [vmem:[#allocation10 + $0x28] sm:$0xff]
    %v5590 = vld [vmem:[#allocation10 + $0x30] sm:$0xff]
    %v5591 = vld [vmem:[#allocation10 + $0x38] sm:$0xff]
    %v5592 = vld [vmem:[#allocation10 + $0x40] sm:$0xff]
    %v5593 = vld [vmem:[#allocation10 + $0x48] sm:$0xff]
    %v5594 = vld [vmem:[#allocation10 + $0x50] sm:$0xff]
    %v5595 = vld [vmem:[#allocation10 + $0x58] sm:$0xff]
    %v5596 = vld [vmem:[#allocation10 + $0x60] sm:$0xff]
    %v5597 = vld [vmem:[#allocation10 + $0x68] sm:$0xff]
    %v5598 = vld [vmem:[#allocation10 + $0x70] sm:$0xff]
    %v5599 = vld [vmem:[#allocation10 + $0x78] sm:$0xff]
    %v5600 = vld [vmem:[#allocation10 + $0x80] sm:$0xff]
    %v5601 = vld [vmem:[#allocation10 + $0x88] sm:$0xff]
    %v5602 = vld [vmem:[#allocation10 + $0x90] sm:$0xff]
    %v5603 = vld [vmem:[#allocation10 + $0x98] sm:$0xff]
    %v5604 = vld [vmem:[#allocation10 + $0xa0] sm:$0xff]
    %v5605 = vld [vmem:[#allocation10 + $0xa8] sm:$0xff]
    %v5606 = vld [vmem:[#allocation10 + $0xb0] sm:$0xff]
    %v5607 = vld [vmem:[#allocation10 + $0xb8] sm:$0xff]
    %v5608 = vld [vmem:[#allocation10 + $0xc0] sm:$0xff]
    %v5609 = vld [vmem:[#allocation10 + $0xc8] sm:$0xff]
    %v5610 = vld [vmem:[#allocation10 + $0xd0] sm:$0xff]
    %v5611 = vld [vmem:[#allocation10 + $0xd8] sm:$0xff]
    %v5612 = vld [vmem:[#allocation10 + $0xe0] sm:$0xff]
    %v5613 = vld [vmem:[#allocation10 + $0xe8] sm:$0xff]
    %v5614 = vld [vmem:[#allocation10 + $0xf0] sm:$0xff]
    %v5615 = vld [vmem:[#allocation10 + $0xf8] sm:$0xff]
    %v5616 = vld [vmem:[#allocation10 + $0x100] sm:$0xff]
    %v5617 = vld [vmem:[#allocation10 + $0x108] sm:$0xff]
    %v5618 = vld [vmem:[#allocation10 + $0x110] sm:$0xff]
    %v5619 = vld [vmem:[#allocation10 + $0x118] sm:$0xff]
    %v5620 = vld [vmem:[#allocation10 + $0x120] sm:$0xff]
    %v5621 = vld [vmem:[#allocation10 + $0x128] sm:$0xff]
    %v5622 = vld [vmem:[#allocation10 + $0x130] sm:$0xff]
    %v5623 = vld [vmem:[#allocation10 + $0x138] sm:$0xff]
    %v5624 = vld [vmem:[#allocation10 + $0x140] sm:$0xff]
    %v5625 = vld [vmem:[#allocation10 + $0x148] sm:$0xff]
    %v5626 = vld [vmem:[#allocation10 + $0x150] sm:$0xff]
    %v5627 = vld [vmem:[#allocation10 + $0x158] sm:$0xff]
    %v5628 = vld [vmem:[#allocation10 + $0x160] sm:$0xff]
    %v5629 = vld [vmem:[#allocation10 + $0x168] sm:$0xff]
    %v5630 = vld [vmem:[#allocation10 + $0x170] sm:$0xff]
    %v5631 = vld [vmem:[#allocation10 + $0x178] sm:$0xff]
    %v5632 = vld [vmem:[#allocation10 + $0x180] sm:$0xff]
    %v5633 = vld [vmem:[#allocation10 + $0x188] sm:$0xff]
    %v5634 = vld [vmem:[#allocation10 + $0x190] sm:$0xff]
    %v5635 = vld [vmem:[#allocation10 + $0x198] sm:$0xff]
    %v5636 = vld [vmem:[#allocation10 + $0x1a0] sm:$0xff]
    %v5637 = vld [vmem:[#allocation10 + $0x1a8] sm:$0xff]
    %v5638 = vld [vmem:[#allocation10 + $0x1b0] sm:$0xff]
    %v5639 = vld [vmem:[#allocation10 + $0x1b8] sm:$0xff]
    %v5640 = vld [vmem:[#allocation10 + $0x1c0] sm:$0xff]
    %v5641 = vld [vmem:[#allocation10 + $0x1c8] sm:$0xff]
    %v5642 = vld [vmem:[#allocation10 + $0x1d0] sm:$0xff]
    %v5643 = vld [vmem:[#allocation10 + $0x1d8] sm:$0xff]
    %v5644 = vld [vmem:[#allocation10 + $0x1e0] sm:$0xff]
    %v5645 = vld [vmem:[#allocation10 + $0x1e8] sm:$0xff]
    %v5646 = vld [vmem:[#allocation10 + $0x1f0] sm:$0xff]
    %v5647 = vld [vmem:[#allocation10 + $0x1f8] sm:$0xff]
    %v5648 = vld [vmem:[#allocation11] sm:$0x3]
    %v5650 = vperm.slane %v5648, 0
    %v5651 = vperm.slane %v5648, 1
    %v5718 = vunpack.c.l.b16 %v5584
    %v5719 = vunpack.c.h.b16 %v5584
    %v5720 = vunpack.c.l.b16 %v5585
    %v5721 = vunpack.c.h.b16 %v5585
    %v5722 = vunpack.c.l.b16 %v5586
    %v5723 = vunpack.c.h.b16 %v5586
    %v5724 = vunpack.c.l.b16 %v5587
    %v5725 = vunpack.c.h.b16 %v5587
    %v5726 = vunpack.c.l.b16 %v5588
    %v5727 = vunpack.c.h.b16 %v5588
    %v5728 = vunpack.c.l.b16 %v5589
    %v5729 = vunpack.c.h.b16 %v5589
    %v5730 = vunpack.c.l.b16 %v5590
    %v5731 = vunpack.c.h.b16 %v5590
    %v5732 = vunpack.c.l.b16 %v5591
    %v5733 = vunpack.c.h.b16 %v5591
    %v5734 = vunpack.c.l.b16 %v5592
    %v5735 = vunpack.c.h.b16 %v5592
    %v5736 = vunpack.c.l.b16 %v5593
    %v5737 = vunpack.c.h.b16 %v5593
    %v5738 = vunpack.c.l.b16 %v5594
    %v5739 = vunpack.c.h.b16 %v5594
    %v5740 = vunpack.c.l.b16 %v5595
    %v5741 = vunpack.c.h.b16 %v5595
    %v5742 = vunpack.c.l.b16 %v5596
    %v5743 = vunpack.c.h.b16 %v5596
    %v5744 = vunpack.c.l.b16 %v5597
    %v5745 = vunpack.c.h.b16 %v5597
    %v5746 = vunpack.c.l.b16 %v5598
    %v5747 = vunpack.c.h.b16 %v5598
    %v5748 = vunpack.c.l.b16 %v5599
    %v5749 = vunpack.c.h.b16 %v5599
    %v5750 = vunpack.c.l.b16 %v5600
    %v5751 = vunpack.c.h.b16 %v5600
    %v5752 = vunpack.c.l.b16 %v5601
    %v5753 = vunpack.c.h.b16 %v5601
    %v5754 = vunpack.c.l.b16 %v5602
    %v5755 = vunpack.c.h.b16 %v5602
    %v5756 = vunpack.c.l.b16 %v5603
    %v5757 = vunpack.c.h.b16 %v5603
    %v5758 = vunpack.c.l.b16 %v5604
    %v5759 = vunpack.c.h.b16 %v5604
    %v5760 = vunpack.c.l.b16 %v5605
    %v5761 = vunpack.c.h.b16 %v5605
    %v5762 = vunpack.c.l.b16 %v5606
    %v5763 = vunpack.c.h.b16 %v5606
    %v5764 = vunpack.c.l.b16 %v5607
    %v5765 = vunpack.c.h.b16 %v5607
    %v5766 = vunpack.c.l.b16 %v5608
    %v5767 = vunpack.c.h.b16 %v5608
    %v5768 = vunpack.c.l.b16 %v5609
    %v5769 = vunpack.c.h.b16 %v5609
    %v5770 = vunpack.c.l.b16 %v5610
    %v5771 = vunpack.c.h.b16 %v5610
    %v5772 = vunpack.c.l.b16 %v5611
    %v5773 = vunpack.c.h.b16 %v5611
    %v5774 = vunpack.c.l.b16 %v5612
    %v5775 = vunpack.c.h.b16 %v5612
    %v5776 = vunpack.c.l.b16 %v5613
    %v5777 = vunpack.c.h.b16 %v5613
    %v5778 = vunpack.c.l.b16 %v5614
    %v5779 = vunpack.c.h.b16 %v5614
    %v5780 = vunpack.c.l.b16 %v5615
    %v5781 = vunpack.c.h.b16 %v5615
    %v5782 = vunpack.c.l.b16 %v5616
    %v5783 = vunpack.c.h.b16 %v5616
    %v5784 = vunpack.c.l.b16 %v5617
    %v5785 = vunpack.c.h.b16 %v5617
    %v5786 = vunpack.c.l.b16 %v5618
    %v5787 = vunpack.c.h.b16 %v5618
    %v5788 = vunpack.c.l.b16 %v5619
    %v5789 = vunpack.c.h.b16 %v5619
    %v5790 = vunpack.c.l.b16 %v5620
    %v5791 = vunpack.c.h.b16 %v5620
    %v5792 = vunpack.c.l.b16 %v5621
    %v5793 = vunpack.c.h.b16 %v5621
    %v5794 = vunpack.c.l.b16 %v5622
    %v5795 = vunpack.c.h.b16 %v5622
    %v5796 = vunpack.c.l.b16 %v5623
    %v5797 = vunpack.c.h.b16 %v5623
    %v5798 = vunpack.c.l.b16 %v5624
    %v5799 = vunpack.c.h.b16 %v5624
    %v5800 = vunpack.c.l.b16 %v5625
    %v5801 = vunpack.c.h.b16 %v5625
    %v5802 = vunpack.c.l.b16 %v5626
    %v5803 = vunpack.c.h.b16 %v5626
    %v5804 = vunpack.c.l.b16 %v5627
    %v5805 = vunpack.c.h.b16 %v5627
    %v5806 = vunpack.c.l.b16 %v5628
    %v5807 = vunpack.c.h.b16 %v5628
    %v5808 = vunpack.c.l.b16 %v5629
    %v5809 = vunpack.c.h.b16 %v5629
    %v5810 = vunpack.c.l.b16 %v5630
    %v5811 = vunpack.c.h.b16 %v5630
    %v5812 = vunpack.c.l.b16 %v5631
    %v5813 = vunpack.c.h.b16 %v5631
    %v5814 = vunpack.c.l.b16 %v5632
    %v5815 = vunpack.c.h.b16 %v5632
    %v5816 = vunpack.c.l.b16 %v5633
    %v5817 = vunpack.c.h.b16 %v5633
    %v5818 = vunpack.c.l.b16 %v5634
    %v5819 = vunpack.c.h.b16 %v5634
    %v5820 = vunpack.c.l.b16 %v5635
    %v5821 = vunpack.c.h.b16 %v5635
    %v5822 = vunpack.c.l.b16 %v5636
    %v5823 = vunpack.c.h.b16 %v5636
    %v5824 = vunpack.c.l.b16 %v5637
    %v5825 = vunpack.c.h.b16 %v5637
    %v5826 = vunpack.c.l.b16 %v5638
    %v5827 = vunpack.c.h.b16 %v5638
    %v5828 = vunpack.c.l.b16 %v5639
    %v5829 = vunpack.c.h.b16 %v5639
    %v5830 = vunpack.c.l.b16 %v5640
    %v5831 = vunpack.c.h.b16 %v5640
    %v5832 = vunpack.c.l.b16 %v5641
    %v5833 = vunpack.c.h.b16 %v5641
    %v5834 = vunpack.c.l.b16 %v5642
    %v5835 = vunpack.c.h.b16 %v5642
    %v5836 = vunpack.c.l.b16 %v5643
    %v5837 = vunpack.c.h.b16 %v5643
    %v5838 = vunpack.c.l.b16 %v5644
    %v5839 = vunpack.c.h.b16 %v5644
    %v5840 = vunpack.c.l.b16 %v5645
    %v5841 = vunpack.c.h.b16 %v5645
    %v5842 = vunpack.c.l.b16 %v5646
    %v5843 = vunpack.c.h.b16 %v5646
    %v5844 = vunpack.c.l.b16 %v5647
    %v5845 = vunpack.c.h.b16 %v5647
    %v5846 = vpack.c.b16 %v5720, %v5718
    %v5847 = vpack.c.b16 %v5721, %v5719
    %v5848 = vpack.c.b16 %v5724, %v5722
    %v5849 = vpack.c.b16 %v5725, %v5723
    %v5850 = vpack.c.b16 %v5728, %v5726
    %v5851 = vpack.c.b16 %v5729, %v5727
    %v5852 = vpack.c.b16 %v5732, %v5730
    %v5853 = vpack.c.b16 %v5733, %v5731
    %v5854 = vpack.c.b16 %v5736, %v5734
    %v5855 = vpack.c.b16 %v5737, %v5735
    %v5856 = vpack.c.b16 %v5740, %v5738
    %v5857 = vpack.c.b16 %v5741, %v5739
    %v5858 = vpack.c.b16 %v5744, %v5742
    %v5859 = vpack.c.b16 %v5745, %v5743
    %v5860 = vpack.c.b16 %v5748, %v5746
    %v5861 = vpack.c.b16 %v5749, %v5747
    %v5862 = vpack.c.b16 %v5752, %v5750
    %v5863 = vpack.c.b16 %v5753, %v5751
    %v5864 = vpack.c.b16 %v5756, %v5754
    %v5865 = vpack.c.b16 %v5757, %v5755
    %v5866 = vpack.c.b16 %v5760, %v5758
    %v5867 = vpack.c.b16 %v5761, %v5759
    %v5868 = vpack.c.b16 %v5764, %v5762
    %v5869 = vpack.c.b16 %v5765, %v5763
    %v5870 = vpack.c.b16 %v5768, %v5766
    %v5871 = vpack.c.b16 %v5769, %v5767
    %v5872 = vpack.c.b16 %v5772, %v5770
    %v5873 = vpack.c.b16 %v5773, %v5771
    %v5874 = vpack.c.b16 %v5776, %v5774
    %v5875 = vpack.c.b16 %v5777, %v5775
    %v5876 = vpack.c.b16 %v5780, %v5778
    %v5877 = vpack.c.b16 %v5781, %v5779
    %v5878 = vpack.c.b16 %v5784, %v5782
    %v5879 = vpack.c.b16 %v5785, %v5783
    %v5880 = vpack.c.b16 %v5788, %v5786
    %v5881 = vpack.c.b16 %v5789, %v5787
    %v5882 = vpack.c.b16 %v5792, %v5790
    %v5883 = vpack.c.b16 %v5793, %v5791
    %v5884 = vpack.c.b16 %v5796, %v5794
    %v5885 = vpack.c.b16 %v5797, %v5795
    %v5886 = vpack.c.b16 %v5800, %v5798
    %v5887 = vpack.c.b16 %v5801, %v5799
    %v5888 = vpack.c.b16 %v5804, %v5802
    %v5889 = vpack.c.b16 %v5805, %v5803
    %v5890 = vpack.c.b16 %v5808, %v5806
    %v5891 = vpack.c.b16 %v5809, %v5807
    %v5892 = vpack.c.b16 %v5812, %v5810
    %v5893 = vpack.c.b16 %v5813, %v5811
    %v5894 = vpack.c.b16 %v5816, %v5814
    %v5895 = vpack.c.b16 %v5817, %v5815
    %v5896 = vpack.c.b16 %v5820, %v5818
    %v5897 = vpack.c.b16 %v5821, %v5819
    %v5898 = vpack.c.b16 %v5824, %v5822
    %v5899 = vpack.c.b16 %v5825, %v5823
    %v5900 = vpack.c.b16 %v5828, %v5826
    %v5901 = vpack.c.b16 %v5829, %v5827
    %v5902 = vpack.c.b16 %v5832, %v5830
    %v5903 = vpack.c.b16 %v5833, %v5831
    %v5904 = vpack.c.b16 %v5836, %v5834
    %v5905 = vpack.c.b16 %v5837, %v5835
    %v5906 = vpack.c.b16 %v5840, %v5838
    %v5907 = vpack.c.b16 %v5841, %v5839
    %v5908 = vpack.c.b16 %v5844, %v5842
    %v5909 = vpack.c.b16 %v5845, %v5843
    %5974 = vmatpush.bf16.msra.mxu0 %v5860
    %5975 = vmatpush.bf16.msra.mxu0 %v5858
    %5976 = vmatpush.bf16.msra.mxu0 %v5856
    %5977 = vmatpush.bf16.msra.mxu0 %v5854
    %5978 = vmatpush.bf16.msra.mxu0 %v5852
    %5979 = vmatpush.bf16.msra.mxu0 %v5850
    %5980 = vmatpush.bf16.msra.mxu0 %v5848
    %5981 = vmatpush.bf16.msra.mxu0 %v5846
    %5982 = vmatmul.bf16.gmra.mxu0 %v5580
    %v5983 = vpop.f32.mrf.mxu0
    %v5984 = vadd.f32 %v5650, %v5983
    %v5985 = vpop.f32.mrf.mxu0
    %5986 = vdwg.mxu0
    %5987 = vmatpush.bf16.msra.mxu0 %v5876
    %5988 = vmatpush.bf16.msra.mxu0 %v5874
    %5989 = vmatpush.bf16.msra.mxu0 %v5872
    %5990 = vmatpush.bf16.msra.mxu0 %v5870
    %5991 = vmatpush.bf16.msra.mxu0 %v5868
    %5992 = vmatpush.bf16.msra.mxu0 %v5866
    %5993 = vmatpush.bf16.msra.mxu0 %v5864
    %5994 = vmatpush.bf16.msra.mxu0 %v5862
    %5995 = vmatmul.bf16.gmra.mxu0 %v5581
    %v5996 = vpop.f32.mrf.mxu0
    %v5997 = vadd.f32 %v5984, %v5996
    %v5998 = vpop.f32.mrf.mxu0
    %5999 = vdwg.mxu0
    %6000 = vmatpush.bf16.msra.mxu0 %v5892
    %6001 = vmatpush.bf16.msra.mxu0 %v5890
    %6002 = vmatpush.bf16.msra.mxu0 %v5888
    %6003 = vmatpush.bf16.msra.mxu0 %v5886
    %6004 = vmatpush.bf16.msra.mxu0 %v5884
    %6005 = vmatpush.bf16.msra.mxu0 %v5882
    %6006 = vmatpush.bf16.msra.mxu0 %v5880
    %6007 = vmatpush.bf16.msra.mxu0 %v5878
    %6008 = vmatmul.bf16.gmra.mxu0 %v5582
    %v6009 = vpop.f32.mrf.mxu0
    %v6010 = vadd.f32 %v5997, %v6009
    %v6011 = vpop.f32.mrf.mxu0
    %6012 = vdwg.mxu0
    %6013 = vmatpush.bf16.msra.mxu0 %v5908
    %6014 = vmatpush.bf16.msra.mxu0 %v5906
    %6015 = vmatpush.bf16.msra.mxu0 %v5904
    %6016 = vmatpush.bf16.msra.mxu0 %v5902
    %6017 = vmatpush.bf16.msra.mxu0 %v5900
    %6018 = vmatpush.bf16.msra.mxu0 %v5898
    %6019 = vmatpush.bf16.msra.mxu0 %v5896
    %6020 = vmatpush.bf16.msra.mxu0 %v5894
    %6021 = vmatmul.bf16.gmra.mxu0 %v5583
    %v6022 = vpop.f32.mrf.mxu0
    %v6023 = vadd.f32 %v6010, %v6022
    %v6024 = vpop.f32.mrf.mxu0
    %6025 = vdwg.mxu0
    %6026 = vmatpush.bf16.msra.mxu0 %v5861
    %6027 = vmatpush.bf16.msra.mxu0 %v5859
    %6028 = vmatpush.bf16.msra.mxu0 %v5857
    %6029 = vmatpush.bf16.msra.mxu0 %v5855
    %6030 = vmatpush.bf16.msra.mxu0 %v5853
    %6031 = vmatpush.bf16.msra.mxu0 %v5851
    %6032 = vmatpush.bf16.msra.mxu0 %v5849
    %6033 = vmatpush.bf16.msra.mxu0 %v5847
    %6034 = vmatmul.bf16.gmra.mxu0 %v5580
    %v6035 = vpop.f32.mrf.mxu0
    %v6036 = vadd.f32 %v5651, %v6035
    %v6037 = vpop.f32.mrf.mxu0
    %6038 = vdwg.mxu0
    %6039 = vmatpush.bf16.msra.mxu0 %v5877
    %6040 = vmatpush.bf16.msra.mxu0 %v5875
    %6041 = vmatpush.bf16.msra.mxu0 %v5873
    %6042 = vmatpush.bf16.msra.mxu0 %v5871
    %6043 = vmatpush.bf16.msra.mxu0 %v5869
    %6044 = vmatpush.bf16.msra.mxu0 %v5867
    %6045 = vmatpush.bf16.msra.mxu0 %v5865
    %6046 = vmatpush.bf16.msra.mxu0 %v5863
    %6047 = vmatmul.bf16.gmra.mxu0 %v5581
    %v6048 = vpop.f32.mrf.mxu0
    %v6049 = vadd.f32 %v6036, %v6048
    %v6050 = vpop.f32.mrf.mxu0
    %6051 = vdwg.mxu0
    %6052 = vmatpush.bf16.msra.mxu0 %v5893
    %6053 = vmatpush.bf16.msra.mxu0 %v5891
    %6054 = vmatpush.bf16.msra.mxu0 %v5889
    %6055 = vmatpush.bf16.msra.mxu0 %v5887
    %6056 = vmatpush.bf16.msra.mxu0 %v5885
    %6057 = vmatpush.bf16.msra.mxu0 %v5883
    %6058 = vmatpush.bf16.msra.mxu0 %v5881
    %6059 = vmatpush.bf16.msra.mxu0 %v5879
    %6060 = vmatmul.bf16.gmra.mxu0 %v5582
    %v6061 = vpop.f32.mrf.mxu0
    %v6062 = vadd.f32 %v6049, %v6061
    %v6063 = vpop.f32.mrf.mxu0
    %6064 = vdwg.mxu0
    %6065 = vmatpush.bf16.msra.mxu0 %v5909
    %6066 = vmatpush.bf16.msra.mxu0 %v5907
    %6067 = vmatpush.bf16.msra.mxu0 %v5905
    %6068 = vmatpush.bf16.msra.mxu0 %v5903
    %6069 = vmatpush.bf16.msra.mxu0 %v5901
    %6070 = vmatpush.bf16.msra.mxu0 %v5899
    %6071 = vmatpush.bf16.msra.mxu0 %v5897
    %6072 = vmatpush.bf16.msra.mxu0 %v5895
    %6073 = vmatmul.bf16.gmra.mxu0 %v5583
    %v6074 = vpop.f32.mrf.mxu0
    %v6075 = vadd.f32 %v6062, %v6074
    %v6076 = vpop.f32.mrf.mxu0
    %6077 = vdwg.mxu0
    %v6078 = vmax.f32 %v6023, 0.0
    %v6079 = vmax.f32 %v6075, 0.0
    %v6080 = vld [vmem:[#allocation13] sm:$0x3]
    %v6081 = vunpack.c.l.bf16 %v6080
    %v6083 = vperm.slane %v6081, 0
    %v6084 = vperm.slane %v6081, 2
    %v6087 = vperm.slane %v6083, 0
    %v6088 = vperm.slane %v6084, 0
    %v6089 = vmul.f32 %v6078, %v6087
    %v6090 = vmul.f32 %v6079, %v6088
    %v6091 = vadd.f32 %v6089, %v6090
    %6092 = vadd.xlane.f32.xlu0 %v6091
    %v6093 = vpop.xlane.xlu0 %6092
    %v6094 = vld [vmem:[#allocation2] sm:$0x1]
    %v6096 = vperm.slane %v6094, 0
    %v6098 = vadd.f32 %v6093, %v6096
    %v6099 = vxor.u32 %v6098, 2147483648
    %v6100 = vmul.f32 %v6099, 1.442695
    %v6101 = vpow.pop %v6100
    %v6102 = vadd.f32 %v6101, 1.0
    %v6103 = vrcp.pop %v6102
    %v6104 = vmul.f32 %v6102, %v6103
    %v6105 = vsub.f32 1.0, %v6104
    %v6106 = vmul.f32 %v6103, %v6105
    %v6107 = vadd.f32 %v6103, %v6106
    %vm6108 = vweird.f32 %v6102
    %vm6109 = vweird.f32 %v6103
    %vm6110 = vmor %vm6108, %vm6109
    %v6111 = vsel %vm6110, %v6103, %v6107
    %v6112 = vand.u32 2147483647, %v6102
    %vm6113 = vcmp.eq.f32.partialorder %v6112, 8.507059e+37
    %v6114 = vand.u32 %v6102, 2147483648
    %v6115 = vor.u32 1.1754944e-38, %v6114
    %v6116 = vsel %vm6113, %v6115, %v6111
    %v6117 = vmul.f32 1.0, %v6116
    %vm6118 = vcmask 7168
    %6119 = vst.msk [vmem:[%s9] sm:$0xff] %vm6118, %v6117
    // Predicated region
    $region66: #{discriminator_forward.1} parent=1 // pred_check
      _
    $region67: #{discriminator_forward.1} parent=1 // pred_check_branch
      %6121 = sbr.rel (0) target = $region69
    $region68: #{discriminator_forward.1} parent=1 // pred_region
      _
    $region69: #{discriminator_forward.1} parent=1 // pred_fallthru
      _
    // Predicated region
    $region70: #{discriminator_forward.1} parent=1 // pred_check
      _
    $region71: #{discriminator_forward.1} parent=1 // pred_check_branch
      %6123 = sbr.rel (0) target = $region73
    $region72: #{discriminator_forward.1} parent=1 // pred_region
      _
    $region73: #{discriminator_forward.1} parent=1 // pred_fallthru
      _
    %6124 = vsyncpa [#allocation4], 1
    %6125 = vsyncpa [#allocation6], 1
    %6126 = vsyncpa [#allocation9], 1
    %6127 = vsyncpa [#allocation12], 1

</llo_original>
